<compile_context>
chip_gen: v7x
topology: tpu7x:2x2x1
jax: 0.10.0
libtpu: 0.0.40
codegen_flags: <defaults>
</compile_context>

<pallas_src>
import numpy as np
import jax
import jax.numpy as jnp
from jax.experimental import pallas as pl
from jax.experimental.pallas import tpu as pltpu

# ----------------------- Leaf configuration (module defaults) -----------------------
N_FILTERS = 40
SAMPLE_RATE = 16000
WINDOW_LEN_MS = 25.0
WINDOW_STRIDE_MS = 10.0
KSIZE = int(SAMPLE_RATE * WINDOW_LEN_MS // 1000 + 1)      # 401
STRIDE = int(SAMPLE_RATE * WINDOW_STRIDE_MS // 1000)      # 160
MIN_FREQ, MAX_FREQ = 60.0, 7800.0

PCEN_ALPHA = min(0.96, 1.0)                               # torch.min(alpha, 1)
PCEN_DELTA = 2.0
PCEN_ROOT = max(2.0, 1.0)                                 # torch.max(root, 1) == 2
PCEN_SMOOTH = float(np.clip(0.04, 0.0, 1.0))
PCEN_FLOOR = 1e-12
MAX_FLOOR = 1e-5
DELTA_ROOT = float(PCEN_DELTA ** (1.0 / PCEN_ROOT))       # sqrt(delta) since root == 2

KP = 512                                                  # KSIZE padded to lane multiple
TM_CAP = 2048                                             # max time tile (lanes); keeps
                                                          # double-buffered bf16 patches ~4 MiB


# ----------------------- deterministic parameter initialization ---------------------
def _hz_to_mel(f):
    return 2595.0 * np.log10(1.0 + f / 700.0)


def _mel_to_hz(m):
    return 700.0 * (10.0 ** (m / 2595.0) - 1.0)


def _gabor_params(n_filters, sr, fmin, fmax):
    # Mel-spaced center frequencies / bandwidths (deterministic stand-in for GaborInit).
    mel = np.linspace(_hz_to_mel(fmin), _hz_to_mel(fmax), n_filters + 2)
    hz = _mel_to_hz(mel)
    center_hz = hz[1:-1]
    bw_hz = np.maximum((hz[2:] - hz[:-2]) / 2.0, 1.0)
    center = 2.0 * np.pi * center_hz / sr                      # rad / sample
    coeff = np.sqrt(2.0 * np.log(2.0))
    fwhm = coeff * sr / (2.0 * np.pi * bw_hz)                  # time-domain std (samples)
    return center.astype(np.float32), fwhm.astype(np.float32)


def _gabor_filters(center, fwhm, ksize):
    # Gabor impulse response: (1/(sqrt(2*pi)*fwhm)) * exp(-t^2/(2*fwhm^2)) * exp(i*center*t)
    t = np.arange(-(ksize // 2), ksize // 2 + 1, dtype=np.float32)
    denom = (1.0 / (np.sqrt(2.0 * np.pi) * fwhm))[:, None]
    gauss = np.exp(-0.5 * t[None, :] ** 2 / (fwhm[:, None] ** 2))
    w_real = denom * gauss * np.cos(center[:, None] * t[None, :])
    w_imag = denom * gauss * np.sin(center[:, None] * t[None, :])
    return w_real.astype(np.float32), w_imag.astype(np.float32)   # (F, K)


def _gaussian_lowpass_1d(ksize, sigma=0.4):
    # GaussianLowPass init: sigma=0.4 for every filter -> one shared 1-D kernel is exact.
    sigma = float(np.clip(sigma, 2.0 / ksize, 0.5))
    t = np.arange(ksize, dtype=np.float32)
    num = t - 0.5 * (ksize - 1)
    den = sigma * 0.5 * (ksize - 1)
    return np.exp(-0.5 * (num / den) ** 2).astype(np.float32)      # (K,)


_CENTER, _FWHM = _gabor_params(N_FILTERS, SAMPLE_RATE, MIN_FREQ, MAX_FREQ)
_WR, _WI = _gabor_filters(_CENTER, _FWHM, KSIZE)                   # (F, K) each
_GLP = _gaussian_lowpass_1d(KSIZE)                                 # (K,)

# Fused Gabor weight: rows [real_0..real_F-1, imag_0..imag_F-1], lanes padded K -> KP.
_W = np.zeros((2 * N_FILTERS, KP), np.float32)
_W[:N_FILTERS, :KSIZE] = _WR
_W[N_FILTERS:, :KSIZE] = _WI


# -------------------------- host-built constant matmul operands ---------------------
def _round_up(x, m):
    return (x + m - 1) // m * m


def _pool_matrix(ns, ns_pad, n_out):
    """(ns_pad, n_out) matrix P s.t. lowpass(m)[f, j] == (m @ P)[f, j].

    Encodes the TF-SAME zero padding and the stride; rows >= ns are zero so the
    extra conv-time padding (ns -> ns_pad) never contributes.
    """
    pad_total = max((n_out - 1) * STRIDE + KSIZE - ns, 0)
    pad_l = pad_total // 2
    t = np.arange(ns)[:, None]                                     # (ns, 1)
    k = t + pad_l - np.arange(n_out)[None, :] * STRIDE             # gaussian tap index
    valid = (k >= 0) & (k < KSIZE)
    p = np.where(valid, _GLP[np.clip(k, 0, KSIZE - 1)], 0.0).astype(np.float32)
    return np.pad(p, ((0, ns_pad - ns), (0, 0)))                   # (ns_pad, n_out)


def _ema_matrix(n_out, s):
    """(n_out, n_out) lower-triangular-by-column matrix E s.t. ema == pooled @ E.

    Matches the PCEN EMA recurrence ema[0]=x[0]; ema[j]=s*x[j]+(1-s)*ema[j-1].
    """
    i = np.arange(n_out)[:, None]
    j = np.arange(n_out)[None, :]
    w = np.where(i == 0, (1.0 - s) ** j, s * (1.0 - s) ** np.maximum(j - i, 0))
    return np.where(j >= i, w, 0.0).astype(np.float32)


# ------------------------------- fused LEAF kernel ----------------------------------
def _leaf_kernel(p_ref, w_ref, pool_ref, ema_ref, o_ref, acc_ref):
    f = N_FILTERS
    t = pl.program_id(1)

    @pl.when(t == 0)
    def _init():
        acc_ref[...] = jnp.zeros_like(acc_ref)

    # GaborConv1d: one MXU matmul with the fused real|imag weight (bf16 in, f32 acc).
    conv = jnp.dot(w_ref[...], p_ref[0], preferred_element_type=jnp.float32)   # (2F, TM)
    # SquaredModulus == 2 * AvgPool1d(k=2,s=2) over interleaved (real, imag) = re^2 + im^2.
    cr = conv[:f, :]
    ci = conv[f:, :]
    sq = cr * cr + ci * ci                                                      # (F, TM) f32
    # GaussianLowPass (TF-SAME, stride) as a matmul; partial frames accumulate over tiles.
    acc_ref[...] += jnp.dot(sq, pool_ref[...], preferred_element_type=jnp.float32)

    @pl.when(t == pl.num_programs(1) - 1)
    def _finalize():
        pooled = jnp.maximum(acc_ref[...], MAX_FLOOR)                 # torch.maximum(., 1e-5)
        # PCEN EMA via lower-triangular matmul (ema[0] = pooled[0]).
        ema = jnp.dot(pooled, ema_ref[...], preferred_element_type=jnp.float32)
        # (x / (floor+ema)^alpha + delta)^(1/root) - delta^(1/root); root == 2 -> sqrt.
        norm = pooled * jnp.exp(-PCEN_ALPHA * jnp.log(PCEN_FLOOR + ema))
        o_ref[0] = jnp.sqrt(norm + PCEN_DELTA) - DELTA_ROOT          # single lane-dense store


# ----------------------------------- forward ---------------------------------------
@jax.jit
def leaf_forward(x):
    B, _, ns = x.shape
    F, K, S = N_FILTERS, KSIZE, STRIDE
    n_out = -(-ns // S)                                   # ceil(ns / S) frames (TF-SAME)
    tm = min(TM_CAP, _round_up(ns, 128))                  # lane-dense time tile (mult. of 128)
    ns_pad = _round_up(ns, tm)
    n_t = ns_pad // tm

    # Transposed im2col in bf16: patches[b, k, t] = x_same_padded[b, t + k].
    # Gather is fused with the bf16 cast so only bf16 patches hit HBM.
    pad_l = K // 2
    pad_r = ns_pad + KP - 1 - pad_l - ns
    xp = jnp.pad(x[:, 0, :], ((0, 0), (pad_l, pad_r))).astype(jnp.bfloat16)
    idx = jnp.arange(KP)[:, None] + jnp.arange(ns_pad)[None, :]          # (KP, ns_pad)
    patches = xp[:, idx]                                                 # (B, KP, ns_pad) bf16
    # TODO(synk): build patches in-kernel from a VMEM-resident overlapping signal window to
    # remove the remaining KP-fold im2col HBM amplification for long inputs.

    w = jnp.asarray(_W, jnp.bfloat16)                                    # (2F, KP)
    pool = jnp.asarray(_pool_matrix(ns, ns_pad, n_out))                  # (ns_pad, n_out)
    ema_m = jnp.asarray(_ema_matrix(n_out, PCEN_SMOOTH))                 # (n_out, n_out)

    return pl.pallas_call(
        _leaf_kernel,
        out_shape=jax.ShapeDtypeStruct((B, F, n_out), jnp.float32),
        grid_spec=pltpu.PrefetchScalarGridSpec(
            num_scalar_prefetch=0,
            grid=(B, n_t),
            in_specs=[pl.BlockSpec((1, KP, tm), lambda b, t: (b, 0, t)),
                      pl.BlockSpec((2 * F, KP), lambda b, t: (0, 0)),
                      pl.BlockSpec((tm, n_out), lambda b, t: (t, 0)),
                      pl.BlockSpec((n_out, n_out), lambda b, t: (0, 0))],
            out_specs=pl.BlockSpec((1, F, n_out), lambda b, t: (b, 0, 0)),
            scratch_shapes=[pltpu.VMEM((F, n_out), jnp.float32)]),
        compiler_params=pltpu.CompilerParams(
            dimension_semantics=("parallel", "arbitrary"),
            vmem_limit_bytes=32 * 1024 * 1024),
    )(patches, w, pool, ema_m)


# TODO(synk): preemp / instance_norm branches are disabled by default in the PyTorch
# module (raise NotImplementedError), so they are intentionally not implemented here.

if __name__ == "__main__":
    key = jax.random.PRNGKey(0)
    B, NS = 2, 1600                                       # 100 ms @ 16 kHz
    x = jax.random.normal(key, (B, 1, NS), dtype=jnp.float32)
    out = jax.block_until_ready(leaf_forward(x))
    assert out.shape == (B, N_FILTERS, -(-NS // STRIDE)), out.shape
    assert bool(jnp.all(jnp.isfinite(out)))
    print("KERNEL_OK")
</pallas_src>

<mosaic_0001>
module attributes {stable_mosaic.version = 11 : i64} {
  func.func @_leaf_kernel(%arg0: i32, %arg1: i32, %arg2: memref<1x512x1664xbf16, #tpu.memory_space<vmem>>, %arg3: memref<80x512xbf16, #tpu.memory_space<vmem>>, %arg4: memref<1664x10xf32, #tpu.memory_space<vmem>>, %arg5: memref<10x10xf32, #tpu.memory_space<vmem>>, %arg6: memref<1x40x10xf32, #tpu.memory_space<vmem>>, %arg7: memref<40x10xf32, #tpu.memory_space<vmem>>) attributes {dimension_semantics = [#tpu.dimension_semantics<parallel>, #tpu.dimension_semantics<arbitrary>], iteration_bounds = array<i64: 2, 1>, scalar_prefetch = 0 : i64, scratch_operands = 1 : i64, tpu.core_type = #tpu.core_type<tc>, window_params = [{transform_indices = @transform_0, window_bounds = array<i64: 1, 512, 1664>}, {pipeline_mode = #tpu.pipeline_mode<synchronous>, transform_indices = @transform_1, window_bounds = array<i64: 80, 512>}, {transform_indices = @transform_2, window_bounds = array<i64: 1664, 10>}, {pipeline_mode = #tpu.pipeline_mode<synchronous>, transform_indices = @transform_3, window_bounds = array<i64: 10, 10>}, {transform_indices = @transform_4, window_bounds = array<i64: 1, 40, 10>}]} {
    %c0_i32 = arith.constant 0 : i32
    %0 = arith.cmpi eq, %arg1, %c0_i32 : i32
    %1 = arith.extui %0 : i1 to i32
    %c0_i32_0 = arith.constant 0 : i32
    %2 = arith.cmpi ne, %1, %c0_i32_0 : i32
    scf.if %2 {
      %cst_14 = arith.constant 0.000000e+00 : f32
      %20 = vector.broadcast %cst_14 : f32 to vector<40x10xf32>
      %c0_15 = arith.constant 0 : index
      %c0_16 = arith.constant 0 : index
      %21 = vector.load %arg7[%c0_15, %c0_16] : memref<40x10xf32, #tpu.memory_space<vmem>>, vector<40x10xf32>
      tpu.vector_store %arg7[%c0_15, %c0_16], %20 {strides = array<i32>} : memref<40x10xf32, #tpu.memory_space<vmem>>, vector<40x10xf32>,
    } else {
    }
    %c0 = arith.constant 0 : index
    %c0_1 = arith.constant 0 : index
    %3 = vector.load %arg3[%c0, %c0_1] : memref<80x512xbf16, #tpu.memory_space<vmem>>, vector<80x512xbf16>
    %c0_2 = arith.constant 0 : index
    %c0_3 = arith.constant 0 : index
    %c0_4 = arith.constant 0 : index
    %4 = vector.load %arg2[%c0_2, %c0_3, %c0_4] : memref<1x512x1664xbf16, #tpu.memory_space<vmem>>, vector<1x512x1664xbf16>
    %5 = vector.shape_cast %4 : vector<1x512x1664xbf16> to vector<512x1664xbf16>
    %cst = arith.constant dense<0.000000e+00> : vector<80x1664xf32>
    %6 = tpu.matmul %3, %5, %cst {dimension_numbers = #tpu.dot_dimension_numbers<[1], [0], [0], [1], [0, 0, 1, 1], [], []>} : vector<80x512xbf16>, vector<512x1664xbf16>, vector<80x1664xf32> -> vector<80x1664xf32>
    %7 = vector.extract_strided_slice %6 {offsets = [0, 0], sizes = [40, 1664], strides = [1, 1]} : vector<80x1664xf32> to vector<40x1664xf32>
    %8 = vector.extract_strided_slice %6 {offsets = [40, 0], sizes = [40, 1664], strides = [1, 1]} : vector<80x1664xf32> to vector<40x1664xf32>
    %9 = arith.mulf %7, %7 : vector<40x1664xf32>
    %10 = arith.mulf %8, %8 : vector<40x1664xf32>
    %11 = arith.addf %9, %10 : vector<40x1664xf32>
    %c0_5 = arith.constant 0 : index
    %c0_6 = arith.constant 0 : index
    %12 = vector.load %arg7[%c0_5, %c0_6] : memref<40x10xf32, #tpu.memory_space<vmem>>, vector<40x10xf32>
    %c0_7 = arith.constant 0 : index
    %c0_8 = arith.constant 0 : index
    %13 = vector.load %arg4[%c0_7, %c0_8] : memref<1664x10xf32, #tpu.memory_space<vmem>>, vector<1664x10xf32>
    %cst_9 = arith.constant dense<0.000000e+00> : vector<40x10xf32>
    %14 = tpu.matmul %11, %13, %cst_9 {dimension_numbers = #tpu.dot_dimension_numbers<[1], [0], [0], [1], [0, 0, 1, 1], [], []>} : vector<40x1664xf32>, vector<1664x10xf32>, vector<40x10xf32> -> vector<40x10xf32>
    %15 = arith.addf %12, %14 : vector<40x10xf32>
    %c0_10 = arith.constant 0 : index
    %c0_11 = arith.constant 0 : index
    %16 = vector.load %arg7[%c0_10, %c0_11] : memref<40x10xf32, #tpu.memory_space<vmem>>, vector<40x10xf32>
    tpu.vector_store %arg7[%c0_10, %c0_11], %15 {strides = array<i32>} : memref<40x10xf32, #tpu.memory_space<vmem>>, vector<40x10xf32>,
    %c0_i32_12 = arith.constant 0 : i32
    %17 = arith.cmpi eq, %arg1, %c0_i32_12 : i32
    %18 = arith.extui %17 : i1 to i32
    %c0_i32_13 = arith.constant 0 : i32
    %19 = arith.cmpi ne, %18, %c0_i32_13 : i32
    scf.if %19 {
      %c0_14 = arith.constant 0 : index
      %c0_15 = arith.constant 0 : index
      %20 = vector.load %arg7[%c0_14, %c0_15] : memref<40x10xf32, #tpu.memory_space<vmem>>, vector<40x10xf32>
      %cst_16 = arith.constant 9.99999974E-6 : f32
      %21 = vector.broadcast %cst_16 : f32 to vector<40x10xf32>
      %22 = arith.maximumf %20, %21 : vector<40x10xf32>
      %c0_17 = arith.constant 0 : index
      %c0_18 = arith.constant 0 : index
      %23 = vector.load %arg5[%c0_17, %c0_18] : memref<10x10xf32, #tpu.memory_space<vmem>>, vector<10x10xf32>
      %cst_19 = arith.constant dense<0.000000e+00> : vector<40x10xf32>
      %24 = tpu.matmul %22, %23, %cst_19 {dimension_numbers = #tpu.dot_dimension_numbers<[1], [0], [0], [1], [0, 0, 1, 1], [], []>} : vector<40x10xf32>, vector<10x10xf32>, vector<40x10xf32> -> vector<40x10xf32>
      %cst_20 = arith.constant 9.99999996E-13 : f32
      %25 = vector.broadcast %cst_20 : f32 to vector<40x10xf32>
      %26 = arith.addf %25, %24 : vector<40x10xf32>
      %27 = math.log %26 : vector<40x10xf32>
      %cst_21 = arith.constant -0.959999978 : f32
      %28 = vector.broadcast %cst_21 : f32 to vector<40x10xf32>
      %29 = arith.mulf %28, %27 : vector<40x10xf32>
      %30 = math.exp %29 : vector<40x10xf32>
      %31 = arith.mulf %22, %30 : vector<40x10xf32>
      %cst_22 = arith.constant 2.000000e+00 : f32
      %32 = vector.broadcast %cst_22 : f32 to vector<40x10xf32>
      %33 = arith.addf %31, %32 : vector<40x10xf32>
      %34 = math.sqrt %33 : vector<40x10xf32>
      %cst_23 = arith.constant 1.41421354 : f32
      %35 = vector.broadcast %cst_23 : f32 to vector<40x10xf32>
      %36 = arith.subf %34, %35 : vector<40x10xf32>
      %c0_24 = arith.constant 0 : index
      %c0_25 = arith.constant 0 : index
      %c0_26 = arith.constant 0 : index
      %37 = vector.load %arg6[%c0_24, %c0_25, %c0_26] : memref<1x40x10xf32, #tpu.memory_space<vmem>>, vector<1x40x10xf32>
      %38 = vector.shape_cast %37 : vector<1x40x10xf32> to vector<40x10xf32>
      %39 = vector.shape_cast %36 : vector<40x10xf32> to vector<1x40x10xf32>
      tpu.vector_store %arg6[%c0_24, %c0_25, %c0_26], %39 {strides = array<i32>} : memref<1x40x10xf32, #tpu.memory_space<vmem>>, vector<1x40x10xf32>,
    } else {
    }
    return
  }
  func.func @transform_0(%arg0: i32, %arg1: i32) -> (i32, i32, i32) {
    %c0_i32 = arith.constant 0 : i32
    %c0_i32_0 = arith.constant 0 : i32
    return %arg0, %c0_i32, %arg1 : i32, i32, i32
  }
  func.func @transform_1(%arg0: i32, %arg1: i32) -> (i32, i32) {
    %c0_i32 = arith.constant 0 : i32
    %c0_i32_0 = arith.constant 0 : i32
    %c0_i32_1 = arith.constant 0 : i32
    return %c0_i32, %c0_i32_0 : i32, i32
  }
  func.func @transform_2(%arg0: i32, %arg1: i32) -> (i32, i32) {
    %c0_i32 = arith.constant 0 : i32
    %c0_i32_0 = arith.constant 0 : i32
    return %arg1, %c0_i32 : i32, i32
  }
  func.func @transform_3(%arg0: i32, %arg1: i32) -> (i32, i32) {
    %c0_i32 = arith.constant 0 : i32
    %c0_i32_0 = arith.constant 0 : i32
    %c0_i32_1 = arith.constant 0 : i32
    return %c0_i32, %c0_i32_0 : i32, i32
  }
  func.func @transform_4(%arg0: i32, %arg1: i32) -> (i32, i32, i32) {
    %c0_i32 = arith.constant 0 : i32
    %c0_i32_0 = arith.constant 0 : i32
    %c0_i32_1 = arith.constant 0 : i32
    return %arg0, %c0_i32, %c0_i32_0 : i32, i32, i32
  }
}

</mosaic_0001>

<llo_original>
// kernel: leaf_forward.1
$region0: #{leaf_forward.1}
  #allocation0 [shape = 'u32[]', space=smem, size = 0x4, offset = 0x4, fixed_abs, tag = 'smem constant byte address 0x4 - core index']
  #allocation1 [shape = 'u32[144,128]{1,0:T(1,128)}', space=vmem, size = 0x12000, scoped, tag = 'internal scratch']
  #allocation2 [shape = 'f32[40,10]{1,0:T(8,128)}', space=vmem, size = 0x5000, scoped, tag = 'scratch operand']
  %s0 = inlined_call_operand.vmem [shape: bf16[2,512,1664], index: 0, kind: input, shape index: {}]
  %s1 = inlined_call_operand.vmem [shape: bf16[80,512], index: 1, kind: input, shape index: {}]
  %s2 = inlined_call_operand.vmem [shape: f32[1664,10], index: 2, kind: input, shape index: {}]
  %s3 = inlined_call_operand.vmem [shape: f32[10,10], index: 3, kind: input, shape index: {}]
  %s4 = inlined_call_operand.vmem [shape: f32[2,40,10], index: 4, kind: output, shape index: {}]
  %s5 = sld [smem:[#allocation0]]
  $region57: #{leaf_forward.1} parent=0
    _
  %s7 = ssub.s32 1, %s5
  %s8 = scalar_select 0, %s7, %s5
  loop: start=0, step=1, limit=4
  $region2: #{leaf_forward.1} parent=0 // loop_pre_header
    _
  $region3: #{leaf_forward.1} parent=0 // loop_header
    %s10 = sphi 0, %s14
    %p11 = scmp.ge.s32.totalorder %s10, 4
    %s17 = sphi 0, %s29
    %s18 = sphi 0, %s25
    %s19 = sphi 0, %s17
    %s20 = sphi 0, %s18
    %s21 = sphi 0, %s19
    %s22 = sphi 0, %s20
    %s34 = sphi 0, %s36
    %s37 = sphi 0, %s34
    %s38 = sphi 0, %s37
    %s54 = sphi 0, %s38
    %s58 = sphi 0, %s58
    %s60 = sphi 0, %s58
    %s61 = sphi 0, %s60
    %s75 = sphi 0, %s61
    %s81 = sphi 0, %s83
    %s84 = sphi 0, %s81
    %s85 = sphi 0, %s84
    %s101 = sphi 0, %s85
    %s105 = sphi 0, %s105
    %s107 = sphi 0, %s105
    %s108 = sphi 0, %s107
    %s122 = sphi 0, %s108
    %s128 = sphi 0, %s130
    %s131 = sphi 0, %s128
    %s132 = sphi 0, %s131
    %s148 = sphi 0, %s132
  $region4: #{leaf_forward.1} parent=0 // loop_header_branch
    %13 = sbr.rel (%p11) target = $region8
  $region5: #{leaf_forward.1} parent=0 // loop_body
    %s15 = ssub.s32 %s10, 1
    %s16 = ssub.s32 %s10, 2
    %s23 = sadd.s32 1, %s18
    %p24 = scmp.ge.s32.totalorder %s23, 1
    %s25 = scalar_select %p24, 0, %s23
    %s26 = sadd.s32 1, %s17
    %s27 = scalar_select %p24, %s26, %s17
    %p28 = scmp.ge.s32.totalorder %s27, 2
    %s29 = scalar_select %p28, 0, %s27
    %s30 = ssub.s32 %s17, %s29
    %s31 = ssub.s32 %s18, %s25
    %s32 = sor.u32 %s30, %s31
    %p33 = scmp.eq.s32.totalorder %s32, 0
    %s35 = sadd.s32 %s34, 1
    %s36 = scalar_select %p33, %s34, %s35
    %p39 = pneg %p33
    %p40 = scmp.eq.s32.totalorder %s10, 1
    %p41 = por %p39, %p40
    %p42 = scmp.ne.s32.totalorder %s34, %s37
    %p43 = scmp.eq.s32.totalorder %s10, 0
    %p44 = por %p42, %p43
    %p45 = scmp.ne.s32.totalorder %s34, %s37
    %p46 = scmp.eq.s32.totalorder %s15, 1
    %p47 = por %p45, %p46
    %p48 = scmp.ne.s32.totalorder %s37, %s38
    %p49 = scmp.eq.s32.totalorder %s15, 0
    %p50 = por %p48, %p49
    %p51 = scmp.ne.s32.totalorder %s37, %s38
    %p52 = scmp.eq.s32.totalorder %s16, 1
    %p53 = por %p51, %p52
    %p55 = scmp.ne.s32.totalorder %s38, %s54
    %p56 = scmp.eq.s32.totalorder %s16, 0
    %p57 = por %p55, %p56
    %s59 = sadd.s32 %s58, 1
    %p62 = scmp.eq.s32.totalorder %s10, 1
    %p63 = scmp.ne.s32.totalorder %s58, %s60
    %p64 = scmp.eq.s32.totalorder %s10, 0
    %p65 = por %p63, %p64
    %p66 = scmp.ne.s32.totalorder %s58, %s60
    %p67 = scmp.eq.s32.totalorder %s15, 1
    %p68 = por %p66, %p67
    %p69 = scmp.ne.s32.totalorder %s60, %s61
    %p70 = scmp.eq.s32.totalorder %s15, 0
    %p71 = por %p69, %p70
    %p72 = scmp.ne.s32.totalorder %s60, %s61
    %p73 = scmp.eq.s32.totalorder %s16, 1
    %p74 = por %p72, %p73
    %p76 = scmp.ne.s32.totalorder %s61, %s75
    %p77 = scmp.eq.s32.totalorder %s16, 0
    %p78 = por %p76, %p77
    %s79 = ssub.s32 %s18, %s25
    %p80 = scmp.eq.s32.totalorder %s79, 0
    %s82 = sadd.s32 %s81, 1
    %s83 = scalar_select %p80, %s81, %s82
    %p86 = pneg %p80
    %p87 = scmp.eq.s32.totalorder %s10, 1
    %p88 = por %p86, %p87
    %p89 = scmp.ne.s32.totalorder %s81, %s84
    %p90 = scmp.eq.s32.totalorder %s10, 0
    %p91 = por %p89, %p90
    %p92 = scmp.ne.s32.totalorder %s81, %s84
    %p93 = scmp.eq.s32.totalorder %s15, 1
    %p94 = por %p92, %p93
    %p95 = scmp.ne.s32.totalorder %s84, %s85
    %p96 = scmp.eq.s32.totalorder %s15, 0
    %p97 = por %p95, %p96
    %p98 = scmp.ne.s32.totalorder %s84, %s85
    %p99 = scmp.eq.s32.totalorder %s16, 1
    %p100 = por %p98, %p99
    %p102 = scmp.ne.s32.totalorder %s85, %s101
    %p103 = scmp.eq.s32.totalorder %s16, 0
    %p104 = por %p102, %p103
    %s106 = sadd.s32 %s105, 1
    %p109 = scmp.eq.s32.totalorder %s10, 1
    %p110 = scmp.ne.s32.totalorder %s105, %s107
    %p111 = scmp.eq.s32.totalorder %s10, 0
    %p112 = por %p110, %p111
    %p113 = scmp.ne.s32.totalorder %s105, %s107
    %p114 = scmp.eq.s32.totalorder %s15, 1
    %p115 = por %p113, %p114
    %p116 = scmp.ne.s32.totalorder %s107, %s108
    %p117 = scmp.eq.s32.totalorder %s15, 0
    %p118 = por %p116, %p117
    %p119 = scmp.ne.s32.totalorder %s107, %s108
    %p120 = scmp.eq.s32.totalorder %s16, 1
    %p121 = por %p119, %p120
    %p123 = scmp.ne.s32.totalorder %s108, %s122
    %p124 = scmp.eq.s32.totalorder %s16, 0
    %p125 = por %p123, %p124
    %s126 = ssub.s32 %s17, %s29
    %p127 = scmp.eq.s32.totalorder %s126, 0
    %s129 = sadd.s32 %s128, 1
    %s130 = scalar_select %p127, %s128, %s129
    %p133 = pneg %p127
    %p134 = scmp.eq.s32.totalorder %s10, 1
    %p135 = por %p133, %p134
    %p136 = scmp.ne.s32.totalorder %s128, %s131
    %p137 = scmp.eq.s32.totalorder %s10, 0
    %p138 = por %p136, %p137
    %p139 = scmp.ne.s32.totalorder %s128, %s131
    %p140 = scmp.eq.s32.totalorder %s15, 1
    %p141 = por %p139, %p140
    %p142 = scmp.ne.s32.totalorder %s131, %s132
    %p143 = scmp.eq.s32.totalorder %s15, 0
    %p144 = por %p142, %p143
    %p145 = scmp.ne.s32.totalorder %s131, %s132
    %p146 = scmp.eq.s32.totalorder %s16, 1
    %p147 = por %p145, %p146
    %p149 = scmp.ne.s32.totalorder %s132, %s148
    %p150 = scmp.eq.s32.totalorder %s16, 0
    %p151 = por %p149, %p150
    %p152 = scmp.le.s32.totalorder 1, %s10
    %p153 = scmp.lt.s32.totalorder %s10, 3
    %p154 = pnand %p152, %p153
    %p155 = pneg %p154
    // Predicated region
    $region9: #{leaf_forward.1} parent=5 // pred_check
      _
    $region10: #{leaf_forward.1} parent=5 // pred_check_branch
      %157 = sbr.rel (%p154) target = $region12
    $region11: #{leaf_forward.1} parent=5 // pred_region
      %s158 = ssub.s32 %s10, 1
      // Predicated region
      $region13: #{leaf_forward.1} parent=11 // pred_check
        %p159 = pneg %p71
      $region14: #{leaf_forward.1} parent=11 // pred_check_branch
        %161 = sbr.rel (%p159) target = $region16
      $region15: #{leaf_forward.1} parent=11 // pred_region
        _
      $region16: #{leaf_forward.1} parent=11 // pred_fallthru
        _
      // Predicated region
      $region17: #{leaf_forward.1} parent=11 // pred_check
        %p162 = pneg %p97
      $region18: #{leaf_forward.1} parent=11 // pred_check_branch
        %164 = sbr.rel (%p162) target = $region20
      $region19: #{leaf_forward.1} parent=11 // pred_region
        %s165 = smul.u32 208, %s20
        %p166 = scmp.lt.s32.totalorder %s165, 207
        %s167 = scalar_select %p166, %s165, 207
        %s168 = smul.addr %s167, 8
        %s169 = scalar_lea.vmem %s2, %s168
        %s170 = smul.u32 208, %s20
      $region20: #{leaf_forward.1} parent=11 // pred_fallthru
        _
      // Predicated region
      $region21: #{leaf_forward.1} parent=11 // pred_check
        %p171 = pneg %p118
      $region22: #{leaf_forward.1} parent=11 // pred_check_branch
        %173 = sbr.rel (%p171) target = $region24
      $region23: #{leaf_forward.1} parent=11 // pred_region
        _
      $region24: #{leaf_forward.1} parent=11 // pred_fallthru
        _
    $region12: #{leaf_forward.1} parent=5 // pred_fallthru
      _
    %p174 = scmp.lt.s32.totalorder %s10, 2
    // Predicated region
    $region25: #{leaf_forward.1} parent=5 // pred_check
      %p175 = pneg %p174
    $region26: #{leaf_forward.1} parent=5 // pred_check_branch
      %177 = sbr.rel (%p175) target = $region28
    $region27: #{leaf_forward.1} parent=5 // pred_region
      // Predicated region
      $region29: #{leaf_forward.1} parent=27 // pred_check
        %p178 = pneg %p44
      $region30: #{leaf_forward.1} parent=27 // pred_check_branch
        %180 = sbr.rel (%p178) target = $region32
      $region31: #{leaf_forward.1} parent=27 // pred_region
        %s181 = smul.u32 13, %s18
        %p182 = scmp.lt.s32.totalorder %s17, 1
        %s183 = scalar_select %p182, %s17, 1
        %p184 = scmp.lt.s32.totalorder %s181, 12
        %s185 = scalar_select %p184, %s181, 12
        %s186 = smul.addr %s183, 832
        %s187 = sadd.s32 %s185, %s186
        %s188 = smul.addr %s187, 4
        %s189 = scalar_lea.vmem %s0, %s188
        %s190 = smul.u32 13, %s18
      $region32: #{leaf_forward.1} parent=27 // pred_fallthru
        _
    $region28: #{leaf_forward.1} parent=5 // pred_fallthru
      _
    %p191 = scmp.le.s32.totalorder 1, %s10
    %p192 = scmp.lt.s32.totalorder %s10, 3
    %p193 = pnand %p191, %p192
    %p194 = pneg %p193
    // Predicated region
    $region33: #{leaf_forward.1} parent=5 // pred_check
      _
    $region34: #{leaf_forward.1} parent=5 // pred_check_branch
      %196 = sbr.rel (%p193) target = $region36
    $region35: #{leaf_forward.1} parent=5 // pred_region
      %s197 = ssub.s32 %s10, 1
      %s198 = smul.u32 13, %s20
      %p199 = scmp.lt.s32.totalorder %s19, 1
      %s200 = scalar_select %p199, %s19, 1
      %p201 = scmp.lt.s32.totalorder %s198, 12
      %s202 = scalar_select %p201, %s198, 12
      %s203 = smul.addr %s200, 832
      %s204 = sadd.s32 %s202, %s203
      %s205 = smul.addr %s204, 4
      %s206 = scalar_lea.vmem %s0, %s205
      %p207 = pneg %p50
      %p208 = pneg %p47
      %p209 = pneg %p71
      %p210 = pneg %p68
      %s211 = smul.u32 208, %s20
      %p212 = scmp.lt.s32.totalorder %s211, 207
      %s213 = scalar_select %p212, %s211, 207
      %s214 = smul.addr %s213, 8
      %s215 = scalar_lea.vmem %s2, %s214
      %p216 = pneg %p97
      %p217 = pneg %p94
      %p218 = pneg %p118
      %p219 = pneg %p115
      %p220 = pneg %p144
      %p221 = pneg %p141
      %p222 = scmp.lt.s32.totalorder %s19, 1
      %s223 = scalar_select %p222, %s19, 1
      %s224 = smul.addr %s223, 5
      %s225 = smul.addr %s224, 8
      %s226 = scalar_lea.vmem %s4, %s225
      %s227 = smul.u32 13, %s20
      %p228 = scmp.lt.s32.totalorder %s19, 1
      %s229 = scalar_select %p228, %s19, 1
      %p230 = scmp.lt.s32.totalorder %s227, 12
      %s231 = scalar_select %p230, %s227, 12
      %s232 = smul.addr %s229, 832
      %s233 = sadd.s32 %s231, %s232
      %s234 = smul.addr %s233, 4
      %s235 = scalar_lea.vmem %s0, %s234
      %s236 = smul.u32 13, %s20
      %s237 = smul.u32 208, %s20
      %p238 = scmp.lt.s32.totalorder %s237, 207
      %s239 = scalar_select %p238, %s237, 207
      %s240 = smul.addr %s239, 8
      %s241 = scalar_lea.vmem %s2, %s240
      %s242 = smul.u32 208, %s20
      %p243 = scmp.lt.s32.totalorder %s19, 1
      %s244 = scalar_select %p243, %s19, 1
      %s245 = smul.addr %s244, 5
      %s246 = smul.addr %s245, 8
      %s247 = scalar_lea.vmem %s4, %s246
      %p249 = scmp.eq.s32.totalorder %s20, 0
      // Predicated region
      $region37: #{leaf_forward.1} parent=35 // pred_check
        %p250 = pneg %p249
      $region38: #{leaf_forward.1} parent=35 // pred_check_branch
        %252 = sbr.rel (%p250) target = $region40
      $region39: #{leaf_forward.1} parent=35 // pred_region
        %vm253 = vcmask 80896
        %254 = vst.msk [vmem:[#allocation2] sm:$0xff] %vm253, 0.0
        %255 = vst.msk [vmem:[#allocation2 + $0x8] sm:$0xff] %vm253, 0.0
        %256 = vst.msk [vmem:[#allocation2 + $0x10] sm:$0xff] %vm253, 0.0
        %257 = vst.msk [vmem:[#allocation2 + $0x18] sm:$0xff] %vm253, 0.0
        %258 = vst.msk [vmem:[#allocation2 + $0x20] sm:$0xff] %vm253, 0.0
      $region40: #{leaf_forward.1} parent=35 // pred_fallthru
        _
      %v259 = vld [vmem:[%s1] sm:$0xff]
      %v260 = vld [vmem:[%s1 + $0x8] sm:$0xff]
      %v261 = vld [vmem:[%s1 + $0x10] sm:$0xff]
      %v262 = vld [vmem:[%s1 + $0x18] sm:$0xff]
      %v263 = vld [vmem:[%s1 + $0x20] sm:$0xff]
      %v264 = vld [vmem:[%s1 + $0x28] sm:$0xff]
      %v265 = vld [vmem:[%s1 + $0x30] sm:$0xff]
      %v266 = vld [vmem:[%s1 + $0x38] sm:$0xff]
      %v267 = vld [vmem:[%s1 + $0x40] sm:$0xff]
      %v268 = vld [vmem:[%s1 + $0x48] sm:$0xff]
      %v269 = vld [vmem:[%s1 + $0x50] sm:$0xff]
      %v270 = vld [vmem:[%s1 + $0x58] sm:$0xff]
      %v271 = vld [vmem:[%s1 + $0x60] sm:$0xff]
      %v272 = vld [vmem:[%s1 + $0x68] sm:$0xff]
      %v273 = vld [vmem:[%s1 + $0x70] sm:$0xff]
      %v274 = vld [vmem:[%s1 + $0x78] sm:$0xff]
      %v275 = vld [vmem:[%s1 + $0x80] sm:$0xff]
      %v276 = vld [vmem:[%s1 + $0x88] sm:$0xff]
      %v277 = vld [vmem:[%s1 + $0x90] sm:$0xff]
      %v278 = vld [vmem:[%s1 + $0x98] sm:$0xff]
      %v279 = vld [vmem:[%s235] sm:$0xff]
      %v280 = vld [vmem:[%s235 + $0x8] sm:$0xff]
      %v281 = vld [vmem:[%s235 + $0x10] sm:$0xff]
      %v282 = vld [vmem:[%s235 + $0x18] sm:$0xff]
      %v283 = vld [vmem:[%s235 + $0x20] sm:$0xff]
      %v284 = vld [vmem:[%s235 + $0x28] sm:$0xff]
      %v285 = vld [vmem:[%s235 + $0x30] sm:$0xf]
      %v286 = vld [vmem:[%s235 + $0x34] sm:$0xff]
      %v287 = vld [vmem:[%s235 + $0x3c] sm:$0xff]
      %v288 = vld [vmem:[%s235 + $0x44] sm:$0xff]
      %v289 = vld [vmem:[%s235 + $0x4c] sm:$0xff]
      %v290 = vld [vmem:[%s235 + $0x54] sm:$0xff]
      %v291 = vld [vmem:[%s235 + $0x5c] sm:$0xff]
      %v292 = vld [vmem:[%s235 + $0x64] sm:$0xf]
      %v293 = vld [vmem:[%s235 + $0x68] sm:$0xff]
      %v294 = vld [vmem:[%s235 + $0x70] sm:$0xff]
      %v295 = vld [vmem:[%s235 + $0x78] sm:$0xff]
      %v296 = vld [vmem:[%s235 + $0x80] sm:$0xff]
      %v297 = vld [vmem:[%s235 + $0x88] sm:$0xff]
      %v298 = vld [vmem:[%s235 + $0x90] sm:$0xff]
      %v299 = vld [vmem:[%s235 + $0x98] sm:$0xf]
      %v300 = vld [vmem:[%s235 + $0x9c] sm:$0xff]
      %v301 = vld [vmem:[%s235 + $0xa4] sm:$0xff]
      %v302 = vld [vmem:[%s235 + $0xac] sm:$0xff]
      %v303 = vld [vmem:[%s235 + $0xb4] sm:$0xff]
      %v304 = vld [vmem:[%s235 + $0xbc] sm:$0xff]
      %v305 = vld [vmem:[%s235 + $0xc4] sm:$0xff]
      %v306 = vld [vmem:[%s235 + $0xcc] sm:$0xf]
      %v307 = vld [vmem:[%s235 + $0xd0] sm:$0xff]
      %v308 = vld [vmem:[%s235 + $0xd8] sm:$0xff]
      %v309 = vld [vmem:[%s235 + $0xe0] sm:$0xff]
      %v310 = vld [vmem:[%s235 + $0xe8] sm:$0xff]
      %v311 = vld [vmem:[%s235 + $0xf0] sm:$0xff]
      %v312 = vld [vmem:[%s235 + $0xf8] sm:$0xff]
      %v313 = vld [vmem:[%s235 + $0x100] sm:$0xf]
      %v314 = vld [vmem:[%s235 + $0x104] sm:$0xff]
      %v315 = vld [vmem:[%s235 + $0x10c] sm:$0xff]
      %v316 = vld [vmem:[%s235 + $0x114] sm:$0xff]
      %v317 = vld [vmem:[%s235 + $0x11c] sm:$0xff]
      %v318 = vld [vmem:[%s235 + $0x124] sm:$0xff]
      %v319 = vld [vmem:[%s235 + $0x12c] sm:$0xff]
      %v320 = vld [vmem:[%s235 + $0x134] sm:$0xf]
      %v321 = vld [vmem:[%s235 + $0x138] sm:$0xff]
      %v322 = vld [vmem:[%s235 + $0x140] sm:$0xff]
      %v323 = vld [vmem:[%s235 + $0x148] sm:$0xff]
      %v324 = vld [vmem:[%s235 + $0x150] sm:$0xff]
      %v325 = vld [vmem:[%s235 + $0x158] sm:$0xff]
      %v326 = vld [vmem:[%s235 + $0x160] sm:$0xff]
      %v327 = vld [vmem:[%s235 + $0x168] sm:$0xf]
      %v328 = vld [vmem:[%s235 + $0x16c] sm:$0xff]
      %v329 = vld [vmem:[%s235 + $0x174] sm:$0xff]
      %v330 = vld [vmem:[%s235 + $0x17c] sm:$0xff]
      %v331 = vld [vmem:[%s235 + $0x184] sm:$0xff]
      %v332 = vld [vmem:[%s235 + $0x18c] sm:$0xff]
      %v333 = vld [vmem:[%s235 + $0x194] sm:$0xff]
      %v334 = vld [vmem:[%s235 + $0x19c] sm:$0xf]
      %v335 = vld [vmem:[%s235 + $0x1a0] sm:$0xff]
      %v336 = vld [vmem:[%s235 + $0x1a8] sm:$0xff]
      %v337 = vld [vmem:[%s235 + $0x1b0] sm:$0xff]
      %v338 = vld [vmem:[%s235 + $0x1b8] sm:$0xff]
      %v339 = vld [vmem:[%s235 + $0x1c0] sm:$0xff]
      %v340 = vld [vmem:[%s235 + $0x1c8] sm:$0xff]
      %v341 = vld [vmem:[%s235 + $0x1d0] sm:$0xf]
      %v342 = vld [vmem:[%s235 + $0x1d4] sm:$0xff]
      %v343 = vld [vmem:[%s235 + $0x1dc] sm:$0xff]
      %v344 = vld [vmem:[%s235 + $0x1e4] sm:$0xff]
      %v345 = vld [vmem:[%s235 + $0x1ec] sm:$0xff]
      %v346 = vld [vmem:[%s235 + $0x1f4] sm:$0xff]
      %v347 = vld [vmem:[%s235 + $0x1fc] sm:$0xff]
      %v348 = vld [vmem:[%s235 + $0x204] sm:$0xf]
      %v349 = vld [vmem:[%s235 + $0x208] sm:$0xff]
      %v350 = vld [vmem:[%s235 + $0x210] sm:$0xff]
      %v351 = vld [vmem:[%s235 + $0x218] sm:$0xff]
      %v352 = vld [vmem:[%s235 + $0x220] sm:$0xff]
      %v353 = vld [vmem:[%s235 + $0x228] sm:$0xff]
      %v354 = vld [vmem:[%s235 + $0x230] sm:$0xff]
      %v355 = vld [vmem:[%s235 + $0x238] sm:$0xf]
      %v356 = vld [vmem:[%s235 + $0x23c] sm:$0xff]
      %v357 = vld [vmem:[%s235 + $0x244] sm:$0xff]
      %v358 = vld [vmem:[%s235 + $0x24c] sm:$0xff]
      %v359 = vld [vmem:[%s235 + $0x254] sm:$0xff]
      %v360 = vld [vmem:[%s235 + $0x25c] sm:$0xff]
      %v361 = vld [vmem:[%s235 + $0x264] sm:$0xff]
      %v362 = vld [vmem:[%s235 + $0x26c] sm:$0xf]
      %v363 = vld [vmem:[%s235 + $0x270] sm:$0xff]
      %v364 = vld [vmem:[%s235 + $0x278] sm:$0xff]
      %v365 = vld [vmem:[%s235 + $0x280] sm:$0xff]
      %v366 = vld [vmem:[%s235 + $0x288] sm:$0xff]
      %v367 = vld [vmem:[%s235 + $0x290] sm:$0xff]
      %v368 = vld [vmem:[%s235 + $0x298] sm:$0xff]
      %v369 = vld [vmem:[%s235 + $0x2a0] sm:$0xf]
      %v370 = vld [vmem:[%s235 + $0x2a4] sm:$0xff]
      %v371 = vld [vmem:[%s235 + $0x2ac] sm:$0xff]
      %v372 = vld [vmem:[%s235 + $0x2b4] sm:$0xff]
      %v373 = vld [vmem:[%s235 + $0x2bc] sm:$0xff]
      %v374 = vld [vmem:[%s235 + $0x2c4] sm:$0xff]
      %v375 = vld [vmem:[%s235 + $0x2cc] sm:$0xff]
      %v376 = vld [vmem:[%s235 + $0x2d4] sm:$0xf]
      %v377 = vld [vmem:[%s235 + $0x2d8] sm:$0xff]
      %v378 = vld [vmem:[%s235 + $0x2e0] sm:$0xff]
      %v379 = vld [vmem:[%s235 + $0x2e8] sm:$0xff]
      %v380 = vld [vmem:[%s235 + $0x2f0] sm:$0xff]
      %v381 = vld [vmem:[%s235 + $0x2f8] sm:$0xff]
      %v382 = vld [vmem:[%s235 + $0x300] sm:$0xff]
      %v383 = vld [vmem:[%s235 + $0x308] sm:$0xf]
      %v384 = vld [vmem:[%s235 + $0x30c] sm:$0xff]
      %v385 = vld [vmem:[%s235 + $0x314] sm:$0xff]
      %v386 = vld [vmem:[%s235 + $0x31c] sm:$0xff]
      %v387 = vld [vmem:[%s235 + $0x324] sm:$0xff]
      %v388 = vld [vmem:[%s235 + $0x32c] sm:$0xff]
      %v389 = vld [vmem:[%s235 + $0x334] sm:$0xff]
      %v390 = vld [vmem:[%s235 + $0x33c] sm:$0xf]
      %v391 = vld [vmem:[%s235 + $0x340] sm:$0xff]
      %v392 = vld [vmem:[%s235 + $0x348] sm:$0xff]
      %v393 = vld [vmem:[%s235 + $0x350] sm:$0xff]
      %v394 = vld [vmem:[%s235 + $0x358] sm:$0xff]
      %v395 = vld [vmem:[%s235 + $0x360] sm:$0xff]
      %v396 = vld [vmem:[%s235 + $0x368] sm:$0xff]
      %v397 = vld [vmem:[%s235 + $0x370] sm:$0xf]
      %v398 = vld [vmem:[%s235 + $0x374] sm:$0xff]
      %v399 = vld [vmem:[%s235 + $0x37c] sm:$0xff]
      %v400 = vld [vmem:[%s235 + $0x384] sm:$0xff]
      %v401 = vld [vmem:[%s235 + $0x38c] sm:$0xff]
      %v402 = vld [vmem:[%s235 + $0x394] sm:$0xff]
      %v403 = vld [vmem:[%s235 + $0x39c] sm:$0xff]
      %v404 = vld [vmem:[%s235 + $0x3a4] sm:$0xf]
      %v405 = vld [vmem:[%s235 + $0x3a8] sm:$0xff]
      %v406 = vld [vmem:[%s235 + $0x3b0] sm:$0xff]
      %v407 = vld [vmem:[%s235 + $0x3b8] sm:$0xff]
      %v408 = vld [vmem:[%s235 + $0x3c0] sm:$0xff]
      %v409 = vld [vmem:[%s235 + $0x3c8] sm:$0xff]
      %v410 = vld [vmem:[%s235 + $0x3d0] sm:$0xff]
      %v411 = vld [vmem:[%s235 + $0x3d8] sm:$0xf]
      %v412 = vld [vmem:[%s235 + $0x3dc] sm:$0xff]
      %v413 = vld [vmem:[%s235 + $0x3e4] sm:$0xff]
      %v414 = vld [vmem:[%s235 + $0x3ec] sm:$0xff]
      %v415 = vld [vmem:[%s235 + $0x3f4] sm:$0xff]
      %v416 = vld [vmem:[%s235 + $0x3fc] sm:$0xff]
      %v417 = vld [vmem:[%s235 + $0x404] sm:$0xff]
      %v418 = vld [vmem:[%s235 + $0x40c] sm:$0xf]
      %v419 = vld [vmem:[%s235 + $0x410] sm:$0xff]
      %v420 = vld [vmem:[%s235 + $0x418] sm:$0xff]
      %v421 = vld [vmem:[%s235 + $0x420] sm:$0xff]
      %v422 = vld [vmem:[%s235 + $0x428] sm:$0xff]
      %v423 = vld [vmem:[%s235 + $0x430] sm:$0xff]
      %v424 = vld [vmem:[%s235 + $0x438] sm:$0xff]
      %v425 = vld [vmem:[%s235 + $0x440] sm:$0xf]
      %v426 = vld [vmem:[%s235 + $0x444] sm:$0xff]
      %v427 = vld [vmem:[%s235 + $0x44c] sm:$0xff]
      %v428 = vld [vmem:[%s235 + $0x454] sm:$0xff]
      %v429 = vld [vmem:[%s235 + $0x45c] sm:$0xff]
      %v430 = vld [vmem:[%s235 + $0x464] sm:$0xff]
      %v431 = vld [vmem:[%s235 + $0x46c] sm:$0xff]
      %v432 = vld [vmem:[%s235 + $0x474] sm:$0xf]
      %v433 = vld [vmem:[%s235 + $0x478] sm:$0xff]
      %v434 = vld [vmem:[%s235 + $0x480] sm:$0xff]
      %v435 = vld [vmem:[%s235 + $0x488] sm:$0xff]
      %v436 = vld [vmem:[%s235 + $0x490] sm:$0xff]
      %v437 = vld [vmem:[%s235 + $0x498] sm:$0xff]
      %v438 = vld [vmem:[%s235 + $0x4a0] sm:$0xff]
      %v439 = vld [vmem:[%s235 + $0x4a8] sm:$0xf]
      %v440 = vld [vmem:[%s235 + $0x4ac] sm:$0xff]
      %v441 = vld [vmem:[%s235 + $0x4b4] sm:$0xff]
      %v442 = vld [vmem:[%s235 + $0x4bc] sm:$0xff]
      %v443 = vld [vmem:[%s235 + $0x4c4] sm:$0xff]
      %v444 = vld [vmem:[%s235 + $0x4cc] sm:$0xff]
      %v445 = vld [vmem:[%s235 + $0x4d4] sm:$0xff]
      %v446 = vld [vmem:[%s235 + $0x4dc] sm:$0xf]
      %v447 = vld [vmem:[%s235 + $0x4e0] sm:$0xff]
      %v448 = vld [vmem:[%s235 + $0x4e8] sm:$0xff]
      %v449 = vld [vmem:[%s235 + $0x4f0] sm:$0xff]
      %v450 = vld [vmem:[%s235 + $0x4f8] sm:$0xff]
      %v451 = vld [vmem:[%s235 + $0x500] sm:$0xff]
      %v452 = vld [vmem:[%s235 + $0x508] sm:$0xff]
      %v453 = vld [vmem:[%s235 + $0x510] sm:$0xf]
      %v454 = vld [vmem:[%s235 + $0x514] sm:$0xff]
      %v455 = vld [vmem:[%s235 + $0x51c] sm:$0xff]
      %v456 = vld [vmem:[%s235 + $0x524] sm:$0xff]
      %v457 = vld [vmem:[%s235 + $0x52c] sm:$0xff]
      %v458 = vld [vmem:[%s235 + $0x534] sm:$0xff]
      %v459 = vld [vmem:[%s235 + $0x53c] sm:$0xff]
      %v460 = vld [vmem:[%s235 + $0x544] sm:$0xf]
      %v461 = vld [vmem:[%s235 + $0x548] sm:$0xff]
      %v462 = vld [vmem:[%s235 + $0x550] sm:$0xff]
      %v463 = vld [vmem:[%s235 + $0x558] sm:$0xff]
      %v464 = vld [vmem:[%s235 + $0x560] sm:$0xff]
      %v465 = vld [vmem:[%s235 + $0x568] sm:$0xff]
      %v466 = vld [vmem:[%s235 + $0x570] sm:$0xff]
      %v467 = vld [vmem:[%s235 + $0x578] sm:$0xf]
      %v468 = vld [vmem:[%s235 + $0x57c] sm:$0xff]
      %v469 = vld [vmem:[%s235 + $0x584] sm:$0xff]
      %v470 = vld [vmem:[%s235 + $0x58c] sm:$0xff]
      %v471 = vld [vmem:[%s235 + $0x594] sm:$0xff]
      %v472 = vld [vmem:[%s235 + $0x59c] sm:$0xff]
      %v473 = vld [vmem:[%s235 + $0x5a4] sm:$0xff]
      %v474 = vld [vmem:[%s235 + $0x5ac] sm:$0xf]
      %v475 = vld [vmem:[%s235 + $0x5b0] sm:$0xff]
      %v476 = vld [vmem:[%s235 + $0x5b8] sm:$0xff]
      %v477 = vld [vmem:[%s235 + $0x5c0] sm:$0xff]
      %v478 = vld [vmem:[%s235 + $0x5c8] sm:$0xff]
      %v479 = vld [vmem:[%s235 + $0x5d0] sm:$0xff]
      %v480 = vld [vmem:[%s235 + $0x5d8] sm:$0xff]
      %v481 = vld [vmem:[%s235 + $0x5e0] sm:$0xf]
      %v482 = vld [vmem:[%s235 + $0x5e4] sm:$0xff]
      %v483 = vld [vmem:[%s235 + $0x5ec] sm:$0xff]
      %v484 = vld [vmem:[%s235 + $0x5f4] sm:$0xff]
      %v485 = vld [vmem:[%s235 + $0x5fc] sm:$0xff]
      %v486 = vld [vmem:[%s235 + $0x604] sm:$0xff]
      %v487 = vld [vmem:[%s235 + $0x60c] sm:$0xff]
      %v488 = vld [vmem:[%s235 + $0x614] sm:$0xf]
      %v489 = vld [vmem:[%s235 + $0x618] sm:$0xff]
      %v490 = vld [vmem:[%s235 + $0x620] sm:$0xff]
      %v491 = vld [vmem:[%s235 + $0x628] sm:$0xff]
      %v492 = vld [vmem:[%s235 + $0x630] sm:$0xff]
      %v493 = vld [vmem:[%s235 + $0x638] sm:$0xff]
      %v494 = vld [vmem:[%s235 + $0x640] sm:$0xff]
      %v495 = vld [vmem:[%s235 + $0x648] sm:$0xf]
      %v496 = vld [vmem:[%s235 + $0x64c] sm:$0xff]
      %v497 = vld [vmem:[%s235 + $0x654] sm:$0xff]
      %v498 = vld [vmem:[%s235 + $0x65c] sm:$0xff]
      %v499 = vld [vmem:[%s235 + $0x664] sm:$0xff]
      %v500 = vld [vmem:[%s235 + $0x66c] sm:$0xff]
      %v501 = vld [vmem:[%s235 + $0x674] sm:$0xff]
      %v502 = vld [vmem:[%s235 + $0x67c] sm:$0xf]
      %v503 = vld [vmem:[%s235 + $0x680] sm:$0xff]
      %v504 = vld [vmem:[%s235 + $0x688] sm:$0xff]
      %v505 = vld [vmem:[%s235 + $0x690] sm:$0xff]
      %v506 = vld [vmem:[%s235 + $0x698] sm:$0xff]
      %v507 = vld [vmem:[%s235 + $0x6a0] sm:$0xff]
      %v508 = vld [vmem:[%s235 + $0x6a8] sm:$0xff]
      %v509 = vld [vmem:[%s235 + $0x6b0] sm:$0xf]
      %v510 = vld [vmem:[%s235 + $0x6b4] sm:$0xff]
      %v511 = vld [vmem:[%s235 + $0x6bc] sm:$0xff]
      %v512 = vld [vmem:[%s235 + $0x6c4] sm:$0xff]
      %v513 = vld [vmem:[%s235 + $0x6cc] sm:$0xff]
      %v514 = vld [vmem:[%s235 + $0x6d4] sm:$0xff]
      %v515 = vld [vmem:[%s235 + $0x6dc] sm:$0xff]
      %v516 = vld [vmem:[%s235 + $0x6e4] sm:$0xf]
      %v517 = vld [vmem:[%s235 + $0x6e8] sm:$0xff]
      %v518 = vld [vmem:[%s235 + $0x6f0] sm:$0xff]
      %v519 = vld [vmem:[%s235 + $0x6f8] sm:$0xff]
      %v520 = vld [vmem:[%s235 + $0x700] sm:$0xff]
      %v521 = vld [vmem:[%s235 + $0x708] sm:$0xff]
      %v522 = vld [vmem:[%s235 + $0x710] sm:$0xff]
      %v523 = vld [vmem:[%s235 + $0x718] sm:$0xf]
      %v524 = vld [vmem:[%s235 + $0x71c] sm:$0xff]
      %v525 = vld [vmem:[%s235 + $0x724] sm:$0xff]
      %v526 = vld [vmem:[%s235 + $0x72c] sm:$0xff]
      %v527 = vld [vmem:[%s235 + $0x734] sm:$0xff]
      %v528 = vld [vmem:[%s235 + $0x73c] sm:$0xff]
      %v529 = vld [vmem:[%s235 + $0x744] sm:$0xff]
      %v530 = vld [vmem:[%s235 + $0x74c] sm:$0xf]
      %v531 = vld [vmem:[%s235 + $0x750] sm:$0xff]
      %v532 = vld [vmem:[%s235 + $0x758] sm:$0xff]
      %v533 = vld [vmem:[%s235 + $0x760] sm:$0xff]
      %v534 = vld [vmem:[%s235 + $0x768] sm:$0xff]
      %v535 = vld [vmem:[%s235 + $0x770] sm:$0xff]
      %v536 = vld [vmem:[%s235 + $0x778] sm:$0xff]
      %v537 = vld [vmem:[%s235 + $0x780] sm:$0xf]
      %v538 = vld [vmem:[%s235 + $0x784] sm:$0xff]
      %v539 = vld [vmem:[%s235 + $0x78c] sm:$0xff]
      %v540 = vld [vmem:[%s235 + $0x794] sm:$0xff]
      %v541 = vld [vmem:[%s235 + $0x79c] sm:$0xff]
      %v542 = vld [vmem:[%s235 + $0x7a4] sm:$0xff]
      %v543 = vld [vmem:[%s235 + $0x7ac] sm:$0xff]
      %v544 = vld [vmem:[%s235 + $0x7b4] sm:$0xf]
      %v545 = vld [vmem:[%s235 + $0x7b8] sm:$0xff]
      %v546 = vld [vmem:[%s235 + $0x7c0] sm:$0xff]
      %v547 = vld [vmem:[%s235 + $0x7c8] sm:$0xff]
      %v548 = vld [vmem:[%s235 + $0x7d0] sm:$0xff]
      %v549 = vld [vmem:[%s235 + $0x7d8] sm:$0xff]
      %v550 = vld [vmem:[%s235 + $0x7e0] sm:$0xff]
      %v551 = vld [vmem:[%s235 + $0x7e8] sm:$0xf]
      %v552 = vld [vmem:[%s235 + $0x7ec] sm:$0xff]
      %v553 = vld [vmem:[%s235 + $0x7f4] sm:$0xff]
      %v554 = vld [vmem:[%s235 + $0x7fc] sm:$0xff]
      %v555 = vld [vmem:[%s235 + $0x804] sm:$0xff]
      %v556 = vld [vmem:[%s235 + $0x80c] sm:$0xff]
      %v557 = vld [vmem:[%s235 + $0x814] sm:$0xff]
      %v558 = vld [vmem:[%s235 + $0x81c] sm:$0xf]
      %v559 = vld [vmem:[%s235 + $0x820] sm:$0xff]
      %v560 = vld [vmem:[%s235 + $0x828] sm:$0xff]
      %v561 = vld [vmem:[%s235 + $0x830] sm:$0xff]
      %v562 = vld [vmem:[%s235 + $0x838] sm:$0xff]
      %v563 = vld [vmem:[%s235 + $0x840] sm:$0xff]
      %v564 = vld [vmem:[%s235 + $0x848] sm:$0xff]
      %v565 = vld [vmem:[%s235 + $0x850] sm:$0xf]
      %v566 = vld [vmem:[%s235 + $0x854] sm:$0xff]
      %v567 = vld [vmem:[%s235 + $0x85c] sm:$0xff]
      %v568 = vld [vmem:[%s235 + $0x864] sm:$0xff]
      %v569 = vld [vmem:[%s235 + $0x86c] sm:$0xff]
      %v570 = vld [vmem:[%s235 + $0x874] sm:$0xff]
      %v571 = vld [vmem:[%s235 + $0x87c] sm:$0xff]
      %v572 = vld [vmem:[%s235 + $0x884] sm:$0xf]
      %v573 = vld [vmem:[%s235 + $0x888] sm:$0xff]
      %v574 = vld [vmem:[%s235 + $0x890] sm:$0xff]
      %v575 = vld [vmem:[%s235 + $0x898] sm:$0xff]
      %v576 = vld [vmem:[%s235 + $0x8a0] sm:$0xff]
      %v577 = vld [vmem:[%s235 + $0x8a8] sm:$0xff]
      %v578 = vld [vmem:[%s235 + $0x8b0] sm:$0xff]
      %v579 = vld [vmem:[%s235 + $0x8b8] sm:$0xf]
      %v580 = vld [vmem:[%s235 + $0x8bc] sm:$0xff]
      %v581 = vld [vmem:[%s235 + $0x8c4] sm:$0xff]
      %v582 = vld [vmem:[%s235 + $0x8cc] sm:$0xff]
      %v583 = vld [vmem:[%s235 + $0x8d4] sm:$0xff]
      %v584 = vld [vmem:[%s235 + $0x8dc] sm:$0xff]
      %v585 = vld [vmem:[%s235 + $0x8e4] sm:$0xff]
      %v586 = vld [vmem:[%s235 + $0x8ec] sm:$0xf]
      %v587 = vld [vmem:[%s235 + $0x8f0] sm:$0xff]
      %v588 = vld [vmem:[%s235 + $0x8f8] sm:$0xff]
      %v589 = vld [vmem:[%s235 + $0x900] sm:$0xff]
      %v590 = vld [vmem:[%s235 + $0x908] sm:$0xff]
      %v591 = vld [vmem:[%s235 + $0x910] sm:$0xff]
      %v592 = vld [vmem:[%s235 + $0x918] sm:$0xff]
      %v593 = vld [vmem:[%s235 + $0x920] sm:$0xf]
      %v594 = vld [vmem:[%s235 + $0x924] sm:$0xff]
      %v595 = vld [vmem:[%s235 + $0x92c] sm:$0xff]
      %v596 = vld [vmem:[%s235 + $0x934] sm:$0xff]
      %v597 = vld [vmem:[%s235 + $0x93c] sm:$0xff]
      %v598 = vld [vmem:[%s235 + $0x944] sm:$0xff]
      %v599 = vld [vmem:[%s235 + $0x94c] sm:$0xff]
      %v600 = vld [vmem:[%s235 + $0x954] sm:$0xf]
      %v601 = vld [vmem:[%s235 + $0x958] sm:$0xff]
      %v602 = vld [vmem:[%s235 + $0x960] sm:$0xff]
      %v603 = vld [vmem:[%s235 + $0x968] sm:$0xff]
      %v604 = vld [vmem:[%s235 + $0x970] sm:$0xff]
      %v605 = vld [vmem:[%s235 + $0x978] sm:$0xff]
      %v606 = vld [vmem:[%s235 + $0x980] sm:$0xff]
      %v607 = vld [vmem:[%s235 + $0x988] sm:$0xf]
      %v608 = vld [vmem:[%s235 + $0x98c] sm:$0xff]
      %v609 = vld [vmem:[%s235 + $0x994] sm:$0xff]
      %v610 = vld [vmem:[%s235 + $0x99c] sm:$0xff]
      %v611 = vld [vmem:[%s235 + $0x9a4] sm:$0xff]
      %v612 = vld [vmem:[%s235 + $0x9ac] sm:$0xff]
      %v613 = vld [vmem:[%s235 + $0x9b4] sm:$0xff]
      %v614 = vld [vmem:[%s235 + $0x9bc] sm:$0xf]
      %v615 = vld [vmem:[%s235 + $0x9c0] sm:$0xff]
      %v616 = vld [vmem:[%s235 + $0x9c8] sm:$0xff]
      %v617 = vld [vmem:[%s235 + $0x9d0] sm:$0xff]
      %v618 = vld [vmem:[%s235 + $0x9d8] sm:$0xff]
      %v619 = vld [vmem:[%s235 + $0x9e0] sm:$0xff]
      %v620 = vld [vmem:[%s235 + $0x9e8] sm:$0xff]
      %v621 = vld [vmem:[%s235 + $0x9f0] sm:$0xf]
      %v622 = vld [vmem:[%s235 + $0x9f4] sm:$0xff]
      %v623 = vld [vmem:[%s235 + $0x9fc] sm:$0xff]
      %v624 = vld [vmem:[%s235 + $0xa04] sm:$0xff]
      %v625 = vld [vmem:[%s235 + $0xa0c] sm:$0xff]
      %v626 = vld [vmem:[%s235 + $0xa14] sm:$0xff]
      %v627 = vld [vmem:[%s235 + $0xa1c] sm:$0xff]
      %v628 = vld [vmem:[%s235 + $0xa24] sm:$0xf]
      %v629 = vld [vmem:[%s235 + $0xa28] sm:$0xff]
      %v630 = vld [vmem:[%s235 + $0xa30] sm:$0xff]
      %v631 = vld [vmem:[%s235 + $0xa38] sm:$0xff]
      %v632 = vld [vmem:[%s235 + $0xa40] sm:$0xff]
      %v633 = vld [vmem:[%s235 + $0xa48] sm:$0xff]
      %v634 = vld [vmem:[%s235 + $0xa50] sm:$0xff]
      %v635 = vld [vmem:[%s235 + $0xa58] sm:$0xf]
      %v636 = vld [vmem:[%s235 + $0xa5c] sm:$0xff]
      %v637 = vld [vmem:[%s235 + $0xa64] sm:$0xff]
      %v638 = vld [vmem:[%s235 + $0xa6c] sm:$0xff]
      %v639 = vld [vmem:[%s235 + $0xa74] sm:$0xff]
      %v640 = vld [vmem:[%s235 + $0xa7c] sm:$0xff]
      %v641 = vld [vmem:[%s235 + $0xa84] sm:$0xff]
      %v642 = vld [vmem:[%s235 + $0xa8c] sm:$0xf]
      %v643 = vld [vmem:[%s235 + $0xa90] sm:$0xff]
      %v644 = vld [vmem:[%s235 + $0xa98] sm:$0xff]
      %v645 = vld [vmem:[%s235 + $0xaa0] sm:$0xff]
      %v646 = vld [vmem:[%s235 + $0xaa8] sm:$0xff]
      %v647 = vld [vmem:[%s235 + $0xab0] sm:$0xff]
      %v648 = vld [vmem:[%s235 + $0xab8] sm:$0xff]
      %v649 = vld [vmem:[%s235 + $0xac0] sm:$0xf]
      %v650 = vld [vmem:[%s235 + $0xac4] sm:$0xff]
      %v651 = vld [vmem:[%s235 + $0xacc] sm:$0xff]
      %v652 = vld [vmem:[%s235 + $0xad4] sm:$0xff]
      %v653 = vld [vmem:[%s235 + $0xadc] sm:$0xff]
      %v654 = vld [vmem:[%s235 + $0xae4] sm:$0xff]
      %v655 = vld [vmem:[%s235 + $0xaec] sm:$0xff]
      %v656 = vld [vmem:[%s235 + $0xaf4] sm:$0xf]
      %v657 = vld [vmem:[%s235 + $0xaf8] sm:$0xff]
      %v658 = vld [vmem:[%s235 + $0xb00] sm:$0xff]
      %v659 = vld [vmem:[%s235 + $0xb08] sm:$0xff]
      %v660 = vld [vmem:[%s235 + $0xb10] sm:$0xff]
      %v661 = vld [vmem:[%s235 + $0xb18] sm:$0xff]
      %v662 = vld [vmem:[%s235 + $0xb20] sm:$0xff]
      %v663 = vld [vmem:[%s235 + $0xb28] sm:$0xf]
      %v664 = vld [vmem:[%s235 + $0xb2c] sm:$0xff]
      %v665 = vld [vmem:[%s235 + $0xb34] sm:$0xff]
      %v666 = vld [vmem:[%s235 + $0xb3c] sm:$0xff]
      %v667 = vld [vmem:[%s235 + $0xb44] sm:$0xff]
      %v668 = vld [vmem:[%s235 + $0xb4c] sm:$0xff]
      %v669 = vld [vmem:[%s235 + $0xb54] sm:$0xff]
      %v670 = vld [vmem:[%s235 + $0xb5c] sm:$0xf]
      %v671 = vld [vmem:[%s235 + $0xb60] sm:$0xff]
      %v672 = vld [vmem:[%s235 + $0xb68] sm:$0xff]
      %v673 = vld [vmem:[%s235 + $0xb70] sm:$0xff]
      %v674 = vld [vmem:[%s235 + $0xb78] sm:$0xff]
      %v675 = vld [vmem:[%s235 + $0xb80] sm:$0xff]
      %v676 = vld [vmem:[%s235 + $0xb88] sm:$0xff]
      %v677 = vld [vmem:[%s235 + $0xb90] sm:$0xf]
      %v678 = vld [vmem:[%s235 + $0xb94] sm:$0xff]
      %v679 = vld [vmem:[%s235 + $0xb9c] sm:$0xff]
      %v680 = vld [vmem:[%s235 + $0xba4] sm:$0xff]
      %v681 = vld [vmem:[%s235 + $0xbac] sm:$0xff]
      %v682 = vld [vmem:[%s235 + $0xbb4] sm:$0xff]
      %v683 = vld [vmem:[%s235 + $0xbbc] sm:$0xff]
      %v684 = vld [vmem:[%s235 + $0xbc4] sm:$0xf]
      %v685 = vld [vmem:[%s235 + $0xbc8] sm:$0xff]
      %v686 = vld [vmem:[%s235 + $0xbd0] sm:$0xff]
      %v687 = vld [vmem:[%s235 + $0xbd8] sm:$0xff]
      %v688 = vld [vmem:[%s235 + $0xbe0] sm:$0xff]
      %v689 = vld [vmem:[%s235 + $0xbe8] sm:$0xff]
      %v690 = vld [vmem:[%s235 + $0xbf0] sm:$0xff]
      %v691 = vld [vmem:[%s235 + $0xbf8] sm:$0xf]
      %v692 = vld [vmem:[%s235 + $0xbfc] sm:$0xff]
      %v693 = vld [vmem:[%s235 + $0xc04] sm:$0xff]
      %v694 = vld [vmem:[%s235 + $0xc0c] sm:$0xff]
      %v695 = vld [vmem:[%s235 + $0xc14] sm:$0xff]
      %v696 = vld [vmem:[%s235 + $0xc1c] sm:$0xff]
      %v697 = vld [vmem:[%s235 + $0xc24] sm:$0xff]
      %v698 = vld [vmem:[%s235 + $0xc2c] sm:$0xf]
      %v699 = vld [vmem:[%s235 + $0xc30] sm:$0xff]
      %v700 = vld [vmem:[%s235 + $0xc38] sm:$0xff]
      %v701 = vld [vmem:[%s235 + $0xc40] sm:$0xff]
      %v702 = vld [vmem:[%s235 + $0xc48] sm:$0xff]
      %v703 = vld [vmem:[%s235 + $0xc50] sm:$0xff]
      %v704 = vld [vmem:[%s235 + $0xc58] sm:$0xff]
      %v705 = vld [vmem:[%s235 + $0xc60] sm:$0xf]
      %v706 = vld [vmem:[%s235 + $0xc64] sm:$0xff]
      %v707 = vld [vmem:[%s235 + $0xc6c] sm:$0xff]
      %v708 = vld [vmem:[%s235 + $0xc74] sm:$0xff]
      %v709 = vld [vmem:[%s235 + $0xc7c] sm:$0xff]
      %v710 = vld [vmem:[%s235 + $0xc84] sm:$0xff]
      %v711 = vld [vmem:[%s235 + $0xc8c] sm:$0xff]
      %v712 = vld [vmem:[%s235 + $0xc94] sm:$0xf]
      %v713 = vld [vmem:[%s235 + $0xc98] sm:$0xff]
      %v714 = vld [vmem:[%s235 + $0xca0] sm:$0xff]
      %v715 = vld [vmem:[%s235 + $0xca8] sm:$0xff]
      %v716 = vld [vmem:[%s235 + $0xcb0] sm:$0xff]
      %v717 = vld [vmem:[%s235 + $0xcb8] sm:$0xff]
      %v718 = vld [vmem:[%s235 + $0xcc0] sm:$0xff]
      %v719 = vld [vmem:[%s235 + $0xcc8] sm:$0xf]
      %v720 = vld [vmem:[%s235 + $0xccc] sm:$0xff]
      %v721 = vld [vmem:[%s235 + $0xcd4] sm:$0xff]
      %v722 = vld [vmem:[%s235 + $0xcdc] sm:$0xff]
      %v723 = vld [vmem:[%s235 + $0xce4] sm:$0xff]
      %v724 = vld [vmem:[%s235 + $0xcec] sm:$0xff]
      %v725 = vld [vmem:[%s235 + $0xcf4] sm:$0xff]
      %v726 = vld [vmem:[%s235 + $0xcfc] sm:$0xf]
      %v747 = vunpack.c.l.b16 %v259
      %v748 = vunpack.c.h.b16 %v259
      %v749 = vunpack.c.l.b16 %v260
      %v750 = vunpack.c.h.b16 %v260
      %v751 = vunpack.c.l.b16 %v261
      %v752 = vunpack.c.h.b16 %v261
      %v753 = vunpack.c.l.b16 %v262
      %v754 = vunpack.c.h.b16 %v262
      %v755 = vunpack.c.l.b16 %v263
      %v756 = vunpack.c.h.b16 %v263
      %v757 = vunpack.c.l.b16 %v264
      %v758 = vunpack.c.h.b16 %v264
      %v759 = vunpack.c.l.b16 %v265
      %v760 = vunpack.c.h.b16 %v265
      %v761 = vunpack.c.l.b16 %v266
      %v762 = vunpack.c.h.b16 %v266
      %v763 = vunpack.c.l.b16 %v267
      %v764 = vunpack.c.h.b16 %v267
      %v765 = vunpack.c.l.b16 %v268
      %v766 = vunpack.c.h.b16 %v268
      %v767 = vunpack.c.l.b16 %v269
      %v768 = vunpack.c.h.b16 %v269
      %v769 = vunpack.c.l.b16 %v270
      %v770 = vunpack.c.h.b16 %v270
      %v771 = vunpack.c.l.b16 %v271
      %v772 = vunpack.c.h.b16 %v271
      %v773 = vunpack.c.l.b16 %v272
      %v774 = vunpack.c.h.b16 %v272
      %v775 = vunpack.c.l.b16 %v273
      %v776 = vunpack.c.h.b16 %v273
      %v777 = vunpack.c.l.b16 %v274
      %v778 = vunpack.c.h.b16 %v274
      %v779 = vunpack.c.l.b16 %v275
      %v780 = vunpack.c.h.b16 %v275
      %v781 = vunpack.c.l.b16 %v276
      %v782 = vunpack.c.h.b16 %v276
      %v783 = vunpack.c.l.b16 %v277
      %v784 = vunpack.c.h.b16 %v277
      %v785 = vunpack.c.l.b16 %v278
      %v786 = vunpack.c.h.b16 %v278
      %v787 = vpack.c.b16 %v751, %v747
      %v788 = vpack.c.b16 %v752, %v748
      %v789 = vpack.c.b16 %v753, %v749
      %v790 = vpack.c.b16 %v754, %v750
      %v791 = vpack.c.b16 %v759, %v755
      %v792 = vpack.c.b16 %v760, %v756
      %v793 = vpack.c.b16 %v761, %v757
      %v794 = vpack.c.b16 %v762, %v758
      %v795 = vpack.c.b16 %v767, %v763
      %v796 = vpack.c.b16 %v768, %v764
      %v797 = vpack.c.b16 %v769, %v765
      %v798 = vpack.c.b16 %v770, %v766
      %v799 = vpack.c.b16 %v775, %v771
      %v800 = vpack.c.b16 %v776, %v772
      %v801 = vpack.c.b16 %v777, %v773
      %v802 = vpack.c.b16 %v778, %v774
      %v803 = vpack.c.b16 %v783, %v779
      %v804 = vpack.c.b16 %v784, %v780
      %v805 = vpack.c.b16 %v785, %v781
      %v806 = vpack.c.b16 %v786, %v782
      %v1275 = vunpack.c.l.b16 %v279
      %v1276 = vunpack.c.h.b16 %v279
      %v1277 = vunpack.c.l.b16 %v280
      %v1278 = vunpack.c.h.b16 %v280
      %v1279 = vunpack.c.l.b16 %v281
      %v1280 = vunpack.c.h.b16 %v281
      %v1281 = vunpack.c.l.b16 %v282
      %v1282 = vunpack.c.h.b16 %v282
      %v1283 = vunpack.c.l.b16 %v283
      %v1284 = vunpack.c.h.b16 %v283
      %v1285 = vunpack.c.l.b16 %v284
      %v1286 = vunpack.c.h.b16 %v284
      %v1287 = vunpack.c.l.b16 %v285
      %v1288 = vunpack.c.l.b16 %v286
      %v1289 = vunpack.c.h.b16 %v286
      %v1290 = vunpack.c.l.b16 %v287
      %v1291 = vunpack.c.h.b16 %v287
      %v1292 = vunpack.c.l.b16 %v288
      %v1293 = vunpack.c.h.b16 %v288
      %v1294 = vunpack.c.l.b16 %v289
      %v1295 = vunpack.c.h.b16 %v289
      %v1296 = vunpack.c.l.b16 %v290
      %v1297 = vunpack.c.h.b16 %v290
      %v1298 = vunpack.c.l.b16 %v291
      %v1299 = vunpack.c.h.b16 %v291
      %v1300 = vunpack.c.l.b16 %v292
      %v1301 = vunpack.c.l.b16 %v293
      %v1302 = vunpack.c.h.b16 %v293
      %v1303 = vunpack.c.l.b16 %v294
      %v1304 = vunpack.c.h.b16 %v294
      %v1305 = vunpack.c.l.b16 %v295
      %v1306 = vunpack.c.h.b16 %v295
      %v1307 = vunpack.c.l.b16 %v296
      %v1308 = vunpack.c.h.b16 %v296
      %v1309 = vunpack.c.l.b16 %v297
      %v1310 = vunpack.c.h.b16 %v297
      %v1311 = vunpack.c.l.b16 %v298
      %v1312 = vunpack.c.h.b16 %v298
      %v1313 = vunpack.c.l.b16 %v299
      %v1314 = vunpack.c.l.b16 %v300
      %v1315 = vunpack.c.h.b16 %v300
      %v1316 = vunpack.c.l.b16 %v301
      %v1317 = vunpack.c.h.b16 %v301
      %v1318 = vunpack.c.l.b16 %v302
      %v1319 = vunpack.c.h.b16 %v302
      %v1320 = vunpack.c.l.b16 %v303
      %v1321 = vunpack.c.h.b16 %v303
      %v1322 = vunpack.c.l.b16 %v304
      %v1323 = vunpack.c.h.b16 %v304
      %v1324 = vunpack.c.l.b16 %v305
      %v1325 = vunpack.c.h.b16 %v305
      %v1326 = vunpack.c.l.b16 %v306
      %v1327 = vunpack.c.l.b16 %v307
      %v1328 = vunpack.c.h.b16 %v307
      %v1329 = vunpack.c.l.b16 %v308
      %v1330 = vunpack.c.h.b16 %v308
      %v1331 = vunpack.c.l.b16 %v309
      %v1332 = vunpack.c.h.b16 %v309
      %v1333 = vunpack.c.l.b16 %v310
      %v1334 = vunpack.c.h.b16 %v310
      %v1335 = vunpack.c.l.b16 %v311
      %v1336 = vunpack.c.h.b16 %v311
      %v1337 = vunpack.c.l.b16 %v312
      %v1338 = vunpack.c.h.b16 %v312
      %v1339 = vunpack.c.l.b16 %v313
      %v1340 = vunpack.c.l.b16 %v314
      %v1341 = vunpack.c.h.b16 %v314
      %v1342 = vunpack.c.l.b16 %v315
      %v1343 = vunpack.c.h.b16 %v315
      %v1344 = vunpack.c.l.b16 %v316
      %v1345 = vunpack.c.h.b16 %v316
      %v1346 = vunpack.c.l.b16 %v317
      %v1347 = vunpack.c.h.b16 %v317
      %v1348 = vunpack.c.l.b16 %v318
      %v1349 = vunpack.c.h.b16 %v318
      %v1350 = vunpack.c.l.b16 %v319
      %v1351 = vunpack.c.h.b16 %v319
      %v1352 = vunpack.c.l.b16 %v320
      %v1353 = vunpack.c.l.b16 %v321
      %v1354 = vunpack.c.h.b16 %v321
      %v1355 = vunpack.c.l.b16 %v322
      %v1356 = vunpack.c.h.b16 %v322
      %v1357 = vunpack.c.l.b16 %v323
      %v1358 = vunpack.c.h.b16 %v323
      %v1359 = vunpack.c.l.b16 %v324
      %v1360 = vunpack.c.h.b16 %v324
      %v1361 = vunpack.c.l.b16 %v325
      %v1362 = vunpack.c.h.b16 %v325
      %v1363 = vunpack.c.l.b16 %v326
      %v1364 = vunpack.c.h.b16 %v326
      %v1365 = vunpack.c.l.b16 %v327
      %v1366 = vunpack.c.l.b16 %v328
      %v1367 = vunpack.c.h.b16 %v328
      %v1368 = vunpack.c.l.b16 %v329
      %v1369 = vunpack.c.h.b16 %v329
      %v1370 = vunpack.c.l.b16 %v330
      %v1371 = vunpack.c.h.b16 %v330
      %v1372 = vunpack.c.l.b16 %v331
      %v1373 = vunpack.c.h.b16 %v331
      %v1374 = vunpack.c.l.b16 %v332
      %v1375 = vunpack.c.h.b16 %v332
      %v1376 = vunpack.c.l.b16 %v333
      %v1377 = vunpack.c.h.b16 %v333
      %v1378 = vunpack.c.l.b16 %v334
      %v1379 = vunpack.c.l.b16 %v335
      %v1380 = vunpack.c.h.b16 %v335
      %v1381 = vunpack.c.l.b16 %v336
      %v1382 = vunpack.c.h.b16 %v336
      %v1383 = vunpack.c.l.b16 %v337
      %v1384 = vunpack.c.h.b16 %v337
      %v1385 = vunpack.c.l.b16 %v338
      %v1386 = vunpack.c.h.b16 %v338
      %v1387 = vunpack.c.l.b16 %v339
      %v1388 = vunpack.c.h.b16 %v339
      %v1389 = vunpack.c.l.b16 %v340
      %v1390 = vunpack.c.h.b16 %v340
      %v1391 = vunpack.c.l.b16 %v341
      %v1392 = vunpack.c.l.b16 %v342
      %v1393 = vunpack.c.h.b16 %v342
      %v1394 = vunpack.c.l.b16 %v343
      %v1395 = vunpack.c.h.b16 %v343
      %v1396 = vunpack.c.l.b16 %v344
      %v1397 = vunpack.c.h.b16 %v344
      %v1398 = vunpack.c.l.b16 %v345
      %v1399 = vunpack.c.h.b16 %v345
      %v1400 = vunpack.c.l.b16 %v346
      %v1401 = vunpack.c.h.b16 %v346
      %v1402 = vunpack.c.l.b16 %v347
      %v1403 = vunpack.c.h.b16 %v347
      %v1404 = vunpack.c.l.b16 %v348
      %v1405 = vunpack.c.l.b16 %v349
      %v1406 = vunpack.c.h.b16 %v349
      %v1407 = vunpack.c.l.b16 %v350
      %v1408 = vunpack.c.h.b16 %v350
      %v1409 = vunpack.c.l.b16 %v351
      %v1410 = vunpack.c.h.b16 %v351
      %v1411 = vunpack.c.l.b16 %v352
      %v1412 = vunpack.c.h.b16 %v352
      %v1413 = vunpack.c.l.b16 %v353
      %v1414 = vunpack.c.h.b16 %v353
      %v1415 = vunpack.c.l.b16 %v354
      %v1416 = vunpack.c.h.b16 %v354
      %v1417 = vunpack.c.l.b16 %v355
      %v1418 = vunpack.c.l.b16 %v356
      %v1419 = vunpack.c.h.b16 %v356
      %v1420 = vunpack.c.l.b16 %v357
      %v1421 = vunpack.c.h.b16 %v357
      %v1422 = vunpack.c.l.b16 %v358
      %v1423 = vunpack.c.h.b16 %v358
      %v1424 = vunpack.c.l.b16 %v359
      %v1425 = vunpack.c.h.b16 %v359
      %v1426 = vunpack.c.l.b16 %v360
      %v1427 = vunpack.c.h.b16 %v360
      %v1428 = vunpack.c.l.b16 %v361
      %v1429 = vunpack.c.h.b16 %v361
      %v1430 = vunpack.c.l.b16 %v362
      %v1431 = vunpack.c.l.b16 %v363
      %v1432 = vunpack.c.h.b16 %v363
      %v1433 = vunpack.c.l.b16 %v364
      %v1434 = vunpack.c.h.b16 %v364
      %v1435 = vunpack.c.l.b16 %v365
      %v1436 = vunpack.c.h.b16 %v365
      %v1437 = vunpack.c.l.b16 %v366
      %v1438 = vunpack.c.h.b16 %v366
      %v1439 = vunpack.c.l.b16 %v367
      %v1440 = vunpack.c.h.b16 %v367
      %v1441 = vunpack.c.l.b16 %v368
      %v1442 = vunpack.c.h.b16 %v368
      %v1443 = vunpack.c.l.b16 %v369
      %v1444 = vunpack.c.l.b16 %v370
      %v1445 = vunpack.c.h.b16 %v370
      %v1446 = vunpack.c.l.b16 %v371
      %v1447 = vunpack.c.h.b16 %v371
      %v1448 = vunpack.c.l.b16 %v372
      %v1449 = vunpack.c.h.b16 %v372
      %v1450 = vunpack.c.l.b16 %v373
      %v1451 = vunpack.c.h.b16 %v373
      %v1452 = vunpack.c.l.b16 %v374
      %v1453 = vunpack.c.h.b16 %v374
      %v1454 = vunpack.c.l.b16 %v375
      %v1455 = vunpack.c.h.b16 %v375
      %v1456 = vunpack.c.l.b16 %v376
      %v1457 = vunpack.c.l.b16 %v377
      %v1458 = vunpack.c.h.b16 %v377
      %v1459 = vunpack.c.l.b16 %v378
      %v1460 = vunpack.c.h.b16 %v378
      %v1461 = vunpack.c.l.b16 %v379
      %v1462 = vunpack.c.h.b16 %v379
      %v1463 = vunpack.c.l.b16 %v380
      %v1464 = vunpack.c.h.b16 %v380
      %v1465 = vunpack.c.l.b16 %v381
      %v1466 = vunpack.c.h.b16 %v381
      %v1467 = vunpack.c.l.b16 %v382
      %v1468 = vunpack.c.h.b16 %v382
      %v1469 = vunpack.c.l.b16 %v383
      %v1470 = vunpack.c.l.b16 %v384
      %v1471 = vunpack.c.h.b16 %v384
      %v1472 = vunpack.c.l.b16 %v385
      %v1473 = vunpack.c.h.b16 %v385
      %v1474 = vunpack.c.l.b16 %v386
      %v1475 = vunpack.c.h.b16 %v386
      %v1476 = vunpack.c.l.b16 %v387
      %v1477 = vunpack.c.h.b16 %v387
      %v1478 = vunpack.c.l.b16 %v388
      %v1479 = vunpack.c.h.b16 %v388
      %v1480 = vunpack.c.l.b16 %v389
      %v1481 = vunpack.c.h.b16 %v389
      %v1482 = vunpack.c.l.b16 %v390
      %v1483 = vunpack.c.l.b16 %v391
      %v1484 = vunpack.c.h.b16 %v391
      %v1485 = vunpack.c.l.b16 %v392
      %v1486 = vunpack.c.h.b16 %v392
      %v1487 = vunpack.c.l.b16 %v393
      %v1488 = vunpack.c.h.b16 %v393
      %v1489 = vunpack.c.l.b16 %v394
      %v1490 = vunpack.c.h.b16 %v394
      %v1491 = vunpack.c.l.b16 %v395
      %v1492 = vunpack.c.h.b16 %v395
      %v1493 = vunpack.c.l.b16 %v396
      %v1494 = vunpack.c.h.b16 %v396
      %v1495 = vunpack.c.l.b16 %v397
      %v1496 = vunpack.c.l.b16 %v398
      %v1497 = vunpack.c.h.b16 %v398
      %v1498 = vunpack.c.l.b16 %v399
      %v1499 = vunpack.c.h.b16 %v399
      %v1500 = vunpack.c.l.b16 %v400
      %v1501 = vunpack.c.h.b16 %v400
      %v1502 = vunpack.c.l.b16 %v401
      %v1503 = vunpack.c.h.b16 %v401
      %v1504 = vunpack.c.l.b16 %v402
      %v1505 = vunpack.c.h.b16 %v402
      %v1506 = vunpack.c.l.b16 %v403
      %v1507 = vunpack.c.h.b16 %v403
      %v1508 = vunpack.c.l.b16 %v404
      %v1509 = vunpack.c.l.b16 %v405
      %v1510 = vunpack.c.h.b16 %v405
      %v1511 = vunpack.c.l.b16 %v406
      %v1512 = vunpack.c.h.b16 %v406
      %v1513 = vunpack.c.l.b16 %v407
      %v1514 = vunpack.c.h.b16 %v407
      %v1515 = vunpack.c.l.b16 %v408
      %v1516 = vunpack.c.h.b16 %v408
      %v1517 = vunpack.c.l.b16 %v409
      %v1518 = vunpack.c.h.b16 %v409
      %v1519 = vunpack.c.l.b16 %v410
      %v1520 = vunpack.c.h.b16 %v410
      %v1521 = vunpack.c.l.b16 %v411
      %v1522 = vunpack.c.l.b16 %v412
      %v1523 = vunpack.c.h.b16 %v412
      %v1524 = vunpack.c.l.b16 %v413
      %v1525 = vunpack.c.h.b16 %v413
      %v1526 = vunpack.c.l.b16 %v414
      %v1527 = vunpack.c.h.b16 %v414
      %v1528 = vunpack.c.l.b16 %v415
      %v1529 = vunpack.c.h.b16 %v415
      %v1530 = vunpack.c.l.b16 %v416
      %v1531 = vunpack.c.h.b16 %v416
      %v1532 = vunpack.c.l.b16 %v417
      %v1533 = vunpack.c.h.b16 %v417
      %v1534 = vunpack.c.l.b16 %v418
      %v1535 = vunpack.c.l.b16 %v419
      %v1536 = vunpack.c.h.b16 %v419
      %v1537 = vunpack.c.l.b16 %v420
      %v1538 = vunpack.c.h.b16 %v420
      %v1539 = vunpack.c.l.b16 %v421
      %v1540 = vunpack.c.h.b16 %v421
      %v1541 = vunpack.c.l.b16 %v422
      %v1542 = vunpack.c.h.b16 %v422
      %v1543 = vunpack.c.l.b16 %v423
      %v1544 = vunpack.c.h.b16 %v423
      %v1545 = vunpack.c.l.b16 %v424
      %v1546 = vunpack.c.h.b16 %v424
      %v1547 = vunpack.c.l.b16 %v425
      %v1548 = vunpack.c.l.b16 %v426
      %v1549 = vunpack.c.h.b16 %v426
      %v1550 = vunpack.c.l.b16 %v427
      %v1551 = vunpack.c.h.b16 %v427
      %v1552 = vunpack.c.l.b16 %v428
      %v1553 = vunpack.c.h.b16 %v428
      %v1554 = vunpack.c.l.b16 %v429
      %v1555 = vunpack.c.h.b16 %v429
      %v1556 = vunpack.c.l.b16 %v430
      %v1557 = vunpack.c.h.b16 %v430
      %v1558 = vunpack.c.l.b16 %v431
      %v1559 = vunpack.c.h.b16 %v431
      %v1560 = vunpack.c.l.b16 %v432
      %v1561 = vunpack.c.l.b16 %v433
      %v1562 = vunpack.c.h.b16 %v433
      %v1563 = vunpack.c.l.b16 %v434
      %v1564 = vunpack.c.h.b16 %v434
      %v1565 = vunpack.c.l.b16 %v435
      %v1566 = vunpack.c.h.b16 %v435
      %v1567 = vunpack.c.l.b16 %v436
      %v1568 = vunpack.c.h.b16 %v436
      %v1569 = vunpack.c.l.b16 %v437
      %v1570 = vunpack.c.h.b16 %v437
      %v1571 = vunpack.c.l.b16 %v438
      %v1572 = vunpack.c.h.b16 %v438
      %v1573 = vunpack.c.l.b16 %v439
      %v1574 = vunpack.c.l.b16 %v440
      %v1575 = vunpack.c.h.b16 %v440
      %v1576 = vunpack.c.l.b16 %v441
      %v1577 = vunpack.c.h.b16 %v441
      %v1578 = vunpack.c.l.b16 %v442
      %v1579 = vunpack.c.h.b16 %v442
      %v1580 = vunpack.c.l.b16 %v443
      %v1581 = vunpack.c.h.b16 %v443
      %v1582 = vunpack.c.l.b16 %v444
      %v1583 = vunpack.c.h.b16 %v444
      %v1584 = vunpack.c.l.b16 %v445
      %v1585 = vunpack.c.h.b16 %v445
      %v1586 = vunpack.c.l.b16 %v446
      %v1587 = vunpack.c.l.b16 %v447
      %v1588 = vunpack.c.h.b16 %v447
      %v1589 = vunpack.c.l.b16 %v448
      %v1590 = vunpack.c.h.b16 %v448
      %v1591 = vunpack.c.l.b16 %v449
      %v1592 = vunpack.c.h.b16 %v449
      %v1593 = vunpack.c.l.b16 %v450
      %v1594 = vunpack.c.h.b16 %v450
      %v1595 = vunpack.c.l.b16 %v451
      %v1596 = vunpack.c.h.b16 %v451
      %v1597 = vunpack.c.l.b16 %v452
      %v1598 = vunpack.c.h.b16 %v452
      %v1599 = vunpack.c.l.b16 %v453
      %v1600 = vunpack.c.l.b16 %v454
      %v1601 = vunpack.c.h.b16 %v454
      %v1602 = vunpack.c.l.b16 %v455
      %v1603 = vunpack.c.h.b16 %v455
      %v1604 = vunpack.c.l.b16 %v456
      %v1605 = vunpack.c.h.b16 %v456
      %v1606 = vunpack.c.l.b16 %v457
      %v1607 = vunpack.c.h.b16 %v457
      %v1608 = vunpack.c.l.b16 %v458
      %v1609 = vunpack.c.h.b16 %v458
      %v1610 = vunpack.c.l.b16 %v459
      %v1611 = vunpack.c.h.b16 %v459
      %v1612 = vunpack.c.l.b16 %v460
      %v1613 = vunpack.c.l.b16 %v461
      %v1614 = vunpack.c.h.b16 %v461
      %v1615 = vunpack.c.l.b16 %v462
      %v1616 = vunpack.c.h.b16 %v462
      %v1617 = vunpack.c.l.b16 %v463
      %v1618 = vunpack.c.h.b16 %v463
      %v1619 = vunpack.c.l.b16 %v464
      %v1620 = vunpack.c.h.b16 %v464
      %v1621 = vunpack.c.l.b16 %v465
      %v1622 = vunpack.c.h.b16 %v465
      %v1623 = vunpack.c.l.b16 %v466
      %v1624 = vunpack.c.h.b16 %v466
      %v1625 = vunpack.c.l.b16 %v467
      %v1626 = vunpack.c.l.b16 %v468
      %v1627 = vunpack.c.h.b16 %v468
      %v1628 = vunpack.c.l.b16 %v469
      %v1629 = vunpack.c.h.b16 %v469
      %v1630 = vunpack.c.l.b16 %v470
      %v1631 = vunpack.c.h.b16 %v470
      %v1632 = vunpack.c.l.b16 %v471
      %v1633 = vunpack.c.h.b16 %v471
      %v1634 = vunpack.c.l.b16 %v472
      %v1635 = vunpack.c.h.b16 %v472
      %v1636 = vunpack.c.l.b16 %v473
      %v1637 = vunpack.c.h.b16 %v473
      %v1638 = vunpack.c.l.b16 %v474
      %v1639 = vunpack.c.l.b16 %v475
      %v1640 = vunpack.c.h.b16 %v475
      %v1641 = vunpack.c.l.b16 %v476
      %v1642 = vunpack.c.h.b16 %v476
      %v1643 = vunpack.c.l.b16 %v477
      %v1644 = vunpack.c.h.b16 %v477
      %v1645 = vunpack.c.l.b16 %v478
      %v1646 = vunpack.c.h.b16 %v478
      %v1647 = vunpack.c.l.b16 %v479
      %v1648 = vunpack.c.h.b16 %v479
      %v1649 = vunpack.c.l.b16 %v480
      %v1650 = vunpack.c.h.b16 %v480
      %v1651 = vunpack.c.l.b16 %v481
      %v1652 = vunpack.c.l.b16 %v482
      %v1653 = vunpack.c.h.b16 %v482
      %v1654 = vunpack.c.l.b16 %v483
      %v1655 = vunpack.c.h.b16 %v483
      %v1656 = vunpack.c.l.b16 %v484
      %v1657 = vunpack.c.h.b16 %v484
      %v1658 = vunpack.c.l.b16 %v485
      %v1659 = vunpack.c.h.b16 %v485
      %v1660 = vunpack.c.l.b16 %v486
      %v1661 = vunpack.c.h.b16 %v486
      %v1662 = vunpack.c.l.b16 %v487
      %v1663 = vunpack.c.h.b16 %v487
      %v1664 = vunpack.c.l.b16 %v488
      %v1665 = vunpack.c.l.b16 %v489
      %v1666 = vunpack.c.h.b16 %v489
      %v1667 = vunpack.c.l.b16 %v490
      %v1668 = vunpack.c.h.b16 %v490
      %v1669 = vunpack.c.l.b16 %v491
      %v1670 = vunpack.c.h.b16 %v491
      %v1671 = vunpack.c.l.b16 %v492
      %v1672 = vunpack.c.h.b16 %v492
      %v1673 = vunpack.c.l.b16 %v493
      %v1674 = vunpack.c.h.b16 %v493
      %v1675 = vunpack.c.l.b16 %v494
      %v1676 = vunpack.c.h.b16 %v494
      %v1677 = vunpack.c.l.b16 %v495
      %v1678 = vunpack.c.l.b16 %v496
      %v1679 = vunpack.c.h.b16 %v496
      %v1680 = vunpack.c.l.b16 %v497
      %v1681 = vunpack.c.h.b16 %v497
      %v1682 = vunpack.c.l.b16 %v498
      %v1683 = vunpack.c.h.b16 %v498
      %v1684 = vunpack.c.l.b16 %v499
      %v1685 = vunpack.c.h.b16 %v499
      %v1686 = vunpack.c.l.b16 %v500
      %v1687 = vunpack.c.h.b16 %v500
      %v1688 = vunpack.c.l.b16 %v501
      %v1689 = vunpack.c.h.b16 %v501
      %v1690 = vunpack.c.l.b16 %v502
      %v1691 = vunpack.c.l.b16 %v503
      %v1692 = vunpack.c.h.b16 %v503
      %v1693 = vunpack.c.l.b16 %v504
      %v1694 = vunpack.c.h.b16 %v504
      %v1695 = vunpack.c.l.b16 %v505
      %v1696 = vunpack.c.h.b16 %v505
      %v1697 = vunpack.c.l.b16 %v506
      %v1698 = vunpack.c.h.b16 %v506
      %v1699 = vunpack.c.l.b16 %v507
      %v1700 = vunpack.c.h.b16 %v507
      %v1701 = vunpack.c.l.b16 %v508
      %v1702 = vunpack.c.h.b16 %v508
      %v1703 = vunpack.c.l.b16 %v509
      %v1704 = vunpack.c.l.b16 %v510
      %v1705 = vunpack.c.h.b16 %v510
      %v1706 = vunpack.c.l.b16 %v511
      %v1707 = vunpack.c.h.b16 %v511
      %v1708 = vunpack.c.l.b16 %v512
      %v1709 = vunpack.c.h.b16 %v512
      %v1710 = vunpack.c.l.b16 %v513
      %v1711 = vunpack.c.h.b16 %v513
      %v1712 = vunpack.c.l.b16 %v514
      %v1713 = vunpack.c.h.b16 %v514
      %v1714 = vunpack.c.l.b16 %v515
      %v1715 = vunpack.c.h.b16 %v515
      %v1716 = vunpack.c.l.b16 %v516
      %v1717 = vunpack.c.l.b16 %v517
      %v1718 = vunpack.c.h.b16 %v517
      %v1719 = vunpack.c.l.b16 %v518
      %v1720 = vunpack.c.h.b16 %v518
      %v1721 = vunpack.c.l.b16 %v519
      %v1722 = vunpack.c.h.b16 %v519
      %v1723 = vunpack.c.l.b16 %v520
      %v1724 = vunpack.c.h.b16 %v520
      %v1725 = vunpack.c.l.b16 %v521
      %v1726 = vunpack.c.h.b16 %v521
      %v1727 = vunpack.c.l.b16 %v522
      %v1728 = vunpack.c.h.b16 %v522
      %v1729 = vunpack.c.l.b16 %v523
      %v1730 = vunpack.c.l.b16 %v524
      %v1731 = vunpack.c.h.b16 %v524
      %v1732 = vunpack.c.l.b16 %v525
      %v1733 = vunpack.c.h.b16 %v525
      %v1734 = vunpack.c.l.b16 %v526
      %v1735 = vunpack.c.h.b16 %v526
      %v1736 = vunpack.c.l.b16 %v527
      %v1737 = vunpack.c.h.b16 %v527
      %v1738 = vunpack.c.l.b16 %v528
      %v1739 = vunpack.c.h.b16 %v528
      %v1740 = vunpack.c.l.b16 %v529
      %v1741 = vunpack.c.h.b16 %v529
      %v1742 = vunpack.c.l.b16 %v530
      %v1743 = vunpack.c.l.b16 %v531
      %v1744 = vunpack.c.h.b16 %v531
      %v1745 = vunpack.c.l.b16 %v532
      %v1746 = vunpack.c.h.b16 %v532
      %v1747 = vunpack.c.l.b16 %v533
      %v1748 = vunpack.c.h.b16 %v533
      %v1749 = vunpack.c.l.b16 %v534
      %v1750 = vunpack.c.h.b16 %v534
      %v1751 = vunpack.c.l.b16 %v535
      %v1752 = vunpack.c.h.b16 %v535
      %v1753 = vunpack.c.l.b16 %v536
      %v1754 = vunpack.c.h.b16 %v536
      %v1755 = vunpack.c.l.b16 %v537
      %v1756 = vunpack.c.l.b16 %v538
      %v1757 = vunpack.c.h.b16 %v538
      %v1758 = vunpack.c.l.b16 %v539
      %v1759 = vunpack.c.h.b16 %v539
      %v1760 = vunpack.c.l.b16 %v540
      %v1761 = vunpack.c.h.b16 %v540
      %v1762 = vunpack.c.l.b16 %v541
      %v1763 = vunpack.c.h.b16 %v541
      %v1764 = vunpack.c.l.b16 %v542
      %v1765 = vunpack.c.h.b16 %v542
      %v1766 = vunpack.c.l.b16 %v543
      %v1767 = vunpack.c.h.b16 %v543
      %v1768 = vunpack.c.l.b16 %v544
      %v1769 = vunpack.c.l.b16 %v545
      %v1770 = vunpack.c.h.b16 %v545
      %v1771 = vunpack.c.l.b16 %v546
      %v1772 = vunpack.c.h.b16 %v546
      %v1773 = vunpack.c.l.b16 %v547
      %v1774 = vunpack.c.h.b16 %v547
      %v1775 = vunpack.c.l.b16 %v548
      %v1776 = vunpack.c.h.b16 %v548
      %v1777 = vunpack.c.l.b16 %v549
      %v1778 = vunpack.c.h.b16 %v549
      %v1779 = vunpack.c.l.b16 %v550
      %v1780 = vunpack.c.h.b16 %v550
      %v1781 = vunpack.c.l.b16 %v551
      %v1782 = vunpack.c.l.b16 %v552
      %v1783 = vunpack.c.h.b16 %v552
      %v1784 = vunpack.c.l.b16 %v553
      %v1785 = vunpack.c.h.b16 %v553
      %v1786 = vunpack.c.l.b16 %v554
      %v1787 = vunpack.c.h.b16 %v554
      %v1788 = vunpack.c.l.b16 %v555
      %v1789 = vunpack.c.h.b16 %v555
      %v1790 = vunpack.c.l.b16 %v556
      %v1791 = vunpack.c.h.b16 %v556
      %v1792 = vunpack.c.l.b16 %v557
      %v1793 = vunpack.c.h.b16 %v557
      %v1794 = vunpack.c.l.b16 %v558
      %v1795 = vunpack.c.l.b16 %v559
      %v1796 = vunpack.c.h.b16 %v559
      %v1797 = vunpack.c.l.b16 %v560
      %v1798 = vunpack.c.h.b16 %v560
      %v1799 = vunpack.c.l.b16 %v561
      %v1800 = vunpack.c.h.b16 %v561
      %v1801 = vunpack.c.l.b16 %v562
      %v1802 = vunpack.c.h.b16 %v562
      %v1803 = vunpack.c.l.b16 %v563
      %v1804 = vunpack.c.h.b16 %v563
      %v1805 = vunpack.c.l.b16 %v564
      %v1806 = vunpack.c.h.b16 %v564
      %v1807 = vunpack.c.l.b16 %v565
      %v1808 = vunpack.c.l.b16 %v566
      %v1809 = vunpack.c.h.b16 %v566
      %v1810 = vunpack.c.l.b16 %v567
      %v1811 = vunpack.c.h.b16 %v567
      %v1812 = vunpack.c.l.b16 %v568
      %v1813 = vunpack.c.h.b16 %v568
      %v1814 = vunpack.c.l.b16 %v569
      %v1815 = vunpack.c.h.b16 %v569
      %v1816 = vunpack.c.l.b16 %v570
      %v1817 = vunpack.c.h.b16 %v570
      %v1818 = vunpack.c.l.b16 %v571
      %v1819 = vunpack.c.h.b16 %v571
      %v1820 = vunpack.c.l.b16 %v572
      %v1821 = vunpack.c.l.b16 %v573
      %v1822 = vunpack.c.h.b16 %v573
      %v1823 = vunpack.c.l.b16 %v574
      %v1824 = vunpack.c.h.b16 %v574
      %v1825 = vunpack.c.l.b16 %v575
      %v1826 = vunpack.c.h.b16 %v575
      %v1827 = vunpack.c.l.b16 %v576
      %v1828 = vunpack.c.h.b16 %v576
      %v1829 = vunpack.c.l.b16 %v577
      %v1830 = vunpack.c.h.b16 %v577
      %v1831 = vunpack.c.l.b16 %v578
      %v1832 = vunpack.c.h.b16 %v578
      %v1833 = vunpack.c.l.b16 %v579
      %v1834 = vunpack.c.l.b16 %v580
      %v1835 = vunpack.c.h.b16 %v580
      %v1836 = vunpack.c.l.b16 %v581
      %v1837 = vunpack.c.h.b16 %v581
      %v1838 = vunpack.c.l.b16 %v582
      %v1839 = vunpack.c.h.b16 %v582
      %v1840 = vunpack.c.l.b16 %v583
      %v1841 = vunpack.c.h.b16 %v583
      %v1842 = vunpack.c.l.b16 %v584
      %v1843 = vunpack.c.h.b16 %v584
      %v1844 = vunpack.c.l.b16 %v585
      %v1845 = vunpack.c.h.b16 %v585
      %v1846 = vunpack.c.l.b16 %v586
      %v1847 = vunpack.c.l.b16 %v587
      %v1848 = vunpack.c.h.b16 %v587
      %v1849 = vunpack.c.l.b16 %v588
      %v1850 = vunpack.c.h.b16 %v588
      %v1851 = vunpack.c.l.b16 %v589
      %v1852 = vunpack.c.h.b16 %v589
      %v1853 = vunpack.c.l.b16 %v590
      %v1854 = vunpack.c.h.b16 %v590
      %v1855 = vunpack.c.l.b16 %v591
      %v1856 = vunpack.c.h.b16 %v591
      %v1857 = vunpack.c.l.b16 %v592
      %v1858 = vunpack.c.h.b16 %v592
      %v1859 = vunpack.c.l.b16 %v593
      %v1860 = vunpack.c.l.b16 %v594
      %v1861 = vunpack.c.h.b16 %v594
      %v1862 = vunpack.c.l.b16 %v595
      %v1863 = vunpack.c.h.b16 %v595
      %v1864 = vunpack.c.l.b16 %v596
      %v1865 = vunpack.c.h.b16 %v596
      %v1866 = vunpack.c.l.b16 %v597
      %v1867 = vunpack.c.h.b16 %v597
      %v1868 = vunpack.c.l.b16 %v598
      %v1869 = vunpack.c.h.b16 %v598
      %v1870 = vunpack.c.l.b16 %v599
      %v1871 = vunpack.c.h.b16 %v599
      %v1872 = vunpack.c.l.b16 %v600
      %v1873 = vunpack.c.l.b16 %v601
      %v1874 = vunpack.c.h.b16 %v601
      %v1875 = vunpack.c.l.b16 %v602
      %v1876 = vunpack.c.h.b16 %v602
      %v1877 = vunpack.c.l.b16 %v603
      %v1878 = vunpack.c.h.b16 %v603
      %v1879 = vunpack.c.l.b16 %v604
      %v1880 = vunpack.c.h.b16 %v604
      %v1881 = vunpack.c.l.b16 %v605
      %v1882 = vunpack.c.h.b16 %v605
      %v1883 = vunpack.c.l.b16 %v606
      %v1884 = vunpack.c.h.b16 %v606
      %v1885 = vunpack.c.l.b16 %v607
      %v1886 = vunpack.c.l.b16 %v608
      %v1887 = vunpack.c.h.b16 %v608
      %v1888 = vunpack.c.l.b16 %v609
      %v1889 = vunpack.c.h.b16 %v609
      %v1890 = vunpack.c.l.b16 %v610
      %v1891 = vunpack.c.h.b16 %v610
      %v1892 = vunpack.c.l.b16 %v611
      %v1893 = vunpack.c.h.b16 %v611
      %v1894 = vunpack.c.l.b16 %v612
      %v1895 = vunpack.c.h.b16 %v612
      %v1896 = vunpack.c.l.b16 %v613
      %v1897 = vunpack.c.h.b16 %v613
      %v1898 = vunpack.c.l.b16 %v614
      %v1899 = vunpack.c.l.b16 %v615
      %v1900 = vunpack.c.h.b16 %v615
      %v1901 = vunpack.c.l.b16 %v616
      %v1902 = vunpack.c.h.b16 %v616
      %v1903 = vunpack.c.l.b16 %v617
      %v1904 = vunpack.c.h.b16 %v617
      %v1905 = vunpack.c.l.b16 %v618
      %v1906 = vunpack.c.h.b16 %v618
      %v1907 = vunpack.c.l.b16 %v619
      %v1908 = vunpack.c.h.b16 %v619
      %v1909 = vunpack.c.l.b16 %v620
      %v1910 = vunpack.c.h.b16 %v620
      %v1911 = vunpack.c.l.b16 %v621
      %v1912 = vunpack.c.l.b16 %v622
      %v1913 = vunpack.c.h.b16 %v622
      %v1914 = vunpack.c.l.b16 %v623
      %v1915 = vunpack.c.h.b16 %v623
      %v1916 = vunpack.c.l.b16 %v624
      %v1917 = vunpack.c.h.b16 %v624
      %v1918 = vunpack.c.l.b16 %v625
      %v1919 = vunpack.c.h.b16 %v625
      %v1920 = vunpack.c.l.b16 %v626
      %v1921 = vunpack.c.h.b16 %v626
      %v1922 = vunpack.c.l.b16 %v627
      %v1923 = vunpack.c.h.b16 %v627
      %v1924 = vunpack.c.l.b16 %v628
      %v1925 = vunpack.c.l.b16 %v629
      %v1926 = vunpack.c.h.b16 %v629
      %v1927 = vunpack.c.l.b16 %v630
      %v1928 = vunpack.c.h.b16 %v630
      %v1929 = vunpack.c.l.b16 %v631
      %v1930 = vunpack.c.h.b16 %v631
      %v1931 = vunpack.c.l.b16 %v632
      %v1932 = vunpack.c.h.b16 %v632
      %v1933 = vunpack.c.l.b16 %v633
      %v1934 = vunpack.c.h.b16 %v633
      %v1935 = vunpack.c.l.b16 %v634
      %v1936 = vunpack.c.h.b16 %v634
      %v1937 = vunpack.c.l.b16 %v635
      %v1938 = vunpack.c.l.b16 %v636
      %v1939 = vunpack.c.h.b16 %v636
      %v1940 = vunpack.c.l.b16 %v637
      %v1941 = vunpack.c.h.b16 %v637
      %v1942 = vunpack.c.l.b16 %v638
      %v1943 = vunpack.c.h.b16 %v638
      %v1944 = vunpack.c.l.b16 %v639
      %v1945 = vunpack.c.h.b16 %v639
      %v1946 = vunpack.c.l.b16 %v640
      %v1947 = vunpack.c.h.b16 %v640
      %v1948 = vunpack.c.l.b16 %v641
      %v1949 = vunpack.c.h.b16 %v641
      %v1950 = vunpack.c.l.b16 %v642
      %v1951 = vunpack.c.l.b16 %v643
      %v1952 = vunpack.c.h.b16 %v643
      %v1953 = vunpack.c.l.b16 %v644
      %v1954 = vunpack.c.h.b16 %v644
      %v1955 = vunpack.c.l.b16 %v645
      %v1956 = vunpack.c.h.b16 %v645
      %v1957 = vunpack.c.l.b16 %v646
      %v1958 = vunpack.c.h.b16 %v646
      %v1959 = vunpack.c.l.b16 %v647
      %v1960 = vunpack.c.h.b16 %v647
      %v1961 = vunpack.c.l.b16 %v648
      %v1962 = vunpack.c.h.b16 %v648
      %v1963 = vunpack.c.l.b16 %v649
      %v1964 = vunpack.c.l.b16 %v650
      %v1965 = vunpack.c.h.b16 %v650
      %v1966 = vunpack.c.l.b16 %v651
      %v1967 = vunpack.c.h.b16 %v651
      %v1968 = vunpack.c.l.b16 %v652
      %v1969 = vunpack.c.h.b16 %v652
      %v1970 = vunpack.c.l.b16 %v653
      %v1971 = vunpack.c.h.b16 %v653
      %v1972 = vunpack.c.l.b16 %v654
      %v1973 = vunpack.c.h.b16 %v654
      %v1974 = vunpack.c.l.b16 %v655
      %v1975 = vunpack.c.h.b16 %v655
      %v1976 = vunpack.c.l.b16 %v656
      %v1977 = vunpack.c.l.b16 %v657
      %v1978 = vunpack.c.h.b16 %v657
      %v1979 = vunpack.c.l.b16 %v658
      %v1980 = vunpack.c.h.b16 %v658
      %v1981 = vunpack.c.l.b16 %v659
      %v1982 = vunpack.c.h.b16 %v659
      %v1983 = vunpack.c.l.b16 %v660
      %v1984 = vunpack.c.h.b16 %v660
      %v1985 = vunpack.c.l.b16 %v661
      %v1986 = vunpack.c.h.b16 %v661
      %v1987 = vunpack.c.l.b16 %v662
      %v1988 = vunpack.c.h.b16 %v662
      %v1989 = vunpack.c.l.b16 %v663
      %v1990 = vunpack.c.l.b16 %v664
      %v1991 = vunpack.c.h.b16 %v664
      %v1992 = vunpack.c.l.b16 %v665
      %v1993 = vunpack.c.h.b16 %v665
      %v1994 = vunpack.c.l.b16 %v666
      %v1995 = vunpack.c.h.b16 %v666
      %v1996 = vunpack.c.l.b16 %v667
      %v1997 = vunpack.c.h.b16 %v667
      %v1998 = vunpack.c.l.b16 %v668
      %v1999 = vunpack.c.h.b16 %v668
      %v2000 = vunpack.c.l.b16 %v669
      %v2001 = vunpack.c.h.b16 %v669
      %v2002 = vunpack.c.l.b16 %v670
      %v2003 = vunpack.c.l.b16 %v671
      %v2004 = vunpack.c.h.b16 %v671
      %v2005 = vunpack.c.l.b16 %v672
      %v2006 = vunpack.c.h.b16 %v672
      %v2007 = vunpack.c.l.b16 %v673
      %v2008 = vunpack.c.h.b16 %v673
      %v2009 = vunpack.c.l.b16 %v674
      %v2010 = vunpack.c.h.b16 %v674
      %v2011 = vunpack.c.l.b16 %v675
      %v2012 = vunpack.c.h.b16 %v675
      %v2013 = vunpack.c.l.b16 %v676
      %v2014 = vunpack.c.h.b16 %v676
      %v2015 = vunpack.c.l.b16 %v677
      %v2016 = vunpack.c.l.b16 %v678
      %v2017 = vunpack.c.h.b16 %v678
      %v2018 = vunpack.c.l.b16 %v679
      %v2019 = vunpack.c.h.b16 %v679
      %v2020 = vunpack.c.l.b16 %v680
      %v2021 = vunpack.c.h.b16 %v680
      %v2022 = vunpack.c.l.b16 %v681
      %v2023 = vunpack.c.h.b16 %v681
      %v2024 = vunpack.c.l.b16 %v682
      %v2025 = vunpack.c.h.b16 %v682
      %v2026 = vunpack.c.l.b16 %v683
      %v2027 = vunpack.c.h.b16 %v683
      %v2028 = vunpack.c.l.b16 %v684
      %v2029 = vunpack.c.l.b16 %v685
      %v2030 = vunpack.c.h.b16 %v685
      %v2031 = vunpack.c.l.b16 %v686
      %v2032 = vunpack.c.h.b16 %v686
      %v2033 = vunpack.c.l.b16 %v687
      %v2034 = vunpack.c.h.b16 %v687
      %v2035 = vunpack.c.l.b16 %v688
      %v2036 = vunpack.c.h.b16 %v688
      %v2037 = vunpack.c.l.b16 %v689
      %v2038 = vunpack.c.h.b16 %v689
      %v2039 = vunpack.c.l.b16 %v690
      %v2040 = vunpack.c.h.b16 %v690
      %v2041 = vunpack.c.l.b16 %v691
      %v2042 = vunpack.c.l.b16 %v692
      %v2043 = vunpack.c.h.b16 %v692
      %v2044 = vunpack.c.l.b16 %v693
      %v2045 = vunpack.c.h.b16 %v693
      %v2046 = vunpack.c.l.b16 %v694
      %v2047 = vunpack.c.h.b16 %v694
      %v2048 = vunpack.c.l.b16 %v695
      %v2049 = vunpack.c.h.b16 %v695
      %v2050 = vunpack.c.l.b16 %v696
      %v2051 = vunpack.c.h.b16 %v696
      %v2052 = vunpack.c.l.b16 %v697
      %v2053 = vunpack.c.h.b16 %v697
      %v2054 = vunpack.c.l.b16 %v698
      %v2055 = vunpack.c.l.b16 %v699
      %v2056 = vunpack.c.h.b16 %v699
      %v2057 = vunpack.c.l.b16 %v700
      %v2058 = vunpack.c.h.b16 %v700
      %v2059 = vunpack.c.l.b16 %v701
      %v2060 = vunpack.c.h.b16 %v701
      %v2061 = vunpack.c.l.b16 %v702
      %v2062 = vunpack.c.h.b16 %v702
      %v2063 = vunpack.c.l.b16 %v703
      %v2064 = vunpack.c.h.b16 %v703
      %v2065 = vunpack.c.l.b16 %v704
      %v2066 = vunpack.c.h.b16 %v704
      %v2067 = vunpack.c.l.b16 %v705
      %v2068 = vunpack.c.l.b16 %v706
      %v2069 = vunpack.c.h.b16 %v706
      %v2070 = vunpack.c.l.b16 %v707
      %v2071 = vunpack.c.h.b16 %v707
      %v2072 = vunpack.c.l.b16 %v708
      %v2073 = vunpack.c.h.b16 %v708
      %v2074 = vunpack.c.l.b16 %v709
      %v2075 = vunpack.c.h.b16 %v709
      %v2076 = vunpack.c.l.b16 %v710
      %v2077 = vunpack.c.h.b16 %v710
      %v2078 = vunpack.c.l.b16 %v711
      %v2079 = vunpack.c.h.b16 %v711
      %v2080 = vunpack.c.l.b16 %v712
      %v2081 = vunpack.c.l.b16 %v713
      %v2082 = vunpack.c.h.b16 %v713
      %v2083 = vunpack.c.l.b16 %v714
      %v2084 = vunpack.c.h.b16 %v714
      %v2085 = vunpack.c.l.b16 %v715
      %v2086 = vunpack.c.h.b16 %v715
      %v2087 = vunpack.c.l.b16 %v716
      %v2088 = vunpack.c.h.b16 %v716
      %v2089 = vunpack.c.l.b16 %v717
      %v2090 = vunpack.c.h.b16 %v717
      %v2091 = vunpack.c.l.b16 %v718
      %v2092 = vunpack.c.h.b16 %v718
      %v2093 = vunpack.c.l.b16 %v719
      %v2094 = vunpack.c.l.b16 %v720
      %v2095 = vunpack.c.h.b16 %v720
      %v2096 = vunpack.c.l.b16 %v721
      %v2097 = vunpack.c.h.b16 %v721
      %v2098 = vunpack.c.l.b16 %v722
      %v2099 = vunpack.c.h.b16 %v722
      %v2100 = vunpack.c.l.b16 %v723
      %v2101 = vunpack.c.h.b16 %v723
      %v2102 = vunpack.c.l.b16 %v724
      %v2103 = vunpack.c.h.b16 %v724
      %v2104 = vunpack.c.l.b16 %v725
      %v2105 = vunpack.c.h.b16 %v725
      %v2106 = vunpack.c.l.b16 %v726
      %v2107 = vpack.c.b16 %v1288, %v1275
      %v2108 = vpack.c.b16 %v1289, %v1276
      %v2109 = vpack.c.b16 %v1290, %v1277
      %v2110 = vpack.c.b16 %v1291, %v1278
      %v2111 = vpack.c.b16 %v1292, %v1279
      %v2112 = vpack.c.b16 %v1293, %v1280
      %v2113 = vpack.c.b16 %v1294, %v1281
      %v2114 = vpack.c.b16 %v1295, %v1282
      %v2115 = vpack.c.b16 %v1296, %v1283
      %v2116 = vpack.c.b16 %v1297, %v1284
      %v2117 = vpack.c.b16 %v1298, %v1285
      %v2118 = vpack.c.b16 %v1299, %v1286
      %v2119 = vpack.c.b16 %v1300, %v1287
      %v2120 = vpack.c.b16 %v1314, %v1301
      %v2121 = vpack.c.b16 %v1315, %v1302
      %v2122 = vpack.c.b16 %v1316, %v1303
      %v2123 = vpack.c.b16 %v1317, %v1304
      %v2124 = vpack.c.b16 %v1318, %v1305
      %v2125 = vpack.c.b16 %v1319, %v1306
      %v2126 = vpack.c.b16 %v1320, %v1307
      %v2127 = vpack.c.b16 %v1321, %v1308
      %v2128 = vpack.c.b16 %v1322, %v1309
      %v2129 = vpack.c.b16 %v1323, %v1310
      %v2130 = vpack.c.b16 %v1324, %v1311
      %v2131 = vpack.c.b16 %v1325, %v1312
      %v2132 = vpack.c.b16 %v1326, %v1313
      %v2133 = vpack.c.b16 %v1340, %v1327
      %v2134 = vpack.c.b16 %v1341, %v1328
      %v2135 = vpack.c.b16 %v1342, %v1329
      %v2136 = vpack.c.b16 %v1343, %v1330
      %v2137 = vpack.c.b16 %v1344, %v1331
      %v2138 = vpack.c.b16 %v1345, %v1332
      %v2139 = vpack.c.b16 %v1346, %v1333
      %v2140 = vpack.c.b16 %v1347, %v1334
      %v2141 = vpack.c.b16 %v1348, %v1335
      %v2142 = vpack.c.b16 %v1349, %v1336
      %v2143 = vpack.c.b16 %v1350, %v1337
      %v2144 = vpack.c.b16 %v1351, %v1338
      %v2145 = vpack.c.b16 %v1352, %v1339
      %v2146 = vpack.c.b16 %v1366, %v1353
      %v2147 = vpack.c.b16 %v1367, %v1354
      %v2148 = vpack.c.b16 %v1368, %v1355
      %v2149 = vpack.c.b16 %v1369, %v1356
      %v2150 = vpack.c.b16 %v1370, %v1357
      %v2151 = vpack.c.b16 %v1371, %v1358
      %v2152 = vpack.c.b16 %v1372, %v1359
      %v2153 = vpack.c.b16 %v1373, %v1360
      %v2154 = vpack.c.b16 %v1374, %v1361
      %v2155 = vpack.c.b16 %v1375, %v1362
      %v2156 = vpack.c.b16 %v1376, %v1363
      %v2157 = vpack.c.b16 %v1377, %v1364
      %v2158 = vpack.c.b16 %v1378, %v1365
      %v2159 = vpack.c.b16 %v1392, %v1379
      %v2160 = vpack.c.b16 %v1393, %v1380
      %v2161 = vpack.c.b16 %v1394, %v1381
      %v2162 = vpack.c.b16 %v1395, %v1382
      %v2163 = vpack.c.b16 %v1396, %v1383
      %v2164 = vpack.c.b16 %v1397, %v1384
      %v2165 = vpack.c.b16 %v1398, %v1385
      %v2166 = vpack.c.b16 %v1399, %v1386
      %v2167 = vpack.c.b16 %v1400, %v1387
      %v2168 = vpack.c.b16 %v1401, %v1388
      %v2169 = vpack.c.b16 %v1402, %v1389
      %v2170 = vpack.c.b16 %v1403, %v1390
      %v2171 = vpack.c.b16 %v1404, %v1391
      %v2172 = vpack.c.b16 %v1418, %v1405
      %v2173 = vpack.c.b16 %v1419, %v1406
      %v2174 = vpack.c.b16 %v1420, %v1407
      %v2175 = vpack.c.b16 %v1421, %v1408
      %v2176 = vpack.c.b16 %v1422, %v1409
      %v2177 = vpack.c.b16 %v1423, %v1410
      %v2178 = vpack.c.b16 %v1424, %v1411
      %v2179 = vpack.c.b16 %v1425, %v1412
      %v2180 = vpack.c.b16 %v1426, %v1413
      %v2181 = vpack.c.b16 %v1427, %v1414
      %v2182 = vpack.c.b16 %v1428, %v1415
      %v2183 = vpack.c.b16 %v1429, %v1416
      %v2184 = vpack.c.b16 %v1430, %v1417
      %v2185 = vpack.c.b16 %v1444, %v1431
      %v2186 = vpack.c.b16 %v1445, %v1432
      %v2187 = vpack.c.b16 %v1446, %v1433
      %v2188 = vpack.c.b16 %v1447, %v1434
      %v2189 = vpack.c.b16 %v1448, %v1435
      %v2190 = vpack.c.b16 %v1449, %v1436
      %v2191 = vpack.c.b16 %v1450, %v1437
      %v2192 = vpack.c.b16 %v1451, %v1438
      %v2193 = vpack.c.b16 %v1452, %v1439
      %v2194 = vpack.c.b16 %v1453, %v1440
      %v2195 = vpack.c.b16 %v1454, %v1441
      %v2196 = vpack.c.b16 %v1455, %v1442
      %v2197 = vpack.c.b16 %v1456, %v1443
      %v2198 = vpack.c.b16 %v1470, %v1457
      %v2199 = vpack.c.b16 %v1471, %v1458
      %v2200 = vpack.c.b16 %v1472, %v1459
      %v2201 = vpack.c.b16 %v1473, %v1460
      %v2202 = vpack.c.b16 %v1474, %v1461
      %v2203 = vpack.c.b16 %v1475, %v1462
      %v2204 = vpack.c.b16 %v1476, %v1463
      %v2205 = vpack.c.b16 %v1477, %v1464
      %v2206 = vpack.c.b16 %v1478, %v1465
      %v2207 = vpack.c.b16 %v1479, %v1466
      %v2208 = vpack.c.b16 %v1480, %v1467
      %v2209 = vpack.c.b16 %v1481, %v1468
      %v2210 = vpack.c.b16 %v1482, %v1469
      %v2211 = vpack.c.b16 %v1496, %v1483
      %v2212 = vpack.c.b16 %v1497, %v1484
      %v2213 = vpack.c.b16 %v1498, %v1485
      %v2214 = vpack.c.b16 %v1499, %v1486
      %v2215 = vpack.c.b16 %v1500, %v1487
      %v2216 = vpack.c.b16 %v1501, %v1488
      %v2217 = vpack.c.b16 %v1502, %v1489
      %v2218 = vpack.c.b16 %v1503, %v1490
      %v2219 = vpack.c.b16 %v1504, %v1491
      %v2220 = vpack.c.b16 %v1505, %v1492
      %v2221 = vpack.c.b16 %v1506, %v1493
      %v2222 = vpack.c.b16 %v1507, %v1494
      %v2223 = vpack.c.b16 %v1508, %v1495
      %v2224 = vpack.c.b16 %v1522, %v1509
      %v2225 = vpack.c.b16 %v1523, %v1510
      %v2226 = vpack.c.b16 %v1524, %v1511
      %v2227 = vpack.c.b16 %v1525, %v1512
      %v2228 = vpack.c.b16 %v1526, %v1513
      %v2229 = vpack.c.b16 %v1527, %v1514
      %v2230 = vpack.c.b16 %v1528, %v1515
      %v2231 = vpack.c.b16 %v1529, %v1516
      %v2232 = vpack.c.b16 %v1530, %v1517
      %v2233 = vpack.c.b16 %v1531, %v1518
      %v2234 = vpack.c.b16 %v1532, %v1519
      %v2235 = vpack.c.b16 %v1533, %v1520
      %v2236 = vpack.c.b16 %v1534, %v1521
      %v2237 = vpack.c.b16 %v1548, %v1535
      %v2238 = vpack.c.b16 %v1549, %v1536
      %v2239 = vpack.c.b16 %v1550, %v1537
      %v2240 = vpack.c.b16 %v1551, %v1538
      %v2241 = vpack.c.b16 %v1552, %v1539
      %v2242 = vpack.c.b16 %v1553, %v1540
      %v2243 = vpack.c.b16 %v1554, %v1541
      %v2244 = vpack.c.b16 %v1555, %v1542
      %v2245 = vpack.c.b16 %v1556, %v1543
      %v2246 = vpack.c.b16 %v1557, %v1544
      %v2247 = vpack.c.b16 %v1558, %v1545
      %v2248 = vpack.c.b16 %v1559, %v1546
      %v2249 = vpack.c.b16 %v1560, %v1547
      %v2250 = vpack.c.b16 %v1574, %v1561
      %v2251 = vpack.c.b16 %v1575, %v1562
      %v2252 = vpack.c.b16 %v1576, %v1563
      %v2253 = vpack.c.b16 %v1577, %v1564
      %v2254 = vpack.c.b16 %v1578, %v1565
      %v2255 = vpack.c.b16 %v1579, %v1566
      %v2256 = vpack.c.b16 %v1580, %v1567
      %v2257 = vpack.c.b16 %v1581, %v1568
      %v2258 = vpack.c.b16 %v1582, %v1569
      %v2259 = vpack.c.b16 %v1583, %v1570
      %v2260 = vpack.c.b16 %v1584, %v1571
      %v2261 = vpack.c.b16 %v1585, %v1572
      %v2262 = vpack.c.b16 %v1586, %v1573
      %v2263 = vpack.c.b16 %v1600, %v1587
      %v2264 = vpack.c.b16 %v1601, %v1588
      %v2265 = vpack.c.b16 %v1602, %v1589
      %v2266 = vpack.c.b16 %v1603, %v1590
      %v2267 = vpack.c.b16 %v1604, %v1591
      %v2268 = vpack.c.b16 %v1605, %v1592
      %v2269 = vpack.c.b16 %v1606, %v1593
      %v2270 = vpack.c.b16 %v1607, %v1594
      %v2271 = vpack.c.b16 %v1608, %v1595
      %v2272 = vpack.c.b16 %v1609, %v1596
      %v2273 = vpack.c.b16 %v1610, %v1597
      %v2274 = vpack.c.b16 %v1611, %v1598
      %v2275 = vpack.c.b16 %v1612, %v1599
      %v2276 = vpack.c.b16 %v1626, %v1613
      %v2277 = vpack.c.b16 %v1627, %v1614
      %v2278 = vpack.c.b16 %v1628, %v1615
      %v2279 = vpack.c.b16 %v1629, %v1616
      %v2280 = vpack.c.b16 %v1630, %v1617
      %v2281 = vpack.c.b16 %v1631, %v1618
      %v2282 = vpack.c.b16 %v1632, %v1619
      %v2283 = vpack.c.b16 %v1633, %v1620
      %v2284 = vpack.c.b16 %v1634, %v1621
      %v2285 = vpack.c.b16 %v1635, %v1622
      %v2286 = vpack.c.b16 %v1636, %v1623
      %v2287 = vpack.c.b16 %v1637, %v1624
      %v2288 = vpack.c.b16 %v1638, %v1625
      %v2289 = vpack.c.b16 %v1652, %v1639
      %v2290 = vpack.c.b16 %v1653, %v1640
      %v2291 = vpack.c.b16 %v1654, %v1641
      %v2292 = vpack.c.b16 %v1655, %v1642
      %v2293 = vpack.c.b16 %v1656, %v1643
      %v2294 = vpack.c.b16 %v1657, %v1644
      %v2295 = vpack.c.b16 %v1658, %v1645
      %v2296 = vpack.c.b16 %v1659, %v1646
      %v2297 = vpack.c.b16 %v1660, %v1647
      %v2298 = vpack.c.b16 %v1661, %v1648
      %v2299 = vpack.c.b16 %v1662, %v1649
      %v2300 = vpack.c.b16 %v1663, %v1650
      %v2301 = vpack.c.b16 %v1664, %v1651
      %v2302 = vpack.c.b16 %v1678, %v1665
      %v2303 = vpack.c.b16 %v1679, %v1666
      %v2304 = vpack.c.b16 %v1680, %v1667
      %v2305 = vpack.c.b16 %v1681, %v1668
      %v2306 = vpack.c.b16 %v1682, %v1669
      %v2307 = vpack.c.b16 %v1683, %v1670
      %v2308 = vpack.c.b16 %v1684, %v1671
      %v2309 = vpack.c.b16 %v1685, %v1672
      %v2310 = vpack.c.b16 %v1686, %v1673
      %v2311 = vpack.c.b16 %v1687, %v1674
      %v2312 = vpack.c.b16 %v1688, %v1675
      %v2313 = vpack.c.b16 %v1689, %v1676
      %v2314 = vpack.c.b16 %v1690, %v1677
      %v2315 = vpack.c.b16 %v1704, %v1691
      %v2316 = vpack.c.b16 %v1705, %v1692
      %v2317 = vpack.c.b16 %v1706, %v1693
      %v2318 = vpack.c.b16 %v1707, %v1694
      %v2319 = vpack.c.b16 %v1708, %v1695
      %v2320 = vpack.c.b16 %v1709, %v1696
      %v2321 = vpack.c.b16 %v1710, %v1697
      %v2322 = vpack.c.b16 %v1711, %v1698
      %v2323 = vpack.c.b16 %v1712, %v1699
      %v2324 = vpack.c.b16 %v1713, %v1700
      %v2325 = vpack.c.b16 %v1714, %v1701
      %v2326 = vpack.c.b16 %v1715, %v1702
      %v2327 = vpack.c.b16 %v1716, %v1703
      %v2328 = vpack.c.b16 %v1730, %v1717
      %v2329 = vpack.c.b16 %v1731, %v1718
      %v2330 = vpack.c.b16 %v1732, %v1719
      %v2331 = vpack.c.b16 %v1733, %v1720
      %v2332 = vpack.c.b16 %v1734, %v1721
      %v2333 = vpack.c.b16 %v1735, %v1722
      %v2334 = vpack.c.b16 %v1736, %v1723
      %v2335 = vpack.c.b16 %v1737, %v1724
      %v2336 = vpack.c.b16 %v1738, %v1725
      %v2337 = vpack.c.b16 %v1739, %v1726
      %v2338 = vpack.c.b16 %v1740, %v1727
      %v2339 = vpack.c.b16 %v1741, %v1728
      %v2340 = vpack.c.b16 %v1742, %v1729
      %v2341 = vpack.c.b16 %v1756, %v1743
      %v2342 = vpack.c.b16 %v1757, %v1744
      %v2343 = vpack.c.b16 %v1758, %v1745
      %v2344 = vpack.c.b16 %v1759, %v1746
      %v2345 = vpack.c.b16 %v1760, %v1747
      %v2346 = vpack.c.b16 %v1761, %v1748
      %v2347 = vpack.c.b16 %v1762, %v1749
      %v2348 = vpack.c.b16 %v1763, %v1750
      %v2349 = vpack.c.b16 %v1764, %v1751
      %v2350 = vpack.c.b16 %v1765, %v1752
      %v2351 = vpack.c.b16 %v1766, %v1753
      %v2352 = vpack.c.b16 %v1767, %v1754
      %v2353 = vpack.c.b16 %v1768, %v1755
      %v2354 = vpack.c.b16 %v1782, %v1769
      %v2355 = vpack.c.b16 %v1783, %v1770
      %v2356 = vpack.c.b16 %v1784, %v1771
      %v2357 = vpack.c.b16 %v1785, %v1772
      %v2358 = vpack.c.b16 %v1786, %v1773
      %v2359 = vpack.c.b16 %v1787, %v1774
      %v2360 = vpack.c.b16 %v1788, %v1775
      %v2361 = vpack.c.b16 %v1789, %v1776
      %v2362 = vpack.c.b16 %v1790, %v1777
      %v2363 = vpack.c.b16 %v1791, %v1778
      %v2364 = vpack.c.b16 %v1792, %v1779
      %v2365 = vpack.c.b16 %v1793, %v1780
      %v2366 = vpack.c.b16 %v1794, %v1781
      %v2367 = vpack.c.b16 %v1808, %v1795
      %v2368 = vpack.c.b16 %v1809, %v1796
      %v2369 = vpack.c.b16 %v1810, %v1797
      %v2370 = vpack.c.b16 %v1811, %v1798
      %v2371 = vpack.c.b16 %v1812, %v1799
      %v2372 = vpack.c.b16 %v1813, %v1800
      %v2373 = vpack.c.b16 %v1814, %v1801
      %v2374 = vpack.c.b16 %v1815, %v1802
      %v2375 = vpack.c.b16 %v1816, %v1803
      %v2376 = vpack.c.b16 %v1817, %v1804
      %v2377 = vpack.c.b16 %v1818, %v1805
      %v2378 = vpack.c.b16 %v1819, %v1806
      %v2379 = vpack.c.b16 %v1820, %v1807
      %v2380 = vpack.c.b16 %v1834, %v1821
      %v2381 = vpack.c.b16 %v1835, %v1822
      %v2382 = vpack.c.b16 %v1836, %v1823
      %v2383 = vpack.c.b16 %v1837, %v1824
      %v2384 = vpack.c.b16 %v1838, %v1825
      %v2385 = vpack.c.b16 %v1839, %v1826
      %v2386 = vpack.c.b16 %v1840, %v1827
      %v2387 = vpack.c.b16 %v1841, %v1828
      %v2388 = vpack.c.b16 %v1842, %v1829
      %v2389 = vpack.c.b16 %v1843, %v1830
      %v2390 = vpack.c.b16 %v1844, %v1831
      %v2391 = vpack.c.b16 %v1845, %v1832
      %v2392 = vpack.c.b16 %v1846, %v1833
      %v2393 = vpack.c.b16 %v1860, %v1847
      %v2394 = vpack.c.b16 %v1861, %v1848
      %v2395 = vpack.c.b16 %v1862, %v1849
      %v2396 = vpack.c.b16 %v1863, %v1850
      %v2397 = vpack.c.b16 %v1864, %v1851
      %v2398 = vpack.c.b16 %v1865, %v1852
      %v2399 = vpack.c.b16 %v1866, %v1853
      %v2400 = vpack.c.b16 %v1867, %v1854
      %v2401 = vpack.c.b16 %v1868, %v1855
      %v2402 = vpack.c.b16 %v1869, %v1856
      %v2403 = vpack.c.b16 %v1870, %v1857
      %v2404 = vpack.c.b16 %v1871, %v1858
      %v2405 = vpack.c.b16 %v1872, %v1859
      %v2406 = vpack.c.b16 %v1886, %v1873
      %v2407 = vpack.c.b16 %v1887, %v1874
      %v2408 = vpack.c.b16 %v1888, %v1875
      %v2409 = vpack.c.b16 %v1889, %v1876
      %v2410 = vpack.c.b16 %v1890, %v1877
      %v2411 = vpack.c.b16 %v1891, %v1878
      %v2412 = vpack.c.b16 %v1892, %v1879
      %v2413 = vpack.c.b16 %v1893, %v1880
      %v2414 = vpack.c.b16 %v1894, %v1881
      %v2415 = vpack.c.b16 %v1895, %v1882
      %v2416 = vpack.c.b16 %v1896, %v1883
      %v2417 = vpack.c.b16 %v1897, %v1884
      %v2418 = vpack.c.b16 %v1898, %v1885
      %v2419 = vpack.c.b16 %v1912, %v1899
      %v2420 = vpack.c.b16 %v1913, %v1900
      %v2421 = vpack.c.b16 %v1914, %v1901
      %v2422 = vpack.c.b16 %v1915, %v1902
      %v2423 = vpack.c.b16 %v1916, %v1903
      %v2424 = vpack.c.b16 %v1917, %v1904
      %v2425 = vpack.c.b16 %v1918, %v1905
      %v2426 = vpack.c.b16 %v1919, %v1906
      %v2427 = vpack.c.b16 %v1920, %v1907
      %v2428 = vpack.c.b16 %v1921, %v1908
      %v2429 = vpack.c.b16 %v1922, %v1909
      %v2430 = vpack.c.b16 %v1923, %v1910
      %v2431 = vpack.c.b16 %v1924, %v1911
      %v2432 = vpack.c.b16 %v1938, %v1925
      %v2433 = vpack.c.b16 %v1939, %v1926
      %v2434 = vpack.c.b16 %v1940, %v1927
      %v2435 = vpack.c.b16 %v1941, %v1928
      %v2436 = vpack.c.b16 %v1942, %v1929
      %v2437 = vpack.c.b16 %v1943, %v1930
      %v2438 = vpack.c.b16 %v1944, %v1931
      %v2439 = vpack.c.b16 %v1945, %v1932
      %v2440 = vpack.c.b16 %v1946, %v1933
      %v2441 = vpack.c.b16 %v1947, %v1934
      %v2442 = vpack.c.b16 %v1948, %v1935
      %v2443 = vpack.c.b16 %v1949, %v1936
      %v2444 = vpack.c.b16 %v1950, %v1937
      %v2445 = vpack.c.b16 %v1964, %v1951
      %v2446 = vpack.c.b16 %v1965, %v1952
      %v2447 = vpack.c.b16 %v1966, %v1953
      %v2448 = vpack.c.b16 %v1967, %v1954
      %v2449 = vpack.c.b16 %v1968, %v1955
      %v2450 = vpack.c.b16 %v1969, %v1956
      %v2451 = vpack.c.b16 %v1970, %v1957
      %v2452 = vpack.c.b16 %v1971, %v1958
      %v2453 = vpack.c.b16 %v1972, %v1959
      %v2454 = vpack.c.b16 %v1973, %v1960
      %v2455 = vpack.c.b16 %v1974, %v1961
      %v2456 = vpack.c.b16 %v1975, %v1962
      %v2457 = vpack.c.b16 %v1976, %v1963
      %v2458 = vpack.c.b16 %v1990, %v1977
      %v2459 = vpack.c.b16 %v1991, %v1978
      %v2460 = vpack.c.b16 %v1992, %v1979
      %v2461 = vpack.c.b16 %v1993, %v1980
      %v2462 = vpack.c.b16 %v1994, %v1981
      %v2463 = vpack.c.b16 %v1995, %v1982
      %v2464 = vpack.c.b16 %v1996, %v1983
      %v2465 = vpack.c.b16 %v1997, %v1984
      %v2466 = vpack.c.b16 %v1998, %v1985
      %v2467 = vpack.c.b16 %v1999, %v1986
      %v2468 = vpack.c.b16 %v2000, %v1987
      %v2469 = vpack.c.b16 %v2001, %v1988
      %v2470 = vpack.c.b16 %v2002, %v1989
      %v2471 = vpack.c.b16 %v2016, %v2003
      %v2472 = vpack.c.b16 %v2017, %v2004
      %v2473 = vpack.c.b16 %v2018, %v2005
      %v2474 = vpack.c.b16 %v2019, %v2006
      %v2475 = vpack.c.b16 %v2020, %v2007
      %v2476 = vpack.c.b16 %v2021, %v2008
      %v2477 = vpack.c.b16 %v2022, %v2009
      %v2478 = vpack.c.b16 %v2023, %v2010
      %v2479 = vpack.c.b16 %v2024, %v2011
      %v2480 = vpack.c.b16 %v2025, %v2012
      %v2481 = vpack.c.b16 %v2026, %v2013
      %v2482 = vpack.c.b16 %v2027, %v2014
      %v2483 = vpack.c.b16 %v2028, %v2015
      %v2484 = vpack.c.b16 %v2042, %v2029
      %v2485 = vpack.c.b16 %v2043, %v2030
      %v2486 = vpack.c.b16 %v2044, %v2031
      %v2487 = vpack.c.b16 %v2045, %v2032
      %v2488 = vpack.c.b16 %v2046, %v2033
      %v2489 = vpack.c.b16 %v2047, %v2034
      %v2490 = vpack.c.b16 %v2048, %v2035
      %v2491 = vpack.c.b16 %v2049, %v2036
      %v2492 = vpack.c.b16 %v2050, %v2037
      %v2493 = vpack.c.b16 %v2051, %v2038
      %v2494 = vpack.c.b16 %v2052, %v2039
      %v2495 = vpack.c.b16 %v2053, %v2040
      %v2496 = vpack.c.b16 %v2054, %v2041
      %v2497 = vpack.c.b16 %v2068, %v2055
      %v2498 = vpack.c.b16 %v2069, %v2056
      %v2499 = vpack.c.b16 %v2070, %v2057
      %v2500 = vpack.c.b16 %v2071, %v2058
      %v2501 = vpack.c.b16 %v2072, %v2059
      %v2502 = vpack.c.b16 %v2073, %v2060
      %v2503 = vpack.c.b16 %v2074, %v2061
      %v2504 = vpack.c.b16 %v2075, %v2062
      %v2505 = vpack.c.b16 %v2076, %v2063
      %v2506 = vpack.c.b16 %v2077, %v2064
      %v2507 = vpack.c.b16 %v2078, %v2065
      %v2508 = vpack.c.b16 %v2079, %v2066
      %v2509 = vpack.c.b16 %v2080, %v2067
      %v2510 = vpack.c.b16 %v2094, %v2081
      %v2511 = vpack.c.b16 %v2095, %v2082
      %v2512 = vpack.c.b16 %v2096, %v2083
      %v2513 = vpack.c.b16 %v2097, %v2084
      %v2514 = vpack.c.b16 %v2098, %v2085
      %v2515 = vpack.c.b16 %v2099, %v2086
      %v2516 = vpack.c.b16 %v2100, %v2087
      %v2517 = vpack.c.b16 %v2101, %v2088
      %v2518 = vpack.c.b16 %v2102, %v2089
      %v2519 = vpack.c.b16 %v2103, %v2090
      %v2520 = vpack.c.b16 %v2104, %v2091
      %v2521 = vpack.c.b16 %v2105, %v2092
      %v2522 = vpack.c.b16 %v2106, %v2093
      %2939 = vmatprep.subr.bf16.mxu0 %v2108
      %2940 = vmatpush1.bf16.msra.mxu0 %v2107
      %2941 = vmatprep.subr.bf16.mxu0 %v2121
      %2942 = vmatpush1.bf16.msra.mxu0 %v2120
      %2943 = vmatprep.subr.bf16.mxu0 %v2134
      %2944 = vmatpush1.bf16.msra.mxu0 %v2133
      %2945 = vmatprep.subr.bf16.mxu0 %v2147
      %2946 = vmatpush1.bf16.msra.mxu0 %v2146
      %2947 = vmatprep.subr.bf16.mxu0 %v2160
      %2948 = vmatpush1.bf16.msra.mxu0 %v2159
      %2949 = vmatprep.subr.bf16.mxu0 %v2173
      %2950 = vmatpush1.bf16.msra.mxu0 %v2172
      %2951 = vmatprep.subr.bf16.mxu0 %v2186
      %2952 = vmatpush1.bf16.msra.mxu0 %v2185
      %2953 = vmatprep.subr.bf16.mxu0 %v2199
      %2954 = vmatpush1.bf16.msra.mxu0 %v2198
      %2955 = vmatprep.subr.bf16.mxu0 %v2212
      %2956 = vmatpush1.bf16.msra.mxu0 %v2211
      %2957 = vmatprep.subr.bf16.mxu0 %v2225
      %2958 = vmatpush1.bf16.msra.mxu0 %v2224
      %2959 = vmatprep.subr.bf16.mxu0 %v2238
      %2960 = vmatpush1.bf16.msra.mxu0 %v2237
      %2961 = vmatprep.subr.bf16.mxu0 %v2251
      %2962 = vmatpush1.bf16.msra.mxu0 %v2250
      %2963 = vmatprep.subr.bf16.mxu0 %v2264
      %2964 = vmatpush1.bf16.msra.mxu0 %v2263
      %2965 = vmatprep.subr.bf16.mxu0 %v2277
      %2966 = vmatpush1.bf16.msra.mxu0 %v2276
      %2967 = vmatprep.subr.bf16.mxu0 %v2290
      %2968 = vmatpush1.bf16.msra.mxu0 %v2289
      %2969 = vmatprep.subr.bf16.mxu0 %v2303
      %2970 = vmatpush1.bf16.msra.mxu0 %v2302
      %2971 = vmatprep.mubr.bf16.mxu0 %v788
      %2972 = vmatmul.mubr.bf16.gmra.mrb[0].mxu0 %v787
      %v2973 = vpop.f32.mrb[0].mxu0
      %v2974 = vadd.f32 0.0, %v2973
      %v2975 = vpop.f32.mrb[0].mxu0
      %v2976 = vadd.f32 0.0, %v2975
      %v2977 = vpop.f32.mrb[0].mxu0
      %v2978 = vadd.f32 0.0, %v2977
      %v2979 = vpop.f32.mrb[0].mxu0
      %v2980 = vadd.f32 0.0, %v2979
      %2981 = vmatprep.mubr.bf16.mxu0 %v792
      %2982 = vmatmul.mubr.bf16.gmra.mrb[0].mxu0 %v791
      %v2983 = vpop.f32.mrb[0].mxu0
      %v2984 = vadd.f32 0.0, %v2983
      %v2985 = vpop.f32.mrb[0].mxu0
      %v2986 = vadd.f32 0.0, %v2985
      %v2987 = vpop.f32.mrb[0].mxu0
      %v2988 = vadd.f32 0.0, %v2987
      %v2989 = vpop.f32.mrb[0].mxu0
      %v2990 = vadd.f32 0.0, %v2989
      %2991 = vmatprep.mubr.bf16.mxu0 %v796
      %2992 = vmatmul.mubr.bf16.gmra.mrb[0].mxu0 %v795
      %v2993 = vpop.f32.mrb[0].mxu0
      %v2994 = vadd.f32 0.0, %v2993
      %v2995 = vpop.f32.mrb[0].mxu0
      %v2996 = vadd.f32 0.0, %v2995
      %v2997 = vpop.f32.mrb[0].mxu0
      %v2998 = vadd.f32 0.0, %v2997
      %v2999 = vpop.f32.mrb[0].mxu0
      %v3000 = vadd.f32 0.0, %v2999
      %3001 = vmatprep.mubr.bf16.mxu0 %v800
      %3002 = vmatmul.mubr.bf16.gmra.mrb[0].mxu0 %v799
      %v3003 = vpop.f32.mrb[0].mxu0
      %v3004 = vadd.f32 0.0, %v3003
      %v3005 = vpop.f32.mrb[0].mxu0
      %v3006 = vadd.f32 0.0, %v3005
      %v3007 = vpop.f32.mrb[0].mxu0
      %v3008 = vadd.f32 0.0, %v3007
      %v3009 = vpop.f32.mrb[0].mxu0
      %v3010 = vadd.f32 0.0, %v3009
      %3011 = vmatprep.mubr.bf16.mxu0 %v804
      %3012 = vmatmul.mubr.bf16.gmra.mrb[0].mxu0 %v803
      %v3013 = vpop.f32.mrb[0].mxu0
      %v3014 = vadd.f32 0.0, %v3013
      %v3015 = vpop.f32.mrb[0].mxu0
      %v3016 = vadd.f32 0.0, %v3015
      %v3017 = vpop.f32.mrb[0].mxu0
      %v3018 = vadd.f32 0.0, %v3017
      %v3019 = vpop.f32.mrb[0].mxu0
      %v3020 = vadd.f32 0.0, %v3019
      %3021 = vdwg.mxu0
      %3022 = vmatprep.subr.bf16.mxu0 %v2316
      %3023 = vmatpush1.bf16.msra.mxu0 %v2315
      %3024 = vmatprep.subr.bf16.mxu0 %v2329
      %3025 = vmatpush1.bf16.msra.mxu0 %v2328
      %3026 = vmatprep.subr.bf16.mxu0 %v2342
      %3027 = vmatpush1.bf16.msra.mxu0 %v2341
      %3028 = vmatprep.subr.bf16.mxu0 %v2355
      %3029 = vmatpush1.bf16.msra.mxu0 %v2354
      %3030 = vmatprep.subr.bf16.mxu0 %v2368
      %3031 = vmatpush1.bf16.msra.mxu0 %v2367
      %3032 = vmatprep.subr.bf16.mxu0 %v2381
      %3033 = vmatpush1.bf16.msra.mxu0 %v2380
      %3034 = vmatprep.subr.bf16.mxu0 %v2394
      %3035 = vmatpush1.bf16.msra.mxu0 %v2393
      %3036 = vmatprep.subr.bf16.mxu0 %v2407
      %3037 = vmatpush1.bf16.msra.mxu0 %v2406
      %3038 = vmatprep.subr.bf16.mxu0 %v2420
      %3039 = vmatpush1.bf16.msra.mxu0 %v2419
      %3040 = vmatprep.subr.bf16.mxu0 %v2433
      %3041 = vmatpush1.bf16.msra.mxu0 %v2432
      %3042 = vmatprep.subr.bf16.mxu0 %v2446
      %3043 = vmatpush1.bf16.msra.mxu0 %v2445
      %3044 = vmatprep.subr.bf16.mxu0 %v2459
      %3045 = vmatpush1.bf16.msra.mxu0 %v2458
      %3046 = vmatprep.subr.bf16.mxu0 %v2472
      %3047 = vmatpush1.bf16.msra.mxu0 %v2471
      %3048 = vmatprep.subr.bf16.mxu0 %v2485
      %3049 = vmatpush1.bf16.msra.mxu0 %v2484
      %3050 = vmatprep.subr.bf16.mxu0 %v2498
      %3051 = vmatpush1.bf16.msra.mxu0 %v2497
      %3052 = vmatprep.subr.bf16.mxu0 %v2511
      %3053 = vmatpush1.bf16.msra.mxu0 %v2510
      %3054 = vmatprep.mubr.bf16.mxu0 %v790
      %3055 = vmatmul.mubr.bf16.gmra.mrb[0].mxu0 %v789
      %v3056 = vpop.f32.mrb[0].mxu0
      %v3057 = vadd.f32 %v2974, %v3056
      %v3058 = vpop.f32.mrb[0].mxu0
      %v3059 = vadd.f32 %v2976, %v3058
      %v3060 = vpop.f32.mrb[0].mxu0
      %v3061 = vadd.f32 %v2978, %v3060
      %v3062 = vpop.f32.mrb[0].mxu0
      %v3063 = vadd.f32 %v2980, %v3062
      %3064 = vmatprep.mubr.bf16.mxu0 %v794
      %3065 = vmatmul.mubr.bf16.gmra.mrb[0].mxu0 %v793
      %v3066 = vpop.f32.mrb[0].mxu0
      %v3067 = vadd.f32 %v2984, %v3066
      %v3068 = vpop.f32.mrb[0].mxu0
      %v3069 = vadd.f32 %v2986, %v3068
      %v3070 = vpop.f32.mrb[0].mxu0
      %v3071 = vadd.f32 %v2988, %v3070
      %v3072 = vpop.f32.mrb[0].mxu0
      %v3073 = vadd.f32 %v2990, %v3072
      %3074 = vmatprep.mubr.bf16.mxu0 %v798
      %3075 = vmatmul.mubr.bf16.gmra.mrb[0].mxu0 %v797
      %v3076 = vpop.f32.mrb[0].mxu0
      %v3077 = vadd.f32 %v2994, %v3076
      %v3078 = vpop.f32.mrb[0].mxu0
      %v3079 = vadd.f32 %v2996, %v3078
      %v3080 = vpop.f32.mrb[0].mxu0
      %v3081 = vadd.f32 %v2998, %v3080
      %v3082 = vpop.f32.mrb[0].mxu0
      %v3083 = vadd.f32 %v3000, %v3082
      %3084 = vmatprep.mubr.bf16.mxu0 %v802
      %3085 = vmatmul.mubr.bf16.gmra.mrb[0].mxu0 %v801
      %v3086 = vpop.f32.mrb[0].mxu0
      %v3087 = vadd.f32 %v3004, %v3086
      %v3088 = vpop.f32.mrb[0].mxu0
      %v3089 = vadd.f32 %v3006, %v3088
      %v3090 = vpop.f32.mrb[0].mxu0
      %v3091 = vadd.f32 %v3008, %v3090
      %v3092 = vpop.f32.mrb[0].mxu0
      %v3093 = vadd.f32 %v3010, %v3092
      %3094 = vmatprep.mubr.bf16.mxu0 %v806
      %3095 = vmatmul.mubr.bf16.gmra.mrb[0].mxu0 %v805
      %v3096 = vpop.f32.mrb[0].mxu0
      %v3097 = vadd.f32 %v3014, %v3096
      %v3098 = vpop.f32.mrb[0].mxu0
      %v3099 = vadd.f32 %v3016, %v3098
      %v3100 = vpop.f32.mrb[0].mxu0
      %v3101 = vadd.f32 %v3018, %v3100
      %v3102 = vpop.f32.mrb[0].mxu0
      %v3103 = vadd.f32 %v3020, %v3102
      %3104 = vdwg.mxu0
      %3105 = vmatprep.subr.bf16.mxu0 %v2110
      %3106 = vmatpush1.bf16.msra.mxu0 %v2109
      %3107 = vmatprep.subr.bf16.mxu0 %v2123
      %3108 = vmatpush1.bf16.msra.mxu0 %v2122
      %3109 = vmatprep.subr.bf16.mxu0 %v2136
      %3110 = vmatpush1.bf16.msra.mxu0 %v2135
      %3111 = vmatprep.subr.bf16.mxu0 %v2149
      %3112 = vmatpush1.bf16.msra.mxu0 %v2148
      %3113 = vmatprep.subr.bf16.mxu0 %v2162
      %3114 = vmatpush1.bf16.msra.mxu0 %v2161
      %3115 = vmatprep.subr.bf16.mxu0 %v2175
      %3116 = vmatpush1.bf16.msra.mxu0 %v2174
      %3117 = vmatprep.subr.bf16.mxu0 %v2188
      %3118 = vmatpush1.bf16.msra.mxu0 %v2187
      %3119 = vmatprep.subr.bf16.mxu0 %v2201
      %3120 = vmatpush1.bf16.msra.mxu0 %v2200
      %3121 = vmatprep.subr.bf16.mxu0 %v2214
      %3122 = vmatpush1.bf16.msra.mxu0 %v2213
      %3123 = vmatprep.subr.bf16.mxu0 %v2227
      %3124 = vmatpush1.bf16.msra.mxu0 %v2226
      %3125 = vmatprep.subr.bf16.mxu0 %v2240
      %3126 = vmatpush1.bf16.msra.mxu0 %v2239
      %3127 = vmatprep.subr.bf16.mxu0 %v2253
      %3128 = vmatpush1.bf16.msra.mxu0 %v2252
      %3129 = vmatprep.subr.bf16.mxu0 %v2266
      %3130 = vmatpush1.bf16.msra.mxu0 %v2265
      %3131 = vmatprep.subr.bf16.mxu0 %v2279
      %3132 = vmatpush1.bf16.msra.mxu0 %v2278
      %3133 = vmatprep.subr.bf16.mxu0 %v2292
      %3134 = vmatpush1.bf16.msra.mxu0 %v2291
      %3135 = vmatprep.subr.bf16.mxu0 %v2305
      %3136 = vmatpush1.bf16.msra.mxu0 %v2304
      %3137 = vmatprep.mubr.bf16.mxu0 %v788
      %3138 = vmatmul.mubr.bf16.gmra.mrb[0].mxu0 %v787
      %v3139 = vpop.f32.mrb[0].mxu0
      %v3140 = vadd.f32 0.0, %v3139
      %v3141 = vpop.f32.mrb[0].mxu0
      %v3142 = vadd.f32 0.0, %v3141
      %v3143 = vpop.f32.mrb[0].mxu0
      %v3144 = vadd.f32 0.0, %v3143
      %v3145 = vpop.f32.mrb[0].mxu0
      %v3146 = vadd.f32 0.0, %v3145
      %3147 = vmatprep.mubr.bf16.mxu0 %v792
      %3148 = vmatmul.mubr.bf16.gmra.mrb[0].mxu0 %v791
      %v3149 = vpop.f32.mrb[0].mxu0
      %v3150 = vadd.f32 0.0, %v3149
      %v3151 = vpop.f32.mrb[0].mxu0
      %v3152 = vadd.f32 0.0, %v3151
      %v3153 = vpop.f32.mrb[0].mxu0
      %v3154 = vadd.f32 0.0, %v3153
      %v3155 = vpop.f32.mrb[0].mxu0
      %v3156 = vadd.f32 0.0, %v3155
      %3157 = vmatprep.mubr.bf16.mxu0 %v796
      %3158 = vmatmul.mubr.bf16.gmra.mrb[0].mxu0 %v795
      %v3159 = vpop.f32.mrb[0].mxu0
      %v3160 = vadd.f32 0.0, %v3159
      %v3161 = vpop.f32.mrb[0].mxu0
      %v3162 = vadd.f32 0.0, %v3161
      %v3163 = vpop.f32.mrb[0].mxu0
      %v3164 = vadd.f32 0.0, %v3163
      %v3165 = vpop.f32.mrb[0].mxu0
      %v3166 = vadd.f32 0.0, %v3165
      %3167 = vmatprep.mubr.bf16.mxu0 %v800
      %3168 = vmatmul.mubr.bf16.gmra.mrb[0].mxu0 %v799
      %v3169 = vpop.f32.mrb[0].mxu0
      %v3170 = vadd.f32 0.0, %v3169
      %v3171 = vpop.f32.mrb[0].mxu0
      %v3172 = vadd.f32 0.0, %v3171
      %v3173 = vpop.f32.mrb[0].mxu0
      %v3174 = vadd.f32 0.0, %v3173
      %v3175 = vpop.f32.mrb[0].mxu0
      %v3176 = vadd.f32 0.0, %v3175
      %3177 = vmatprep.mubr.bf16.mxu0 %v804
      %3178 = vmatmul.mubr.bf16.gmra.mrb[0].mxu0 %v803
      %v3179 = vpop.f32.mrb[0].mxu0
      %v3180 = vadd.f32 0.0, %v3179
      %v3181 = vpop.f32.mrb[0].mxu0
      %v3182 = vadd.f32 0.0, %v3181
      %v3183 = vpop.f32.mrb[0].mxu0
      %v3184 = vadd.f32 0.0, %v3183
      %v3185 = vpop.f32.mrb[0].mxu0
      %v3186 = vadd.f32 0.0, %v3185
      %3187 = vdwg.mxu0
      %3188 = vmatprep.subr.bf16.mxu0 %v2318
      %3189 = vmatpush1.bf16.msra.mxu0 %v2317
      %3190 = vmatprep.subr.bf16.mxu0 %v2331
      %3191 = vmatpush1.bf16.msra.mxu0 %v2330
      %3192 = vmatprep.subr.bf16.mxu0 %v2344
      %3193 = vmatpush1.bf16.msra.mxu0 %v2343
      %3194 = vmatprep.subr.bf16.mxu0 %v2357
      %3195 = vmatpush1.bf16.msra.mxu0 %v2356
      %3196 = vmatprep.subr.bf16.mxu0 %v2370
      %3197 = vmatpush1.bf16.msra.mxu0 %v2369
      %3198 = vmatprep.subr.bf16.mxu0 %v2383
      %3199 = vmatpush1.bf16.msra.mxu0 %v2382
      %3200 = vmatprep.subr.bf16.mxu0 %v2396
      %3201 = vmatpush1.bf16.msra.mxu0 %v2395
      %3202 = vmatprep.subr.bf16.mxu0 %v2409
      %3203 = vmatpush1.bf16.msra.mxu0 %v2408
      %3204 = vmatprep.subr.bf16.mxu0 %v2422
      %3205 = vmatpush1.bf16.msra.mxu0 %v2421
      %3206 = vmatprep.subr.bf16.mxu0 %v2435
      %3207 = vmatpush1.bf16.msra.mxu0 %v2434
      %3208 = vmatprep.subr.bf16.mxu0 %v2448
      %3209 = vmatpush1.bf16.msra.mxu0 %v2447
      %3210 = vmatprep.subr.bf16.mxu0 %v2461
      %3211 = vmatpush1.bf16.msra.mxu0 %v2460
      %3212 = vmatprep.subr.bf16.mxu0 %v2474
      %3213 = vmatpush1.bf16.msra.mxu0 %v2473
      %3214 = vmatprep.subr.bf16.mxu0 %v2487
      %3215 = vmatpush1.bf16.msra.mxu0 %v2486
      %3216 = vmatprep.subr.bf16.mxu0 %v2500
      %3217 = vmatpush1.bf16.msra.mxu0 %v2499
      %3218 = vmatprep.subr.bf16.mxu0 %v2513
      %3219 = vmatpush1.bf16.msra.mxu0 %v2512
      %3220 = vmatprep.mubr.bf16.mxu0 %v790
      %3221 = vmatmul.mubr.bf16.gmra.mrb[0].mxu0 %v789
      %v3222 = vpop.f32.mrb[0].mxu0
      %v3223 = vadd.f32 %v3140, %v3222
      %v3224 = vpop.f32.mrb[0].mxu0
      %v3225 = vadd.f32 %v3142, %v3224
      %v3226 = vpop.f32.mrb[0].mxu0
      %v3227 = vadd.f32 %v3144, %v3226
      %v3228 = vpop.f32.mrb[0].mxu0
      %v3229 = vadd.f32 %v3146, %v3228
      %3230 = vmatprep.mubr.bf16.mxu0 %v794
      %3231 = vmatmul.mubr.bf16.gmra.mrb[0].mxu0 %v793
      %v3232 = vpop.f32.mrb[0].mxu0
      %v3233 = vadd.f32 %v3150, %v3232
      %v3234 = vpop.f32.mrb[0].mxu0
      %v3235 = vadd.f32 %v3152, %v3234
      %v3236 = vpop.f32.mrb[0].mxu0
      %v3237 = vadd.f32 %v3154, %v3236
      %v3238 = vpop.f32.mrb[0].mxu0
      %v3239 = vadd.f32 %v3156, %v3238
      %3240 = vmatprep.mubr.bf16.mxu0 %v798
      %3241 = vmatmul.mubr.bf16.gmra.mrb[0].mxu0 %v797
      %v3242 = vpop.f32.mrb[0].mxu0
      %v3243 = vadd.f32 %v3160, %v3242
      %v3244 = vpop.f32.mrb[0].mxu0
      %v3245 = vadd.f32 %v3162, %v3244
      %v3246 = vpop.f32.mrb[0].mxu0
      %v3247 = vadd.f32 %v3164, %v3246
      %v3248 = vpop.f32.mrb[0].mxu0
      %v3249 = vadd.f32 %v3166, %v3248
      %3250 = vmatprep.mubr.bf16.mxu0 %v802
      %3251 = vmatmul.mubr.bf16.gmra.mrb[0].mxu0 %v801
      %v3252 = vpop.f32.mrb[0].mxu0
      %v3253 = vadd.f32 %v3170, %v3252
      %v3254 = vpop.f32.mrb[0].mxu0
      %v3255 = vadd.f32 %v3172, %v3254
      %v3256 = vpop.f32.mrb[0].mxu0
      %v3257 = vadd.f32 %v3174, %v3256
      %v3258 = vpop.f32.mrb[0].mxu0
      %v3259 = vadd.f32 %v3176, %v3258
      %3260 = vmatprep.mubr.bf16.mxu0 %v806
      %3261 = vmatmul.mubr.bf16.gmra.mrb[0].mxu0 %v805
      %v3262 = vpop.f32.mrb[0].mxu0
      %v3263 = vadd.f32 %v3180, %v3262
      %v3264 = vpop.f32.mrb[0].mxu0
      %v3265 = vadd.f32 %v3182, %v3264
      %v3266 = vpop.f32.mrb[0].mxu0
      %v3267 = vadd.f32 %v3184, %v3266
      %v3268 = vpop.f32.mrb[0].mxu0
      %v3269 = vadd.f32 %v3186, %v3268
      %3270 = vdwg.mxu0
      %3271 = vmatprep.subr.bf16.mxu0 %v2112
      %3272 = vmatpush1.bf16.msra.mxu0 %v2111
      %3273 = vmatprep.subr.bf16.mxu0 %v2125
      %3274 = vmatpush1.bf16.msra.mxu0 %v2124
      %3275 = vmatprep.subr.bf16.mxu0 %v2138
      %3276 = vmatpush1.bf16.msra.mxu0 %v2137
      %3277 = vmatprep.subr.bf16.mxu0 %v2151
      %3278 = vmatpush1.bf16.msra.mxu0 %v2150
      %3279 = vmatprep.subr.bf16.mxu0 %v2164
      %3280 = vmatpush1.bf16.msra.mxu0 %v2163
      %3281 = vmatprep.subr.bf16.mxu0 %v2177
      %3282 = vmatpush1.bf16.msra.mxu0 %v2176
      %3283 = vmatprep.subr.bf16.mxu0 %v2190
      %3284 = vmatpush1.bf16.msra.mxu0 %v2189
      %3285 = vmatprep.subr.bf16.mxu0 %v2203
      %3286 = vmatpush1.bf16.msra.mxu0 %v2202
      %3287 = vmatprep.subr.bf16.mxu0 %v2216
      %3288 = vmatpush1.bf16.msra.mxu0 %v2215
      %3289 = vmatprep.subr.bf16.mxu0 %v2229
      %3290 = vmatpush1.bf16.msra.mxu0 %v2228
      %3291 = vmatprep.subr.bf16.mxu0 %v2242
      %3292 = vmatpush1.bf16.msra.mxu0 %v2241
      %3293 = vmatprep.subr.bf16.mxu0 %v2255
      %3294 = vmatpush1.bf16.msra.mxu0 %v2254
      %3295 = vmatprep.subr.bf16.mxu0 %v2268
      %3296 = vmatpush1.bf16.msra.mxu0 %v2267
      %3297 = vmatprep.subr.bf16.mxu0 %v2281
      %3298 = vmatpush1.bf16.msra.mxu0 %v2280
      %3299 = vmatprep.subr.bf16.mxu0 %v2294
      %3300 = vmatpush1.bf16.msra.mxu0 %v2293
      %3301 = vmatprep.subr.bf16.mxu0 %v2307
      %3302 = vmatpush1.bf16.msra.mxu0 %v2306
      %3303 = vmatprep.mubr.bf16.mxu0 %v788
      %3304 = vmatmul.mubr.bf16.gmra.mrb[0].mxu0 %v787
      %v3305 = vpop.f32.mrb[0].mxu0
      %v3306 = vadd.f32 0.0, %v3305
      %v3307 = vpop.f32.mrb[0].mxu0
      %v3308 = vadd.f32 0.0, %v3307
      %v3309 = vpop.f32.mrb[0].mxu0
      %v3310 = vadd.f32 0.0, %v3309
      %v3311 = vpop.f32.mrb[0].mxu0
      %v3312 = vadd.f32 0.0, %v3311
      %3313 = vmatprep.mubr.bf16.mxu0 %v792
      %3314 = vmatmul.mubr.bf16.gmra.mrb[0].mxu0 %v791
      %v3315 = vpop.f32.mrb[0].mxu0
      %v3316 = vadd.f32 0.0, %v3315
      %v3317 = vpop.f32.mrb[0].mxu0
      %v3318 = vadd.f32 0.0, %v3317
      %v3319 = vpop.f32.mrb[0].mxu0
      %v3320 = vadd.f32 0.0, %v3319
      %v3321 = vpop.f32.mrb[0].mxu0
      %v3322 = vadd.f32 0.0, %v3321
      %3323 = vmatprep.mubr.bf16.mxu0 %v796
      %3324 = vmatmul.mubr.bf16.gmra.mrb[0].mxu0 %v795
      %v3325 = vpop.f32.mrb[0].mxu0
      %v3326 = vadd.f32 0.0, %v3325
      %v3327 = vpop.f32.mrb[0].mxu0
      %v3328 = vadd.f32 0.0, %v3327
      %v3329 = vpop.f32.mrb[0].mxu0
      %v3330 = vadd.f32 0.0, %v3329
      %v3331 = vpop.f32.mrb[0].mxu0
      %v3332 = vadd.f32 0.0, %v3331
      %3333 = vmatprep.mubr.bf16.mxu0 %v800
      %3334 = vmatmul.mubr.bf16.gmra.mrb[0].mxu0 %v799
      %v3335 = vpop.f32.mrb[0].mxu0
      %v3336 = vadd.f32 0.0, %v3335
      %v3337 = vpop.f32.mrb[0].mxu0
      %v3338 = vadd.f32 0.0, %v3337
      %v3339 = vpop.f32.mrb[0].mxu0
      %v3340 = vadd.f32 0.0, %v3339
      %v3341 = vpop.f32.mrb[0].mxu0
      %v3342 = vadd.f32 0.0, %v3341
      %3343 = vmatprep.mubr.bf16.mxu0 %v804
      %3344 = vmatmul.mubr.bf16.gmra.mrb[0].mxu0 %v803
      %v3345 = vpop.f32.mrb[0].mxu0
      %v3346 = vadd.f32 0.0, %v3345
      %v3347 = vpop.f32.mrb[0].mxu0
      %v3348 = vadd.f32 0.0, %v3347
      %v3349 = vpop.f32.mrb[0].mxu0
      %v3350 = vadd.f32 0.0, %v3349
      %v3351 = vpop.f32.mrb[0].mxu0
      %v3352 = vadd.f32 0.0, %v3351
      %3353 = vdwg.mxu0
      %3354 = vmatprep.subr.bf16.mxu0 %v2320
      %3355 = vmatpush1.bf16.msra.mxu0 %v2319
      %3356 = vmatprep.subr.bf16.mxu0 %v2333
      %3357 = vmatpush1.bf16.msra.mxu0 %v2332
      %3358 = vmatprep.subr.bf16.mxu0 %v2346
      %3359 = vmatpush1.bf16.msra.mxu0 %v2345
      %3360 = vmatprep.subr.bf16.mxu0 %v2359
      %3361 = vmatpush1.bf16.msra.mxu0 %v2358
      %3362 = vmatprep.subr.bf16.mxu0 %v2372
      %3363 = vmatpush1.bf16.msra.mxu0 %v2371
      %3364 = vmatprep.subr.bf16.mxu0 %v2385
      %3365 = vmatpush1.bf16.msra.mxu0 %v2384
      %3366 = vmatprep.subr.bf16.mxu0 %v2398
      %3367 = vmatpush1.bf16.msra.mxu0 %v2397
      %3368 = vmatprep.subr.bf16.mxu0 %v2411
      %3369 = vmatpush1.bf16.msra.mxu0 %v2410
      %3370 = vmatprep.subr.bf16.mxu0 %v2424
      %3371 = vmatpush1.bf16.msra.mxu0 %v2423
      %3372 = vmatprep.subr.bf16.mxu0 %v2437
      %3373 = vmatpush1.bf16.msra.mxu0 %v2436
      %3374 = vmatprep.subr.bf16.mxu0 %v2450
      %3375 = vmatpush1.bf16.msra.mxu0 %v2449
      %3376 = vmatprep.subr.bf16.mxu0 %v2463
      %3377 = vmatpush1.bf16.msra.mxu0 %v2462
      %3378 = vmatprep.subr.bf16.mxu0 %v2476
      %3379 = vmatpush1.bf16.msra.mxu0 %v2475
      %3380 = vmatprep.subr.bf16.mxu0 %v2489
      %3381 = vmatpush1.bf16.msra.mxu0 %v2488
      %3382 = vmatprep.subr.bf16.mxu0 %v2502
      %3383 = vmatpush1.bf16.msra.mxu0 %v2501
      %3384 = vmatprep.subr.bf16.mxu0 %v2515
      %3385 = vmatpush1.bf16.msra.mxu0 %v2514
      %3386 = vmatprep.mubr.bf16.mxu0 %v790
      %3387 = vmatmul.mubr.bf16.gmra.mrb[0].mxu0 %v789
      %v3388 = vpop.f32.mrb[0].mxu0
      %v3389 = vadd.f32 %v3306, %v3388
      %v3390 = vpop.f32.mrb[0].mxu0
      %v3391 = vadd.f32 %v3308, %v3390
      %v3392 = vpop.f32.mrb[0].mxu0
      %v3393 = vadd.f32 %v3310, %v3392
      %v3394 = vpop.f32.mrb[0].mxu0
      %v3395 = vadd.f32 %v3312, %v3394
      %3396 = vmatprep.mubr.bf16.mxu0 %v794
      %3397 = vmatmul.mubr.bf16.gmra.mrb[0].mxu0 %v793
      %v3398 = vpop.f32.mrb[0].mxu0
      %v3399 = vadd.f32 %v3316, %v3398
      %v3400 = vpop.f32.mrb[0].mxu0
      %v3401 = vadd.f32 %v3318, %v3400
      %v3402 = vpop.f32.mrb[0].mxu0
      %v3403 = vadd.f32 %v3320, %v3402
      %v3404 = vpop.f32.mrb[0].mxu0
      %v3405 = vadd.f32 %v3322, %v3404
      %3406 = vmatprep.mubr.bf16.mxu0 %v798
      %3407 = vmatmul.mubr.bf16.gmra.mrb[0].mxu0 %v797
      %v3408 = vpop.f32.mrb[0].mxu0
      %v3409 = vadd.f32 %v3326, %v3408
      %v3410 = vpop.f32.mrb[0].mxu0
      %v3411 = vadd.f32 %v3328, %v3410
      %v3412 = vpop.f32.mrb[0].mxu0
      %v3413 = vadd.f32 %v3330, %v3412
      %v3414 = vpop.f32.mrb[0].mxu0
      %v3415 = vadd.f32 %v3332, %v3414
      %3416 = vmatprep.mubr.bf16.mxu0 %v802
      %3417 = vmatmul.mubr.bf16.gmra.mrb[0].mxu0 %v801
      %v3418 = vpop.f32.mrb[0].mxu0
      %v3419 = vadd.f32 %v3336, %v3418
      %v3420 = vpop.f32.mrb[0].mxu0
      %v3421 = vadd.f32 %v3338, %v3420
      %v3422 = vpop.f32.mrb[0].mxu0
      %v3423 = vadd.f32 %v3340, %v3422
      %v3424 = vpop.f32.mrb[0].mxu0
      %v3425 = vadd.f32 %v3342, %v3424
      %3426 = vmatprep.mubr.bf16.mxu0 %v806
      %3427 = vmatmul.mubr.bf16.gmra.mrb[0].mxu0 %v805
      %v3428 = vpop.f32.mrb[0].mxu0
      %v3429 = vadd.f32 %v3346, %v3428
      %v3430 = vpop.f32.mrb[0].mxu0
      %v3431 = vadd.f32 %v3348, %v3430
      %v3432 = vpop.f32.mrb[0].mxu0
      %v3433 = vadd.f32 %v3350, %v3432
      %v3434 = vpop.f32.mrb[0].mxu0
      %v3435 = vadd.f32 %v3352, %v3434
      %3436 = vdwg.mxu0
      %3437 = vmatprep.subr.bf16.mxu0 %v2114
      %3438 = vmatpush1.bf16.msra.mxu0 %v2113
      %3439 = vmatprep.subr.bf16.mxu0 %v2127
      %3440 = vmatpush1.bf16.msra.mxu0 %v2126
      %3441 = vmatprep.subr.bf16.mxu0 %v2140
      %3442 = vmatpush1.bf16.msra.mxu0 %v2139
      %3443 = vmatprep.subr.bf16.mxu0 %v2153
      %3444 = vmatpush1.bf16.msra.mxu0 %v2152
      %3445 = vmatprep.subr.bf16.mxu0 %v2166
      %3446 = vmatpush1.bf16.msra.mxu0 %v2165
      %3447 = vmatprep.subr.bf16.mxu0 %v2179
      %3448 = vmatpush1.bf16.msra.mxu0 %v2178
      %3449 = vmatprep.subr.bf16.mxu0 %v2192
      %3450 = vmatpush1.bf16.msra.mxu0 %v2191
      %3451 = vmatprep.subr.bf16.mxu0 %v2205
      %3452 = vmatpush1.bf16.msra.mxu0 %v2204
      %3453 = vmatprep.subr.bf16.mxu0 %v2218
      %3454 = vmatpush1.bf16.msra.mxu0 %v2217
      %3455 = vmatprep.subr.bf16.mxu0 %v2231
      %3456 = vmatpush1.bf16.msra.mxu0 %v2230
      %3457 = vmatprep.subr.bf16.mxu0 %v2244
      %3458 = vmatpush1.bf16.msra.mxu0 %v2243
      %3459 = vmatprep.subr.bf16.mxu0 %v2257
      %3460 = vmatpush1.bf16.msra.mxu0 %v2256
      %3461 = vmatprep.subr.bf16.mxu0 %v2270
      %3462 = vmatpush1.bf16.msra.mxu0 %v2269
      %3463 = vmatprep.subr.bf16.mxu0 %v2283
      %3464 = vmatpush1.bf16.msra.mxu0 %v2282
      %3465 = vmatprep.subr.bf16.mxu0 %v2296
      %3466 = vmatpush1.bf16.msra.mxu0 %v2295
      %3467 = vmatprep.subr.bf16.mxu0 %v2309
      %3468 = vmatpush1.bf16.msra.mxu0 %v2308
      %3469 = vmatprep.mubr.bf16.mxu0 %v788
      %3470 = vmatmul.mubr.bf16.gmra.mrb[0].mxu0 %v787
      %v3471 = vpop.f32.mrb[0].mxu0
      %v3472 = vadd.f32 0.0, %v3471
      %v3473 = vpop.f32.mrb[0].mxu0
      %v3474 = vadd.f32 0.0, %v3473
      %v3475 = vpop.f32.mrb[0].mxu0
      %v3476 = vadd.f32 0.0, %v3475
      %v3477 = vpop.f32.mrb[0].mxu0
      %v3478 = vadd.f32 0.0, %v3477
      %3479 = vmatprep.mubr.bf16.mxu0 %v792
      %3480 = vmatmul.mubr.bf16.gmra.mrb[0].mxu0 %v791
      %v3481 = vpop.f32.mrb[0].mxu0
      %v3482 = vadd.f32 0.0, %v3481
      %v3483 = vpop.f32.mrb[0].mxu0
      %v3484 = vadd.f32 0.0, %v3483
      %v3485 = vpop.f32.mrb[0].mxu0
      %v3486 = vadd.f32 0.0, %v3485
      %v3487 = vpop.f32.mrb[0].mxu0
      %v3488 = vadd.f32 0.0, %v3487
      %3489 = vmatprep.mubr.bf16.mxu0 %v796
      %3490 = vmatmul.mubr.bf16.gmra.mrb[0].mxu0 %v795
      %v3491 = vpop.f32.mrb[0].mxu0
      %v3492 = vadd.f32 0.0, %v3491
      %v3493 = vpop.f32.mrb[0].mxu0
      %v3494 = vadd.f32 0.0, %v3493
      %v3495 = vpop.f32.mrb[0].mxu0
      %v3496 = vadd.f32 0.0, %v3495
      %v3497 = vpop.f32.mrb[0].mxu0
      %v3498 = vadd.f32 0.0, %v3497
      %3499 = vmatprep.mubr.bf16.mxu0 %v800
      %3500 = vmatmul.mubr.bf16.gmra.mrb[0].mxu0 %v799
      %v3501 = vpop.f32.mrb[0].mxu0
      %v3502 = vadd.f32 0.0, %v3501
      %v3503 = vpop.f32.mrb[0].mxu0
      %v3504 = vadd.f32 0.0, %v3503
      %v3505 = vpop.f32.mrb[0].mxu0
      %v3506 = vadd.f32 0.0, %v3505
      %v3507 = vpop.f32.mrb[0].mxu0
      %v3508 = vadd.f32 0.0, %v3507
      %3509 = vmatprep.mubr.bf16.mxu0 %v804
      %3510 = vmatmul.mubr.bf16.gmra.mrb[0].mxu0 %v803
      %v3511 = vpop.f32.mrb[0].mxu0
      %v3512 = vadd.f32 0.0, %v3511
      %v3513 = vpop.f32.mrb[0].mxu0
      %v3514 = vadd.f32 0.0, %v3513
      %v3515 = vpop.f32.mrb[0].mxu0
      %v3516 = vadd.f32 0.0, %v3515
      %v3517 = vpop.f32.mrb[0].mxu0
      %v3518 = vadd.f32 0.0, %v3517
      %3519 = vdwg.mxu0
      %3520 = vmatprep.subr.bf16.mxu0 %v2322
      %3521 = vmatpush1.bf16.msra.mxu0 %v2321
      %3522 = vmatprep.subr.bf16.mxu0 %v2335
      %3523 = vmatpush1.bf16.msra.mxu0 %v2334
      %3524 = vmatprep.subr.bf16.mxu0 %v2348
      %3525 = vmatpush1.bf16.msra.mxu0 %v2347
      %3526 = vmatprep.subr.bf16.mxu0 %v2361
      %3527 = vmatpush1.bf16.msra.mxu0 %v2360
      %3528 = vmatprep.subr.bf16.mxu0 %v2374
      %3529 = vmatpush1.bf16.msra.mxu0 %v2373
      %3530 = vmatprep.subr.bf16.mxu0 %v2387
      %3531 = vmatpush1.bf16.msra.mxu0 %v2386
      %3532 = vmatprep.subr.bf16.mxu0 %v2400
      %3533 = vmatpush1.bf16.msra.mxu0 %v2399
      %3534 = vmatprep.subr.bf16.mxu0 %v2413
      %3535 = vmatpush1.bf16.msra.mxu0 %v2412
      %3536 = vmatprep.subr.bf16.mxu0 %v2426
      %3537 = vmatpush1.bf16.msra.mxu0 %v2425
      %3538 = vmatprep.subr.bf16.mxu0 %v2439
      %3539 = vmatpush1.bf16.msra.mxu0 %v2438
      %3540 = vmatprep.subr.bf16.mxu0 %v2452
      %3541 = vmatpush1.bf16.msra.mxu0 %v2451
      %3542 = vmatprep.subr.bf16.mxu0 %v2465
      %3543 = vmatpush1.bf16.msra.mxu0 %v2464
      %3544 = vmatprep.subr.bf16.mxu0 %v2478
      %3545 = vmatpush1.bf16.msra.mxu0 %v2477
      %3546 = vmatprep.subr.bf16.mxu0 %v2491
      %3547 = vmatpush1.bf16.msra.mxu0 %v2490
      %3548 = vmatprep.subr.bf16.mxu0 %v2504
      %3549 = vmatpush1.bf16.msra.mxu0 %v2503
      %3550 = vmatprep.subr.bf16.mxu0 %v2517
      %3551 = vmatpush1.bf16.msra.mxu0 %v2516
      %3552 = vmatprep.mubr.bf16.mxu0 %v790
      %3553 = vmatmul.mubr.bf16.gmra.mrb[0].mxu0 %v789
      %v3554 = vpop.f32.mrb[0].mxu0
      %v3555 = vadd.f32 %v3472, %v3554
      %v3556 = vpop.f32.mrb[0].mxu0
      %v3557 = vadd.f32 %v3474, %v3556
      %v3558 = vpop.f32.mrb[0].mxu0
      %v3559 = vadd.f32 %v3476, %v3558
      %v3560 = vpop.f32.mrb[0].mxu0
      %v3561 = vadd.f32 %v3478, %v3560
      %3562 = vmatprep.mubr.bf16.mxu0 %v794
      %3563 = vmatmul.mubr.bf16.gmra.mrb[0].mxu0 %v793
      %v3564 = vpop.f32.mrb[0].mxu0
      %v3565 = vadd.f32 %v3482, %v3564
      %v3566 = vpop.f32.mrb[0].mxu0
      %v3567 = vadd.f32 %v3484, %v3566
      %v3568 = vpop.f32.mrb[0].mxu0
      %v3569 = vadd.f32 %v3486, %v3568
      %v3570 = vpop.f32.mrb[0].mxu0
      %v3571 = vadd.f32 %v3488, %v3570
      %3572 = vmatprep.mubr.bf16.mxu0 %v798
      %3573 = vmatmul.mubr.bf16.gmra.mrb[0].mxu0 %v797
      %v3574 = vpop.f32.mrb[0].mxu0
      %v3575 = vadd.f32 %v3492, %v3574
      %v3576 = vpop.f32.mrb[0].mxu0
      %v3577 = vadd.f32 %v3494, %v3576
      %v3578 = vpop.f32.mrb[0].mxu0
      %v3579 = vadd.f32 %v3496, %v3578
      %v3580 = vpop.f32.mrb[0].mxu0
      %v3581 = vadd.f32 %v3498, %v3580
      %3582 = vmatprep.mubr.bf16.mxu0 %v802
      %3583 = vmatmul.mubr.bf16.gmra.mrb[0].mxu0 %v801
      %v3584 = vpop.f32.mrb[0].mxu0
      %v3585 = vadd.f32 %v3502, %v3584
      %v3586 = vpop.f32.mrb[0].mxu0
      %v3587 = vadd.f32 %v3504, %v3586
      %v3588 = vpop.f32.mrb[0].mxu0
      %v3589 = vadd.f32 %v3506, %v3588
      %v3590 = vpop.f32.mrb[0].mxu0
      %v3591 = vadd.f32 %v3508, %v3590
      %3592 = vmatprep.mubr.bf16.mxu0 %v806
      %3593 = vmatmul.mubr.bf16.gmra.mrb[0].mxu0 %v805
      %v3594 = vpop.f32.mrb[0].mxu0
      %v3595 = vadd.f32 %v3512, %v3594
      %v3596 = vpop.f32.mrb[0].mxu0
      %v3597 = vadd.f32 %v3514, %v3596
      %v3598 = vpop.f32.mrb[0].mxu0
      %v3599 = vadd.f32 %v3516, %v3598
      %v3600 = vpop.f32.mrb[0].mxu0
      %v3601 = vadd.f32 %v3518, %v3600
      %3602 = vdwg.mxu0
      %3603 = vmatprep.subr.bf16.mxu0 %v2116
      %3604 = vmatpush1.bf16.msra.mxu0 %v2115
      %3605 = vmatprep.subr.bf16.mxu0 %v2129
      %3606 = vmatpush1.bf16.msra.mxu0 %v2128
      %3607 = vmatprep.subr.bf16.mxu0 %v2142
      %3608 = vmatpush1.bf16.msra.mxu0 %v2141
      %3609 = vmatprep.subr.bf16.mxu0 %v2155
      %3610 = vmatpush1.bf16.msra.mxu0 %v2154
      %3611 = vmatprep.subr.bf16.mxu0 %v2168
      %3612 = vmatpush1.bf16.msra.mxu0 %v2167
      %3613 = vmatprep.subr.bf16.mxu0 %v2181
      %3614 = vmatpush1.bf16.msra.mxu0 %v2180
      %3615 = vmatprep.subr.bf16.mxu0 %v2194
      %3616 = vmatpush1.bf16.msra.mxu0 %v2193
      %3617 = vmatprep.subr.bf16.mxu0 %v2207
      %3618 = vmatpush1.bf16.msra.mxu0 %v2206
      %3619 = vmatprep.subr.bf16.mxu0 %v2220
      %3620 = vmatpush1.bf16.msra.mxu0 %v2219
      %3621 = vmatprep.subr.bf16.mxu0 %v2233
      %3622 = vmatpush1.bf16.msra.mxu0 %v2232
      %3623 = vmatprep.subr.bf16.mxu0 %v2246
      %3624 = vmatpush1.bf16.msra.mxu0 %v2245
      %3625 = vmatprep.subr.bf16.mxu0 %v2259
      %3626 = vmatpush1.bf16.msra.mxu0 %v2258
      %3627 = vmatprep.subr.bf16.mxu0 %v2272
      %3628 = vmatpush1.bf16.msra.mxu0 %v2271
      %3629 = vmatprep.subr.bf16.mxu0 %v2285
      %3630 = vmatpush1.bf16.msra.mxu0 %v2284
      %3631 = vmatprep.subr.bf16.mxu0 %v2298
      %3632 = vmatpush1.bf16.msra.mxu0 %v2297
      %3633 = vmatprep.subr.bf16.mxu0 %v2311
      %3634 = vmatpush1.bf16.msra.mxu0 %v2310
      %3635 = vmatprep.mubr.bf16.mxu0 %v788
      %3636 = vmatmul.mubr.bf16.gmra.mrb[0].mxu0 %v787
      %v3637 = vpop.f32.mrb[0].mxu0
      %v3638 = vadd.f32 0.0, %v3637
      %v3639 = vpop.f32.mrb[0].mxu0
      %v3640 = vadd.f32 0.0, %v3639
      %v3641 = vpop.f32.mrb[0].mxu0
      %v3642 = vadd.f32 0.0, %v3641
      %v3643 = vpop.f32.mrb[0].mxu0
      %v3644 = vadd.f32 0.0, %v3643
      %3645 = vmatprep.mubr.bf16.mxu0 %v792
      %3646 = vmatmul.mubr.bf16.gmra.mrb[0].mxu0 %v791
      %v3647 = vpop.f32.mrb[0].mxu0
      %v3648 = vadd.f32 0.0, %v3647
      %v3649 = vpop.f32.mrb[0].mxu0
      %v3650 = vadd.f32 0.0, %v3649
      %v3651 = vpop.f32.mrb[0].mxu0
      %v3652 = vadd.f32 0.0, %v3651
      %v3653 = vpop.f32.mrb[0].mxu0
      %v3654 = vadd.f32 0.0, %v3653
      %3655 = vmatprep.mubr.bf16.mxu0 %v796
      %3656 = vmatmul.mubr.bf16.gmra.mrb[0].mxu0 %v795
      %v3657 = vpop.f32.mrb[0].mxu0
      %v3658 = vadd.f32 0.0, %v3657
      %v3659 = vpop.f32.mrb[0].mxu0
      %v3660 = vadd.f32 0.0, %v3659
      %v3661 = vpop.f32.mrb[0].mxu0
      %v3662 = vadd.f32 0.0, %v3661
      %v3663 = vpop.f32.mrb[0].mxu0
      %v3664 = vadd.f32 0.0, %v3663
      %3665 = vmatprep.mubr.bf16.mxu0 %v800
      %3666 = vmatmul.mubr.bf16.gmra.mrb[0].mxu0 %v799
      %v3667 = vpop.f32.mrb[0].mxu0
      %v3668 = vadd.f32 0.0, %v3667
      %v3669 = vpop.f32.mrb[0].mxu0
      %v3670 = vadd.f32 0.0, %v3669
      %v3671 = vpop.f32.mrb[0].mxu0
      %v3672 = vadd.f32 0.0, %v3671
      %v3673 = vpop.f32.mrb[0].mxu0
      %v3674 = vadd.f32 0.0, %v3673
      %3675 = vmatprep.mubr.bf16.mxu0 %v804
      %3676 = vmatmul.mubr.bf16.gmra.mrb[0].mxu0 %v803
      %v3677 = vpop.f32.mrb[0].mxu0
      %v3678 = vadd.f32 0.0, %v3677
      %v3679 = vpop.f32.mrb[0].mxu0
      %v3680 = vadd.f32 0.0, %v3679
      %v3681 = vpop.f32.mrb[0].mxu0
      %v3682 = vadd.f32 0.0, %v3681
      %v3683 = vpop.f32.mrb[0].mxu0
      %v3684 = vadd.f32 0.0, %v3683
      %3685 = vdwg.mxu0
      %3686 = vmatprep.subr.bf16.mxu0 %v2324
      %3687 = vmatpush1.bf16.msra.mxu0 %v2323
      %3688 = vmatprep.subr.bf16.mxu0 %v2337
      %3689 = vmatpush1.bf16.msra.mxu0 %v2336
      %3690 = vmatprep.subr.bf16.mxu0 %v2350
      %3691 = vmatpush1.bf16.msra.mxu0 %v2349
      %3692 = vmatprep.subr.bf16.mxu0 %v2363
      %3693 = vmatpush1.bf16.msra.mxu0 %v2362
      %3694 = vmatprep.subr.bf16.mxu0 %v2376
      %3695 = vmatpush1.bf16.msra.mxu0 %v2375
      %3696 = vmatprep.subr.bf16.mxu0 %v2389
      %3697 = vmatpush1.bf16.msra.mxu0 %v2388
      %3698 = vmatprep.subr.bf16.mxu0 %v2402
      %3699 = vmatpush1.bf16.msra.mxu0 %v2401
      %3700 = vmatprep.subr.bf16.mxu0 %v2415
      %3701 = vmatpush1.bf16.msra.mxu0 %v2414
      %3702 = vmatprep.subr.bf16.mxu0 %v2428
      %3703 = vmatpush1.bf16.msra.mxu0 %v2427
      %3704 = vmatprep.subr.bf16.mxu0 %v2441
      %3705 = vmatpush1.bf16.msra.mxu0 %v2440
      %3706 = vmatprep.subr.bf16.mxu0 %v2454
      %3707 = vmatpush1.bf16.msra.mxu0 %v2453
      %3708 = vmatprep.subr.bf16.mxu0 %v2467
      %3709 = vmatpush1.bf16.msra.mxu0 %v2466
      %3710 = vmatprep.subr.bf16.mxu0 %v2480
      %3711 = vmatpush1.bf16.msra.mxu0 %v2479
      %3712 = vmatprep.subr.bf16.mxu0 %v2493
      %3713 = vmatpush1.bf16.msra.mxu0 %v2492
      %3714 = vmatprep.subr.bf16.mxu0 %v2506
      %3715 = vmatpush1.bf16.msra.mxu0 %v2505
      %3716 = vmatprep.subr.bf16.mxu0 %v2519
      %3717 = vmatpush1.bf16.msra.mxu0 %v2518
      %3718 = vmatprep.mubr.bf16.mxu0 %v790
      %3719 = vmatmul.mubr.bf16.gmra.mrb[0].mxu0 %v789
      %v3720 = vpop.f32.mrb[0].mxu0
      %v3721 = vadd.f32 %v3638, %v3720
      %v3722 = vpop.f32.mrb[0].mxu0
      %v3723 = vadd.f32 %v3640, %v3722
      %v3724 = vpop.f32.mrb[0].mxu0
      %v3725 = vadd.f32 %v3642, %v3724
      %v3726 = vpop.f32.mrb[0].mxu0
      %v3727 = vadd.f32 %v3644, %v3726
      %3728 = vmatprep.mubr.bf16.mxu0 %v794
      %3729 = vmatmul.mubr.bf16.gmra.mrb[0].mxu0 %v793
      %v3730 = vpop.f32.mrb[0].mxu0
      %v3731 = vadd.f32 %v3648, %v3730
      %v3732 = vpop.f32.mrb[0].mxu0
      %v3733 = vadd.f32 %v3650, %v3732
      %v3734 = vpop.f32.mrb[0].mxu0
      %v3735 = vadd.f32 %v3652, %v3734
      %v3736 = vpop.f32.mrb[0].mxu0
      %v3737 = vadd.f32 %v3654, %v3736
      %3738 = vmatprep.mubr.bf16.mxu0 %v798
      %3739 = vmatmul.mubr.bf16.gmra.mrb[0].mxu0 %v797
      %v3740 = vpop.f32.mrb[0].mxu0
      %v3741 = vadd.f32 %v3658, %v3740
      %v3742 = vpop.f32.mrb[0].mxu0
      %v3743 = vadd.f32 %v3660, %v3742
      %v3744 = vpop.f32.mrb[0].mxu0
      %v3745 = vadd.f32 %v3662, %v3744
      %v3746 = vpop.f32.mrb[0].mxu0
      %v3747 = vadd.f32 %v3664, %v3746
      %3748 = vmatprep.mubr.bf16.mxu0 %v802
      %3749 = vmatmul.mubr.bf16.gmra.mrb[0].mxu0 %v801
      %v3750 = vpop.f32.mrb[0].mxu0
      %v3751 = vadd.f32 %v3668, %v3750
      %v3752 = vpop.f32.mrb[0].mxu0
      %v3753 = vadd.f32 %v3670, %v3752
      %v3754 = vpop.f32.mrb[0].mxu0
      %v3755 = vadd.f32 %v3672, %v3754
      %v3756 = vpop.f32.mrb[0].mxu0
      %v3757 = vadd.f32 %v3674, %v3756
      %3758 = vmatprep.mubr.bf16.mxu0 %v806
      %3759 = vmatmul.mubr.bf16.gmra.mrb[0].mxu0 %v805
      %v3760 = vpop.f32.mrb[0].mxu0
      %v3761 = vadd.f32 %v3678, %v3760
      %v3762 = vpop.f32.mrb[0].mxu0
      %v3763 = vadd.f32 %v3680, %v3762
      %v3764 = vpop.f32.mrb[0].mxu0
      %v3765 = vadd.f32 %v3682, %v3764
      %v3766 = vpop.f32.mrb[0].mxu0
      %v3767 = vadd.f32 %v3684, %v3766
      %3768 = vdwg.mxu0
      %3769 = vmatprep.subr.bf16.mxu0 %v2118
      %3770 = vmatpush1.bf16.msra.mxu0 %v2117
      %3771 = vmatprep.subr.bf16.mxu0 %v2131
      %3772 = vmatpush1.bf16.msra.mxu0 %v2130
      %3773 = vmatprep.subr.bf16.mxu0 %v2144
      %3774 = vmatpush1.bf16.msra.mxu0 %v2143
      %3775 = vmatprep.subr.bf16.mxu0 %v2157
      %3776 = vmatpush1.bf16.msra.mxu0 %v2156
      %3777 = vmatprep.subr.bf16.mxu0 %v2170
      %3778 = vmatpush1.bf16.msra.mxu0 %v2169
      %3779 = vmatprep.subr.bf16.mxu0 %v2183
      %3780 = vmatpush1.bf16.msra.mxu0 %v2182
      %3781 = vmatprep.subr.bf16.mxu0 %v2196
      %3782 = vmatpush1.bf16.msra.mxu0 %v2195
      %3783 = vmatprep.subr.bf16.mxu0 %v2209
      %3784 = vmatpush1.bf16.msra.mxu0 %v2208
      %3785 = vmatprep.subr.bf16.mxu0 %v2222
      %3786 = vmatpush1.bf16.msra.mxu0 %v2221
      %3787 = vmatprep.subr.bf16.mxu0 %v2235
      %3788 = vmatpush1.bf16.msra.mxu0 %v2234
      %3789 = vmatprep.subr.bf16.mxu0 %v2248
      %3790 = vmatpush1.bf16.msra.mxu0 %v2247
      %3791 = vmatprep.subr.bf16.mxu0 %v2261
      %3792 = vmatpush1.bf16.msra.mxu0 %v2260
      %3793 = vmatprep.subr.bf16.mxu0 %v2274
      %3794 = vmatpush1.bf16.msra.mxu0 %v2273
      %3795 = vmatprep.subr.bf16.mxu0 %v2287
      %3796 = vmatpush1.bf16.msra.mxu0 %v2286
      %3797 = vmatprep.subr.bf16.mxu0 %v2300
      %3798 = vmatpush1.bf16.msra.mxu0 %v2299
      %3799 = vmatprep.subr.bf16.mxu0 %v2313
      %3800 = vmatpush1.bf16.msra.mxu0 %v2312
      %3801 = vmatprep.mubr.bf16.mxu0 %v788
      %3802 = vmatmul.mubr.bf16.gmra.mrb[0].mxu0 %v787
      %v3803 = vpop.f32.mrb[0].mxu0
      %v3804 = vadd.f32 0.0, %v3803
      %v3805 = vpop.f32.mrb[0].mxu0
      %v3806 = vadd.f32 0.0, %v3805
      %v3807 = vpop.f32.mrb[0].mxu0
      %v3808 = vadd.f32 0.0, %v3807
      %v3809 = vpop.f32.mrb[0].mxu0
      %v3810 = vadd.f32 0.0, %v3809
      %3811 = vmatprep.mubr.bf16.mxu0 %v792
      %3812 = vmatmul.mubr.bf16.gmra.mrb[0].mxu0 %v791
      %v3813 = vpop.f32.mrb[0].mxu0
      %v3814 = vadd.f32 0.0, %v3813
      %v3815 = vpop.f32.mrb[0].mxu0
      %v3816 = vadd.f32 0.0, %v3815
      %v3817 = vpop.f32.mrb[0].mxu0
      %v3818 = vadd.f32 0.0, %v3817
      %v3819 = vpop.f32.mrb[0].mxu0
      %v3820 = vadd.f32 0.0, %v3819
      %3821 = vmatprep.mubr.bf16.mxu0 %v796
      %3822 = vmatmul.mubr.bf16.gmra.mrb[0].mxu0 %v795
      %v3823 = vpop.f32.mrb[0].mxu0
      %v3824 = vadd.f32 0.0, %v3823
      %v3825 = vpop.f32.mrb[0].mxu0
      %v3826 = vadd.f32 0.0, %v3825
      %v3827 = vpop.f32.mrb[0].mxu0
      %v3828 = vadd.f32 0.0, %v3827
      %v3829 = vpop.f32.mrb[0].mxu0
      %v3830 = vadd.f32 0.0, %v3829
      %3831 = vmatprep.mubr.bf16.mxu0 %v800
      %3832 = vmatmul.mubr.bf16.gmra.mrb[0].mxu0 %v799
      %v3833 = vpop.f32.mrb[0].mxu0
      %v3834 = vadd.f32 0.0, %v3833
      %v3835 = vpop.f32.mrb[0].mxu0
      %v3836 = vadd.f32 0.0, %v3835
      %v3837 = vpop.f32.mrb[0].mxu0
      %v3838 = vadd.f32 0.0, %v3837
      %v3839 = vpop.f32.mrb[0].mxu0
      %v3840 = vadd.f32 0.0, %v3839
      %3841 = vmatprep.mubr.bf16.mxu0 %v804
      %3842 = vmatmul.mubr.bf16.gmra.mrb[0].mxu0 %v803
      %v3843 = vpop.f32.mrb[0].mxu0
      %v3844 = vadd.f32 0.0, %v3843
      %v3845 = vpop.f32.mrb[0].mxu0
      %v3846 = vadd.f32 0.0, %v3845
      %v3847 = vpop.f32.mrb[0].mxu0
      %v3848 = vadd.f32 0.0, %v3847
      %v3849 = vpop.f32.mrb[0].mxu0
      %v3850 = vadd.f32 0.0, %v3849
      %3851 = vdwg.mxu0
      %3852 = vmatprep.subr.bf16.mxu0 %v2326
      %3853 = vmatpush1.bf16.msra.mxu0 %v2325
      %3854 = vmatprep.subr.bf16.mxu0 %v2339
      %3855 = vmatpush1.bf16.msra.mxu0 %v2338
      %3856 = vmatprep.subr.bf16.mxu0 %v2352
      %3857 = vmatpush1.bf16.msra.mxu0 %v2351
      %3858 = vmatprep.subr.bf16.mxu0 %v2365
      %3859 = vmatpush1.bf16.msra.mxu0 %v2364
      %3860 = vmatprep.subr.bf16.mxu0 %v2378
      %3861 = vmatpush1.bf16.msra.mxu0 %v2377
      %3862 = vmatprep.subr.bf16.mxu0 %v2391
      %3863 = vmatpush1.bf16.msra.mxu0 %v2390
      %3864 = vmatprep.subr.bf16.mxu0 %v2404
      %3865 = vmatpush1.bf16.msra.mxu0 %v2403
      %3866 = vmatprep.subr.bf16.mxu0 %v2417
      %3867 = vmatpush1.bf16.msra.mxu0 %v2416
      %3868 = vmatprep.subr.bf16.mxu0 %v2430
      %3869 = vmatpush1.bf16.msra.mxu0 %v2429
      %3870 = vmatprep.subr.bf16.mxu0 %v2443
      %3871 = vmatpush1.bf16.msra.mxu0 %v2442
      %3872 = vmatprep.subr.bf16.mxu0 %v2456
      %3873 = vmatpush1.bf16.msra.mxu0 %v2455
      %3874 = vmatprep.subr.bf16.mxu0 %v2469
      %3875 = vmatpush1.bf16.msra.mxu0 %v2468
      %3876 = vmatprep.subr.bf16.mxu0 %v2482
      %3877 = vmatpush1.bf16.msra.mxu0 %v2481
      %3878 = vmatprep.subr.bf16.mxu0 %v2495
      %3879 = vmatpush1.bf16.msra.mxu0 %v2494
      %3880 = vmatprep.subr.bf16.mxu0 %v2508
      %3881 = vmatpush1.bf16.msra.mxu0 %v2507
      %3882 = vmatprep.subr.bf16.mxu0 %v2521
      %3883 = vmatpush1.bf16.msra.mxu0 %v2520
      %3884 = vmatprep.mubr.bf16.mxu0 %v790
      %3885 = vmatmul.mubr.bf16.gmra.mrb[0].mxu0 %v789
      %v3886 = vpop.f32.mrb[0].mxu0
      %v3887 = vadd.f32 %v3804, %v3886
      %v3888 = vpop.f32.mrb[0].mxu0
      %v3889 = vadd.f32 %v3806, %v3888
      %v3890 = vpop.f32.mrb[0].mxu0
      %v3891 = vadd.f32 %v3808, %v3890
      %v3892 = vpop.f32.mrb[0].mxu0
      %v3893 = vadd.f32 %v3810, %v3892
      %3894 = vmatprep.mubr.bf16.mxu0 %v794
      %3895 = vmatmul.mubr.bf16.gmra.mrb[0].mxu0 %v793
      %v3896 = vpop.f32.mrb[0].mxu0
      %v3897 = vadd.f32 %v3814, %v3896
      %v3898 = vpop.f32.mrb[0].mxu0
      %v3899 = vadd.f32 %v3816, %v3898
      %v3900 = vpop.f32.mrb[0].mxu0
      %v3901 = vadd.f32 %v3818, %v3900
      %v3902 = vpop.f32.mrb[0].mxu0
      %v3903 = vadd.f32 %v3820, %v3902
      %3904 = vmatprep.mubr.bf16.mxu0 %v798
      %3905 = vmatmul.mubr.bf16.gmra.mrb[0].mxu0 %v797
      %v3906 = vpop.f32.mrb[0].mxu0
      %v3907 = vadd.f32 %v3824, %v3906
      %v3908 = vpop.f32.mrb[0].mxu0
      %v3909 = vadd.f32 %v3826, %v3908
      %v3910 = vpop.f32.mrb[0].mxu0
      %v3911 = vadd.f32 %v3828, %v3910
      %v3912 = vpop.f32.mrb[0].mxu0
      %v3913 = vadd.f32 %v3830, %v3912
      %3914 = vmatprep.mubr.bf16.mxu0 %v802
      %3915 = vmatmul.mubr.bf16.gmra.mrb[0].mxu0 %v801
      %v3916 = vpop.f32.mrb[0].mxu0
      %v3917 = vadd.f32 %v3834, %v3916
      %v3918 = vpop.f32.mrb[0].mxu0
      %v3919 = vadd.f32 %v3836, %v3918
      %v3920 = vpop.f32.mrb[0].mxu0
      %v3921 = vadd.f32 %v3838, %v3920
      %v3922 = vpop.f32.mrb[0].mxu0
      %v3923 = vadd.f32 %v3840, %v3922
      %3924 = vmatprep.mubr.bf16.mxu0 %v806
      %3925 = vmatmul.mubr.bf16.gmra.mrb[0].mxu0 %v805
      %v3926 = vpop.f32.mrb[0].mxu0
      %v3927 = vadd.f32 %v3844, %v3926
      %v3928 = vpop.f32.mrb[0].mxu0
      %v3929 = vadd.f32 %v3846, %v3928
      %v3930 = vpop.f32.mrb[0].mxu0
      %v3931 = vadd.f32 %v3848, %v3930
      %v3932 = vpop.f32.mrb[0].mxu0
      %v3933 = vadd.f32 %v3850, %v3932
      %3934 = vdwg.mxu0
      %3935 = vmatprep.subr.bf16.mxu0 0
      %3936 = vmatpush1.bf16.msra.mxu0 %v2119
      %3937 = vmatprep.subr.bf16.mxu0 0
      %3938 = vmatpush1.bf16.msra.mxu0 %v2132
      %3939 = vmatprep.subr.bf16.mxu0 0
      %3940 = vmatpush1.bf16.msra.mxu0 %v2145
      %3941 = vmatprep.subr.bf16.mxu0 0
      %3942 = vmatpush1.bf16.msra.mxu0 %v2158
      %3943 = vmatprep.subr.bf16.mxu0 0
      %3944 = vmatpush1.bf16.msra.mxu0 %v2171
      %3945 = vmatprep.subr.bf16.mxu0 0
      %3946 = vmatpush1.bf16.msra.mxu0 %v2184
      %3947 = vmatprep.subr.bf16.mxu0 0
      %3948 = vmatpush1.bf16.msra.mxu0 %v2197
      %3949 = vmatprep.subr.bf16.mxu0 0
      %3950 = vmatpush1.bf16.msra.mxu0 %v2210
      %3951 = vmatprep.subr.bf16.mxu0 0
      %3952 = vmatpush1.bf16.msra.mxu0 %v2223
      %3953 = vmatprep.subr.bf16.mxu0 0
      %3954 = vmatpush1.bf16.msra.mxu0 %v2236
      %3955 = vmatprep.subr.bf16.mxu0 0
      %3956 = vmatpush1.bf16.msra.mxu0 %v2249
      %3957 = vmatprep.subr.bf16.mxu0 0
      %3958 = vmatpush1.bf16.msra.mxu0 %v2262
      %3959 = vmatprep.subr.bf16.mxu0 0
      %3960 = vmatpush1.bf16.msra.mxu0 %v2275
      %3961 = vmatprep.subr.bf16.mxu0 0
      %3962 = vmatpush1.bf16.msra.mxu0 %v2288
      %3963 = vmatprep.subr.bf16.mxu0 0
      %3964 = vmatpush1.bf16.msra.mxu0 %v2301
      %3965 = vmatprep.subr.bf16.mxu0 0
      %3966 = vmatpush1.bf16.msra.mxu0 %v2314
      %3967 = vmatprep.mubr.bf16.mxu0 %v788
      %3968 = vmatmul.mubr.bf16.gmra.mrb[0].mxu0 %v787
      %v3969 = vpop.f32.mrb[0].mxu0
      %v3970 = vadd.f32 0.0, %v3969
      %v3971 = vpop.f32.mrb[0].mxu0
      %v3972 = vpop.f32.mrb[0].mxu0
      %v3973 = vadd.f32 0.0, %v3972
      %v3974 = vpop.f32.mrb[0].mxu0
      %3975 = vmatprep.mubr.bf16.mxu0 %v792
      %3976 = vmatmul.mubr.bf16.gmra.mrb[0].mxu0 %v791
      %v3977 = vpop.f32.mrb[0].mxu0
      %v3978 = vadd.f32 0.0, %v3977
      %v3979 = vpop.f32.mrb[0].mxu0
      %v3980 = vpop.f32.mrb[0].mxu0
      %v3981 = vadd.f32 0.0, %v3980
      %v3982 = vpop.f32.mrb[0].mxu0
      %3983 = vmatprep.mubr.bf16.mxu0 %v796
      %3984 = vmatmul.mubr.bf16.gmra.mrb[0].mxu0 %v795
      %v3985 = vpop.f32.mrb[0].mxu0
      %v3986 = vadd.f32 0.0, %v3985
      %v3987 = vpop.f32.mrb[0].mxu0
      %v3988 = vpop.f32.mrb[0].mxu0
      %v3989 = vadd.f32 0.0, %v3988
      %v3990 = vpop.f32.mrb[0].mxu0
      %3991 = vmatprep.mubr.bf16.mxu0 %v800
      %3992 = vmatmul.mubr.bf16.gmra.mrb[0].mxu0 %v799
      %v3993 = vpop.f32.mrb[0].mxu0
      %v3994 = vadd.f32 0.0, %v3993
      %v3995 = vpop.f32.mrb[0].mxu0
      %v3996 = vpop.f32.mrb[0].mxu0
      %v3997 = vadd.f32 0.0, %v3996
      %v3998 = vpop.f32.mrb[0].mxu0
      %3999 = vmatprep.mubr.bf16.mxu0 %v804
      %4000 = vmatmul.mubr.bf16.gmra.mrb[0].mxu0 %v803
      %v4001 = vpop.f32.mrb[0].mxu0
      %v4002 = vadd.f32 0.0, %v4001
      %v4003 = vpop.f32.mrb[0].mxu0
      %v4004 = vpop.f32.mrb[0].mxu0
      %v4005 = vadd.f32 0.0, %v4004
      %v4006 = vpop.f32.mrb[0].mxu0
      %4007 = vdwg.mxu0
      %4008 = vmatprep.subr.bf16.mxu0 0
      %4009 = vmatpush1.bf16.msra.mxu0 %v2327
      %4010 = vmatprep.subr.bf16.mxu0 0
      %4011 = vmatpush1.bf16.msra.mxu0 %v2340
      %4012 = vmatprep.subr.bf16.mxu0 0
      %4013 = vmatpush1.bf16.msra.mxu0 %v2353
      %4014 = vmatprep.subr.bf16.mxu0 0
      %4015 = vmatpush1.bf16.msra.mxu0 %v2366
      %4016 = vmatprep.subr.bf16.mxu0 0
      %4017 = vmatpush1.bf16.msra.mxu0 %v2379
      %4018 = vmatprep.subr.bf16.mxu0 0
      %4019 = vmatpush1.bf16.msra.mxu0 %v2392
      %4020 = vmatprep.subr.bf16.mxu0 0
      %4021 = vmatpush1.bf16.msra.mxu0 %v2405
      %4022 = vmatprep.subr.bf16.mxu0 0
      %4023 = vmatpush1.bf16.msra.mxu0 %v2418
      %4024 = vmatprep.subr.bf16.mxu0 0
      %4025 = vmatpush1.bf16.msra.mxu0 %v2431
      %4026 = vmatprep.subr.bf16.mxu0 0
      %4027 = vmatpush1.bf16.msra.mxu0 %v2444
      %4028 = vmatprep.subr.bf16.mxu0 0
      %4029 = vmatpush1.bf16.msra.mxu0 %v2457
      %4030 = vmatprep.subr.bf16.mxu0 0
      %4031 = vmatpush1.bf16.msra.mxu0 %v2470
      %4032 = vmatprep.subr.bf16.mxu0 0
      %4033 = vmatpush1.bf16.msra.mxu0 %v2483
      %4034 = vmatprep.subr.bf16.mxu0 0
      %4035 = vmatpush1.bf16.msra.mxu0 %v2496
      %4036 = vmatprep.subr.bf16.mxu0 0
      %4037 = vmatpush1.bf16.msra.mxu0 %v2509
      %4038 = vmatprep.subr.bf16.mxu0 0
      %4039 = vmatpush1.bf16.msra.mxu0 %v2522
      %4040 = vmatprep.mubr.bf16.mxu0 %v790
      %4041 = vmatmul.mubr.bf16.gmra.mrb[0].mxu0 %v789
      %v4042 = vpop.f32.mrb[0].mxu0
      %v4043 = vadd.f32 %v3970, %v4042
      %v4044 = vpop.f32.mrb[0].mxu0
      %v4045 = vpop.f32.mrb[0].mxu0
      %v4046 = vadd.f32 %v3973, %v4045
      %v4047 = vpop.f32.mrb[0].mxu0
      %4048 = vmatprep.mubr.bf16.mxu0 %v794
      %4049 = vmatmul.mubr.bf16.gmra.mrb[0].mxu0 %v793
      %v4050 = vpop.f32.mrb[0].mxu0
      %v4051 = vadd.f32 %v3978, %v4050
      %v4052 = vpop.f32.mrb[0].mxu0
      %v4053 = vpop.f32.mrb[0].mxu0
      %v4054 = vadd.f32 %v3981, %v4053
      %v4055 = vpop.f32.mrb[0].mxu0
      %4056 = vmatprep.mubr.bf16.mxu0 %v798
      %4057 = vmatmul.mubr.bf16.gmra.mrb[0].mxu0 %v797
      %v4058 = vpop.f32.mrb[0].mxu0
      %v4059 = vadd.f32 %v3986, %v4058
      %v4060 = vpop.f32.mrb[0].mxu0
      %v4061 = vpop.f32.mrb[0].mxu0
      %v4062 = vadd.f32 %v3989, %v4061
      %v4063 = vpop.f32.mrb[0].mxu0
      %4064 = vmatprep.mubr.bf16.mxu0 %v802
      %4065 = vmatmul.mubr.bf16.gmra.mrb[0].mxu0 %v801
      %v4066 = vpop.f32.mrb[0].mxu0
      %v4067 = vadd.f32 %v3994, %v4066
      %v4068 = vpop.f32.mrb[0].mxu0
      %v4069 = vpop.f32.mrb[0].mxu0
      %v4070 = vadd.f32 %v3997, %v4069
      %v4071 = vpop.f32.mrb[0].mxu0
      %4072 = vmatprep.mubr.bf16.mxu0 %v806
      %4073 = vmatmul.mubr.bf16.gmra.mrb[0].mxu0 %v805
      %v4074 = vpop.f32.mrb[0].mxu0
      %v4075 = vadd.f32 %v4002, %v4074
      %v4076 = vpop.f32.mrb[0].mxu0
      %v4077 = vpop.f32.mrb[0].mxu0
      %v4078 = vadd.f32 %v4005, %v4077
      %v4079 = vpop.f32.mrb[0].mxu0
      %4080 = vdwg.mxu0
      %v4081 = vmul.f32 %v3057, %v3057
      %v4082 = vmul.f32 %v3059, %v3059
      %v4083 = vmul.f32 %v3223, %v3223
      %v4084 = vmul.f32 %v3225, %v3225
      %v4085 = vmul.f32 %v3389, %v3389
      %v4086 = vmul.f32 %v3391, %v3391
      %v4087 = vmul.f32 %v3555, %v3555
      %v4088 = vmul.f32 %v3557, %v3557
      %v4089 = vmul.f32 %v3721, %v3721
      %v4090 = vmul.f32 %v3723, %v3723
      %v4091 = vmul.f32 %v3887, %v3887
      %v4092 = vmul.f32 %v3889, %v3889
      %v4093 = vmul.f32 %v4043, %v4043
      %v4094 = vmul.f32 %v3061, %v3061
      %v4095 = vmul.f32 %v3063, %v3063
      %v4096 = vmul.f32 %v3227, %v3227
      %v4097 = vmul.f32 %v3229, %v3229
      %v4098 = vmul.f32 %v3393, %v3393
      %v4099 = vmul.f32 %v3395, %v3395
      %v4100 = vmul.f32 %v3559, %v3559
      %v4101 = vmul.f32 %v3561, %v3561
      %v4102 = vmul.f32 %v3725, %v3725
      %v4103 = vmul.f32 %v3727, %v3727
      %v4104 = vmul.f32 %v3891, %v3891
      %v4105 = vmul.f32 %v3893, %v3893
      %v4106 = vmul.f32 %v4046, %v4046
      %v4107 = vmul.f32 %v3067, %v3067
      %v4108 = vmul.f32 %v3069, %v3069
      %v4109 = vmul.f32 %v3233, %v3233
      %v4110 = vmul.f32 %v3235, %v3235
      %v4111 = vmul.f32 %v3399, %v3399
      %v4112 = vmul.f32 %v3401, %v3401
      %v4113 = vmul.f32 %v3565, %v3565
      %v4114 = vmul.f32 %v3567, %v3567
      %v4115 = vmul.f32 %v3731, %v3731
      %v4116 = vmul.f32 %v3733, %v3733
      %v4117 = vmul.f32 %v3897, %v3897
      %v4118 = vmul.f32 %v3899, %v3899
      %v4119 = vmul.f32 %v4051, %v4051
      %v4120 = vmul.f32 %v3071, %v3071
      %v4121 = vmul.f32 %v3073, %v3073
      %v4122 = vmul.f32 %v3237, %v3237
      %v4123 = vmul.f32 %v3239, %v3239
      %v4124 = vmul.f32 %v3403, %v3403
      %v4125 = vmul.f32 %v3405, %v3405
      %v4126 = vmul.f32 %v3569, %v3569
      %v4127 = vmul.f32 %v3571, %v3571
      %v4128 = vmul.f32 %v3735, %v3735
      %v4129 = vmul.f32 %v3737, %v3737
      %v4130 = vmul.f32 %v3901, %v3901
      %v4131 = vmul.f32 %v3903, %v3903
      %v4132 = vmul.f32 %v4054, %v4054
      %v4133 = vmul.f32 %v3077, %v3077
      %v4134 = vmul.f32 %v3079, %v3079
      %v4135 = vmul.f32 %v3243, %v3243
      %v4136 = vmul.f32 %v3245, %v3245
      %v4137 = vmul.f32 %v3409, %v3409
      %v4138 = vmul.f32 %v3411, %v3411
      %v4139 = vmul.f32 %v3575, %v3575
      %v4140 = vmul.f32 %v3577, %v3577
      %v4141 = vmul.f32 %v3741, %v3741
      %v4142 = vmul.f32 %v3743, %v3743
      %v4143 = vmul.f32 %v3907, %v3907
      %v4144 = vmul.f32 %v3909, %v3909
      %v4145 = vmul.f32 %v4059, %v4059
      %v4146 = vmul.f32 %v3081, %v3081
      %v4147 = vmul.f32 %v3083, %v3083
      %v4148 = vmul.f32 %v3247, %v3247
      %v4149 = vmul.f32 %v3249, %v3249
      %v4150 = vmul.f32 %v3413, %v3413
      %v4151 = vmul.f32 %v3415, %v3415
      %v4152 = vmul.f32 %v3579, %v3579
      %v4153 = vmul.f32 %v3581, %v3581
      %v4154 = vmul.f32 %v3745, %v3745
      %v4155 = vmul.f32 %v3747, %v3747
      %v4156 = vmul.f32 %v3911, %v3911
      %v4157 = vmul.f32 %v3913, %v3913
      %v4158 = vmul.f32 %v4062, %v4062
      %v4159 = vmul.f32 %v3087, %v3087
      %v4160 = vmul.f32 %v3089, %v3089
      %v4161 = vmul.f32 %v3253, %v3253
      %v4162 = vmul.f32 %v3255, %v3255
      %v4163 = vmul.f32 %v3419, %v3419
      %v4164 = vmul.f32 %v3421, %v3421
      %v4165 = vmul.f32 %v3585, %v3585
      %v4166 = vmul.f32 %v3587, %v3587
      %v4167 = vmul.f32 %v3751, %v3751
      %v4168 = vmul.f32 %v3753, %v3753
      %v4169 = vmul.f32 %v3917, %v3917
      %v4170 = vmul.f32 %v3919, %v3919
      %v4171 = vmul.f32 %v4067, %v4067
      %v4172 = vmul.f32 %v3091, %v3091
      %v4173 = vmul.f32 %v3093, %v3093
      %v4174 = vmul.f32 %v3257, %v3257
      %v4175 = vmul.f32 %v3259, %v3259
      %v4176 = vmul.f32 %v3423, %v3423
      %v4177 = vmul.f32 %v3425, %v3425
      %v4178 = vmul.f32 %v3589, %v3589
      %v4179 = vmul.f32 %v3591, %v3591
      %v4180 = vmul.f32 %v3755, %v3755
      %v4181 = vmul.f32 %v3757, %v3757
      %v4182 = vmul.f32 %v3921, %v3921
      %v4183 = vmul.f32 %v3923, %v3923
      %v4184 = vmul.f32 %v4070, %v4070
      %v4185 = vmul.f32 %v3097, %v3097
      %v4186 = vmul.f32 %v3099, %v3099
      %v4187 = vmul.f32 %v3263, %v3263
      %v4188 = vmul.f32 %v3265, %v3265
      %v4189 = vmul.f32 %v3429, %v3429
      %v4190 = vmul.f32 %v3431, %v3431
      %v4191 = vmul.f32 %v3595, %v3595
      %v4192 = vmul.f32 %v3597, %v3597
      %v4193 = vmul.f32 %v3761, %v3761
      %v4194 = vmul.f32 %v3763, %v3763
      %v4195 = vmul.f32 %v3927, %v3927
      %v4196 = vmul.f32 %v3929, %v3929
      %v4197 = vmul.f32 %v4075, %v4075
      %v4198 = vmul.f32 %v3101, %v3101
      %v4199 = vmul.f32 %v3103, %v3103
      %v4200 = vmul.f32 %v3267, %v3267
      %v4201 = vmul.f32 %v3269, %v3269
      %v4202 = vmul.f32 %v3433, %v3433
      %v4203 = vmul.f32 %v3435, %v3435
      %v4204 = vmul.f32 %v3599, %v3599
      %v4205 = vmul.f32 %v3601, %v3601
      %v4206 = vmul.f32 %v3765, %v3765
      %v4207 = vmul.f32 %v3767, %v3767
      %v4208 = vmul.f32 %v3931, %v3931
      %v4209 = vmul.f32 %v3933, %v3933
      %v4210 = vmul.f32 %v4078, %v4078
      %v4211 = vadd.f32 %v4081, %v4146
      %v4212 = vadd.f32 %v4082, %v4147
      %v4213 = vadd.f32 %v4083, %v4148
      %v4214 = vadd.f32 %v4084, %v4149
      %v4215 = vadd.f32 %v4085, %v4150
      %v4216 = vadd.f32 %v4086, %v4151
      %v4217 = vadd.f32 %v4087, %v4152
      %v4218 = vadd.f32 %v4088, %v4153
      %v4219 = vadd.f32 %v4089, %v4154
      %v4220 = vadd.f32 %v4090, %v4155
      %v4221 = vadd.f32 %v4091, %v4156
      %v4222 = vadd.f32 %v4092, %v4157
      %v4223 = vadd.f32 %v4093, %v4158
      %v4224 = vadd.f32 %v4094, %v4159
      %v4225 = vadd.f32 %v4095, %v4160
      %v4226 = vadd.f32 %v4096, %v4161
      %v4227 = vadd.f32 %v4097, %v4162
      %v4228 = vadd.f32 %v4098, %v4163
      %v4229 = vadd.f32 %v4099, %v4164
      %v4230 = vadd.f32 %v4100, %v4165
      %v4231 = vadd.f32 %v4101, %v4166
      %v4232 = vadd.f32 %v4102, %v4167
      %v4233 = vadd.f32 %v4103, %v4168
      %v4234 = vadd.f32 %v4104, %v4169
      %v4235 = vadd.f32 %v4105, %v4170
      %v4236 = vadd.f32 %v4106, %v4171
      %v4237 = vadd.f32 %v4107, %v4172
      %v4238 = vadd.f32 %v4108, %v4173
      %v4239 = vadd.f32 %v4109, %v4174
      %v4240 = vadd.f32 %v4110, %v4175
      %v4241 = vadd.f32 %v4111, %v4176
      %v4242 = vadd.f32 %v4112, %v4177
      %v4243 = vadd.f32 %v4113, %v4178
      %v4244 = vadd.f32 %v4114, %v4179
      %v4245 = vadd.f32 %v4115, %v4180
      %v4246 = vadd.f32 %v4116, %v4181
      %v4247 = vadd.f32 %v4117, %v4182
      %v4248 = vadd.f32 %v4118, %v4183
      %v4249 = vadd.f32 %v4119, %v4184
      %v4250 = vadd.f32 %v4120, %v4185
      %v4251 = vadd.f32 %v4121, %v4186
      %v4252 = vadd.f32 %v4122, %v4187
      %v4253 = vadd.f32 %v4123, %v4188
      %v4254 = vadd.f32 %v4124, %v4189
      %v4255 = vadd.f32 %v4125, %v4190
      %v4256 = vadd.f32 %v4126, %v4191
      %v4257 = vadd.f32 %v4127, %v4192
      %v4258 = vadd.f32 %v4128, %v4193
      %v4259 = vadd.f32 %v4129, %v4194
      %v4260 = vadd.f32 %v4130, %v4195
      %v4261 = vadd.f32 %v4131, %v4196
      %v4262 = vadd.f32 %v4132, %v4197
      %v4263 = vadd.f32 %v4133, %v4198
      %v4264 = vadd.f32 %v4134, %v4199
      %v4265 = vadd.f32 %v4135, %v4200
      %v4266 = vadd.f32 %v4136, %v4201
      %v4267 = vadd.f32 %v4137, %v4202
      %v4268 = vadd.f32 %v4138, %v4203
      %v4269 = vadd.f32 %v4139, %v4204
      %v4270 = vadd.f32 %v4140, %v4205
      %v4271 = vadd.f32 %v4141, %v4206
      %v4272 = vadd.f32 %v4142, %v4207
      %v4273 = vadd.f32 %v4143, %v4208
      %v4274 = vadd.f32 %v4144, %v4209
      %v4275 = vadd.f32 %v4145, %v4210
      %v4276 = vld [vmem:[#allocation2] sm:$0xff]
      %v4277 = vld [vmem:[#allocation2 + $0x8] sm:$0xff]
      %v4278 = vld [vmem:[#allocation2 + $0x10] sm:$0xff]
      %v4279 = vld [vmem:[#allocation2 + $0x18] sm:$0xff]
      %v4280 = vld [vmem:[#allocation2 + $0x20] sm:$0xff]
      %v4281 = vld [vmem:[%s241] sm:$0xff]
      %v4282 = vld [vmem:[%s241 + $0x8] sm:$0xff]
      %v4283 = vld [vmem:[%s241 + $0x10] sm:$0xff]
      %v4284 = vld [vmem:[%s241 + $0x18] sm:$0xff]
      %v4285 = vld [vmem:[%s241 + $0x20] sm:$0xff]
      %v4286 = vld [vmem:[%s241 + $0x28] sm:$0xff]
      %v4287 = vld [vmem:[%s241 + $0x30] sm:$0xff]
      %v4288 = vld [vmem:[%s241 + $0x38] sm:$0xff]
      %v4289 = vld [vmem:[%s241 + $0x40] sm:$0xff]
      %v4290 = vld [vmem:[%s241 + $0x48] sm:$0xff]
      %v4291 = vld [vmem:[%s241 + $0x50] sm:$0xff]
      %v4292 = vld [vmem:[%s241 + $0x58] sm:$0xff]
      %v4293 = vld [vmem:[%s241 + $0x60] sm:$0xff]
      %v4294 = vld [vmem:[%s241 + $0x68] sm:$0xff]
      %v4295 = vld [vmem:[%s241 + $0x70] sm:$0xff]
      %v4296 = vld [vmem:[%s241 + $0x78] sm:$0xff]
      %v4297 = vld [vmem:[%s241 + $0x80] sm:$0xff]
      %v4298 = vld [vmem:[%s241 + $0x88] sm:$0xff]
      %v4299 = vld [vmem:[%s241 + $0x90] sm:$0xff]
      %v4300 = vld [vmem:[%s241 + $0x98] sm:$0xff]
      %v4301 = vld [vmem:[%s241 + $0xa0] sm:$0xff]
      %v4302 = vld [vmem:[%s241 + $0xa8] sm:$0xff]
      %v4303 = vld [vmem:[%s241 + $0xb0] sm:$0xff]
      %v4304 = vld [vmem:[%s241 + $0xb8] sm:$0xff]
      %v4305 = vld [vmem:[%s241 + $0xc0] sm:$0xff]
      %v4306 = vld [vmem:[%s241 + $0xc8] sm:$0xff]
      %v4307 = vld [vmem:[%s241 + $0xd0] sm:$0xff]
      %v4308 = vld [vmem:[%s241 + $0xd8] sm:$0xff]
      %v4309 = vld [vmem:[%s241 + $0xe0] sm:$0xff]
      %v4310 = vld [vmem:[%s241 + $0xe8] sm:$0xff]
      %v4311 = vld [vmem:[%s241 + $0xf0] sm:$0xff]
      %v4312 = vld [vmem:[%s241 + $0xf8] sm:$0xff]
      %v4313 = vld [vmem:[%s241 + $0x100] sm:$0xff]
      %v4314 = vld [vmem:[%s241 + $0x108] sm:$0xff]
      %v4315 = vld [vmem:[%s241 + $0x110] sm:$0xff]
      %v4316 = vld [vmem:[%s241 + $0x118] sm:$0xff]
      %v4317 = vld [vmem:[%s241 + $0x120] sm:$0xff]
      %v4318 = vld [vmem:[%s241 + $0x128] sm:$0xff]
      %v4319 = vld [vmem:[%s241 + $0x130] sm:$0xff]
      %v4320 = vld [vmem:[%s241 + $0x138] sm:$0xff]
      %v4321 = vld [vmem:[%s241 + $0x140] sm:$0xff]
      %v4322 = vld [vmem:[%s241 + $0x148] sm:$0xff]
      %v4323 = vld [vmem:[%s241 + $0x150] sm:$0xff]
      %v4324 = vld [vmem:[%s241 + $0x158] sm:$0xff]
      %v4325 = vld [vmem:[%s241 + $0x160] sm:$0xff]
      %v4326 = vld [vmem:[%s241 + $0x168] sm:$0xff]
      %v4327 = vld [vmem:[%s241 + $0x170] sm:$0xff]
      %v4328 = vld [vmem:[%s241 + $0x178] sm:$0xff]
      %v4329 = vld [vmem:[%s241 + $0x180] sm:$0xff]
      %v4330 = vld [vmem:[%s241 + $0x188] sm:$0xff]
      %v4331 = vld [vmem:[%s241 + $0x190] sm:$0xff]
      %v4332 = vld [vmem:[%s241 + $0x198] sm:$0xff]
      %v4333 = vld [vmem:[%s241 + $0x1a0] sm:$0xff]
      %v4334 = vld [vmem:[%s241 + $0x1a8] sm:$0xff]
      %v4335 = vld [vmem:[%s241 + $0x1b0] sm:$0xff]
      %v4336 = vld [vmem:[%s241 + $0x1b8] sm:$0xff]
      %v4337 = vld [vmem:[%s241 + $0x1c0] sm:$0xff]
      %v4338 = vld [vmem:[%s241 + $0x1c8] sm:$0xff]
      %v4339 = vld [vmem:[%s241 + $0x1d0] sm:$0xff]
      %v4340 = vld [vmem:[%s241 + $0x1d8] sm:$0xff]
      %v4341 = vld [vmem:[%s241 + $0x1e0] sm:$0xff]
      %v4342 = vld [vmem:[%s241 + $0x1e8] sm:$0xff]
      %v4343 = vld [vmem:[%s241 + $0x1f0] sm:$0xff]
      %v4344 = vld [vmem:[%s241 + $0x1f8] sm:$0xff]
      %v4345 = vld [vmem:[%s241 + $0x200] sm:$0xff]
      %v4346 = vld [vmem:[%s241 + $0x208] sm:$0xff]
      %v4347 = vld [vmem:[%s241 + $0x210] sm:$0xff]
      %v4348 = vld [vmem:[%s241 + $0x218] sm:$0xff]
      %v4349 = vld [vmem:[%s241 + $0x220] sm:$0xff]
      %v4350 = vld [vmem:[%s241 + $0x228] sm:$0xff]
      %v4351 = vld [vmem:[%s241 + $0x230] sm:$0xff]
      %v4352 = vld [vmem:[%s241 + $0x238] sm:$0xff]
      %v4353 = vld [vmem:[%s241 + $0x240] sm:$0xff]
      %v4354 = vld [vmem:[%s241 + $0x248] sm:$0xff]
      %v4355 = vld [vmem:[%s241 + $0x250] sm:$0xff]
      %v4356 = vld [vmem:[%s241 + $0x258] sm:$0xff]
      %v4357 = vld [vmem:[%s241 + $0x260] sm:$0xff]
      %v4358 = vld [vmem:[%s241 + $0x268] sm:$0xff]
      %v4359 = vld [vmem:[%s241 + $0x270] sm:$0xff]
      %v4360 = vld [vmem:[%s241 + $0x278] sm:$0xff]
      %v4361 = vld [vmem:[%s241 + $0x280] sm:$0xff]
      %v4362 = vld [vmem:[%s241 + $0x288] sm:$0xff]
      %v4363 = vld [vmem:[%s241 + $0x290] sm:$0xff]
      %v4364 = vld [vmem:[%s241 + $0x298] sm:$0xff]
      %v4365 = vld [vmem:[%s241 + $0x2a0] sm:$0xff]
      %v4366 = vld [vmem:[%s241 + $0x2a8] sm:$0xff]
      %v4367 = vld [vmem:[%s241 + $0x2b0] sm:$0xff]
      %v4368 = vld [vmem:[%s241 + $0x2b8] sm:$0xff]
      %v4369 = vld [vmem:[%s241 + $0x2c0] sm:$0xff]
      %v4370 = vld [vmem:[%s241 + $0x2c8] sm:$0xff]
      %v4371 = vld [vmem:[%s241 + $0x2d0] sm:$0xff]
      %v4372 = vld [vmem:[%s241 + $0x2d8] sm:$0xff]
      %v4373 = vld [vmem:[%s241 + $0x2e0] sm:$0xff]
      %v4374 = vld [vmem:[%s241 + $0x2e8] sm:$0xff]
      %v4375 = vld [vmem:[%s241 + $0x2f0] sm:$0xff]
      %v4376 = vld [vmem:[%s241 + $0x2f8] sm:$0xff]
      %v4377 = vld [vmem:[%s241 + $0x300] sm:$0xff]
      %v4378 = vld [vmem:[%s241 + $0x308] sm:$0xff]
      %v4379 = vld [vmem:[%s241 + $0x310] sm:$0xff]
      %v4380 = vld [vmem:[%s241 + $0x318] sm:$0xff]
      %v4381 = vld [vmem:[%s241 + $0x320] sm:$0xff]
      %v4382 = vld [vmem:[%s241 + $0x328] sm:$0xff]
      %v4383 = vld [vmem:[%s241 + $0x330] sm:$0xff]
      %v4384 = vld [vmem:[%s241 + $0x338] sm:$0xff]
      %v4385 = vld [vmem:[%s241 + $0x340] sm:$0xff]
      %v4386 = vld [vmem:[%s241 + $0x348] sm:$0xff]
      %v4387 = vld [vmem:[%s241 + $0x350] sm:$0xff]
      %v4388 = vld [vmem:[%s241 + $0x358] sm:$0xff]
      %v4389 = vld [vmem:[%s241 + $0x360] sm:$0xff]
      %v4390 = vld [vmem:[%s241 + $0x368] sm:$0xff]
      %v4391 = vld [vmem:[%s241 + $0x370] sm:$0xff]
      %v4392 = vld [vmem:[%s241 + $0x378] sm:$0xff]
      %v4393 = vld [vmem:[%s241 + $0x380] sm:$0xff]
      %v4394 = vld [vmem:[%s241 + $0x388] sm:$0xff]
      %v4395 = vld [vmem:[%s241 + $0x390] sm:$0xff]
      %v4396 = vld [vmem:[%s241 + $0x398] sm:$0xff]
      %v4397 = vld [vmem:[%s241 + $0x3a0] sm:$0xff]
      %v4398 = vld [vmem:[%s241 + $0x3a8] sm:$0xff]
      %v4399 = vld [vmem:[%s241 + $0x3b0] sm:$0xff]
      %v4400 = vld [vmem:[%s241 + $0x3b8] sm:$0xff]
      %v4401 = vld [vmem:[%s241 + $0x3c0] sm:$0xff]
      %v4402 = vld [vmem:[%s241 + $0x3c8] sm:$0xff]
      %v4403 = vld [vmem:[%s241 + $0x3d0] sm:$0xff]
      %v4404 = vld [vmem:[%s241 + $0x3d8] sm:$0xff]
      %v4405 = vld [vmem:[%s241 + $0x3e0] sm:$0xff]
      %v4406 = vld [vmem:[%s241 + $0x3e8] sm:$0xff]
      %v4407 = vld [vmem:[%s241 + $0x3f0] sm:$0xff]
      %v4408 = vld [vmem:[%s241 + $0x3f8] sm:$0xff]
      %v4409 = vld [vmem:[%s241 + $0x400] sm:$0xff]
      %v4410 = vld [vmem:[%s241 + $0x408] sm:$0xff]
      %v4411 = vld [vmem:[%s241 + $0x410] sm:$0xff]
      %v4412 = vld [vmem:[%s241 + $0x418] sm:$0xff]
      %v4413 = vld [vmem:[%s241 + $0x420] sm:$0xff]
      %v4414 = vld [vmem:[%s241 + $0x428] sm:$0xff]
      %v4415 = vld [vmem:[%s241 + $0x430] sm:$0xff]
      %v4416 = vld [vmem:[%s241 + $0x438] sm:$0xff]
      %v4417 = vld [vmem:[%s241 + $0x440] sm:$0xff]
      %v4418 = vld [vmem:[%s241 + $0x448] sm:$0xff]
      %v4419 = vld [vmem:[%s241 + $0x450] sm:$0xff]
      %v4420 = vld [vmem:[%s241 + $0x458] sm:$0xff]
      %v4421 = vld [vmem:[%s241 + $0x460] sm:$0xff]
      %v4422 = vld [vmem:[%s241 + $0x468] sm:$0xff]
      %v4423 = vld [vmem:[%s241 + $0x470] sm:$0xff]
      %v4424 = vld [vmem:[%s241 + $0x478] sm:$0xff]
      %v4425 = vld [vmem:[%s241 + $0x480] sm:$0xff]
      %v4426 = vld [vmem:[%s241 + $0x488] sm:$0xff]
      %v4427 = vld [vmem:[%s241 + $0x490] sm:$0xff]
      %v4428 = vld [vmem:[%s241 + $0x498] sm:$0xff]
      %v4429 = vld [vmem:[%s241 + $0x4a0] sm:$0xff]
      %v4430 = vld [vmem:[%s241 + $0x4a8] sm:$0xff]
      %v4431 = vld [vmem:[%s241 + $0x4b0] sm:$0xff]
      %v4432 = vld [vmem:[%s241 + $0x4b8] sm:$0xff]
      %v4433 = vld [vmem:[%s241 + $0x4c0] sm:$0xff]
      %v4434 = vld [vmem:[%s241 + $0x4c8] sm:$0xff]
      %v4435 = vld [vmem:[%s241 + $0x4d0] sm:$0xff]
      %v4436 = vld [vmem:[%s241 + $0x4d8] sm:$0xff]
      %v4437 = vld [vmem:[%s241 + $0x4e0] sm:$0xff]
      %v4438 = vld [vmem:[%s241 + $0x4e8] sm:$0xff]
      %v4439 = vld [vmem:[%s241 + $0x4f0] sm:$0xff]
      %v4440 = vld [vmem:[%s241 + $0x4f8] sm:$0xff]
      %v4441 = vld [vmem:[%s241 + $0x500] sm:$0xff]
      %v4442 = vld [vmem:[%s241 + $0x508] sm:$0xff]
      %v4443 = vld [vmem:[%s241 + $0x510] sm:$0xff]
      %v4444 = vld [vmem:[%s241 + $0x518] sm:$0xff]
      %v4445 = vld [vmem:[%s241 + $0x520] sm:$0xff]
      %v4446 = vld [vmem:[%s241 + $0x528] sm:$0xff]
      %v4447 = vld [vmem:[%s241 + $0x530] sm:$0xff]
      %v4448 = vld [vmem:[%s241 + $0x538] sm:$0xff]
      %v4449 = vld [vmem:[%s241 + $0x540] sm:$0xff]
      %v4450 = vld [vmem:[%s241 + $0x548] sm:$0xff]
      %v4451 = vld [vmem:[%s241 + $0x550] sm:$0xff]
      %v4452 = vld [vmem:[%s241 + $0x558] sm:$0xff]
      %v4453 = vld [vmem:[%s241 + $0x560] sm:$0xff]
      %v4454 = vld [vmem:[%s241 + $0x568] sm:$0xff]
      %v4455 = vld [vmem:[%s241 + $0x570] sm:$0xff]
      %v4456 = vld [vmem:[%s241 + $0x578] sm:$0xff]
      %v4457 = vld [vmem:[%s241 + $0x580] sm:$0xff]
      %v4458 = vld [vmem:[%s241 + $0x588] sm:$0xff]
      %v4459 = vld [vmem:[%s241 + $0x590] sm:$0xff]
      %v4460 = vld [vmem:[%s241 + $0x598] sm:$0xff]
      %v4461 = vld [vmem:[%s241 + $0x5a0] sm:$0xff]
      %v4462 = vld [vmem:[%s241 + $0x5a8] sm:$0xff]
      %v4463 = vld [vmem:[%s241 + $0x5b0] sm:$0xff]
      %v4464 = vld [vmem:[%s241 + $0x5b8] sm:$0xff]
      %v4465 = vld [vmem:[%s241 + $0x5c0] sm:$0xff]
      %v4466 = vld [vmem:[%s241 + $0x5c8] sm:$0xff]
      %v4467 = vld [vmem:[%s241 + $0x5d0] sm:$0xff]
      %v4468 = vld [vmem:[%s241 + $0x5d8] sm:$0xff]
      %v4469 = vld [vmem:[%s241 + $0x5e0] sm:$0xff]
      %v4470 = vld [vmem:[%s241 + $0x5e8] sm:$0xff]
      %v4471 = vld [vmem:[%s241 + $0x5f0] sm:$0xff]
      %v4472 = vld [vmem:[%s241 + $0x5f8] sm:$0xff]
      %v4473 = vld [vmem:[%s241 + $0x600] sm:$0xff]
      %v4474 = vld [vmem:[%s241 + $0x608] sm:$0xff]
      %v4475 = vld [vmem:[%s241 + $0x610] sm:$0xff]
      %v4476 = vld [vmem:[%s241 + $0x618] sm:$0xff]
      %v4477 = vld [vmem:[%s241 + $0x620] sm:$0xff]
      %v4478 = vld [vmem:[%s241 + $0x628] sm:$0xff]
      %v4479 = vld [vmem:[%s241 + $0x630] sm:$0xff]
      %v4480 = vld [vmem:[%s241 + $0x638] sm:$0xff]
      %v4481 = vld [vmem:[%s241 + $0x640] sm:$0xff]
      %v4482 = vld [vmem:[%s241 + $0x648] sm:$0xff]
      %v4483 = vld [vmem:[%s241 + $0x650] sm:$0xff]
      %v4484 = vld [vmem:[%s241 + $0x658] sm:$0xff]
      %v4485 = vld [vmem:[%s241 + $0x660] sm:$0xff]
      %v4486 = vld [vmem:[%s241 + $0x668] sm:$0xff]
      %v4487 = vld [vmem:[%s241 + $0x670] sm:$0xff]
      %v4488 = vld [vmem:[%s241 + $0x678] sm:$0xff]
      %4489 = vmatprep.subr.mxu0 0.0
      %4490 = vmatpush1.msra.mxu0 %v4281
      %4491 = vmatprep.subr.mxu0 0.0
      %4492 = vmatpush1.msra.mxu0 %v4282
      %4493 = vmatprep.subr.mxu0 0.0
      %4494 = vmatpush1.msra.mxu0 %v4283
      %4495 = vmatprep.subr.mxu0 0.0
      %4496 = vmatpush1.msra.mxu0 %v4284
      %4497 = vmatprep.subr.mxu0 0.0
      %4498 = vmatpush1.msra.mxu0 %v4285
      %4499 = vmatprep.subr.mxu0 0.0
      %4500 = vmatpush1.msra.mxu0 %v4286
      %4501 = vmatprep.subr.mxu0 0.0
      %4502 = vmatpush1.msra.mxu0 %v4287
      %4503 = vmatprep.subr.mxu0 0.0
      %4504 = vmatpush1.msra.mxu0 %v4288
      %4505 = vmatprep.subr.mxu0 0.0
      %4506 = vmatpush1.msra.mxu0 %v4289
      %4507 = vmatprep.subr.mxu0 0.0
      %4508 = vmatpush1.msra.mxu0 %v4290
      %4509 = vmatprep.subr.mxu0 0.0
      %4510 = vmatpush1.msra.mxu0 %v4291
      %4511 = vmatprep.subr.mxu0 0.0
      %4512 = vmatpush1.msra.mxu0 %v4292
      %4513 = vmatprep.subr.mxu0 0.0
      %4514 = vmatpush1.msra.mxu0 %v4293
      %4515 = vmatprep.subr.mxu0 0.0
      %4516 = vmatpush1.msra.mxu0 %v4294
      %4517 = vmatprep.subr.mxu0 0.0
      %4518 = vmatpush1.msra.mxu0 %v4295
      %4519 = vmatprep.subr.mxu0 0.0
      %4520 = vmatpush1.msra.mxu0 %v4296
      %4521 = vmatprep.subr.mxu0 0.0
      %4522 = vmatpush1.msra.mxu0 %v4297
      %4523 = vmatprep.subr.mxu0 0.0
      %4524 = vmatpush1.msra.mxu0 %v4298
      %4525 = vmatprep.subr.mxu0 0.0
      %4526 = vmatpush1.msra.mxu0 %v4299
      %4527 = vmatprep.subr.mxu0 0.0
      %4528 = vmatpush1.msra.mxu0 %v4300
      %4529 = vmatprep.subr.mxu0 0.0
      %4530 = vmatpush1.msra.mxu0 %v4301
      %4531 = vmatprep.subr.mxu0 0.0
      %4532 = vmatpush1.msra.mxu0 %v4302
      %4533 = vmatprep.subr.mxu0 0.0
      %4534 = vmatpush1.msra.mxu0 %v4303
      %4535 = vmatprep.subr.mxu0 0.0
      %4536 = vmatpush1.msra.mxu0 %v4304
      %4537 = vmatprep.subr.mxu0 0.0
      %4538 = vmatpush1.msra.mxu0 %v4305
      %4539 = vmatprep.subr.mxu0 0.0
      %4540 = vmatpush1.msra.mxu0 %v4306
      %4541 = vmatprep.subr.mxu0 0.0
      %4542 = vmatpush1.msra.mxu0 %v4307
      %4543 = vmatprep.subr.mxu0 0.0
      %4544 = vmatpush1.msra.mxu0 %v4308
      %4545 = vmatprep.subr.mxu0 0.0
      %4546 = vmatpush1.msra.mxu0 %v4309
      %4547 = vmatprep.subr.mxu0 0.0
      %4548 = vmatpush1.msra.mxu0 %v4310
      %4549 = vmatprep.subr.mxu0 0.0
      %4550 = vmatpush1.msra.mxu0 %v4311
      %4551 = vmatprep.subr.mxu0 0.0
      %4552 = vmatpush1.msra.mxu0 %v4312
      %4553 = vmatprep.mubr.f32.mxu0 %v4212
      %4554 = vmatmul.mubr.f32.gmra.mrb[0].mxu0 %v4211
      %v4555 = vpop.f32.mrb[0].mxu0
      %v4556 = vadd.f32 0.0, %v4555
      %v4557 = vpop.f32.mrb[0].mxu0
      %4558 = vmatprep.mubr.f32.mxu0 %v4225
      %4559 = vmatmul.mubr.f32.gmra.mrb[0].mxu0 %v4224
      %v4560 = vpop.f32.mrb[0].mxu0
      %v4561 = vadd.f32 0.0, %v4560
      %v4562 = vpop.f32.mrb[0].mxu0
      %4563 = vmatprep.mubr.f32.mxu0 %v4238
      %4564 = vmatmul.mubr.f32.gmra.mrb[0].mxu0 %v4237
      %v4565 = vpop.f32.mrb[0].mxu0
      %v4566 = vadd.f32 0.0, %v4565
      %v4567 = vpop.f32.mrb[0].mxu0
      %4568 = vmatprep.mubr.f32.mxu0 %v4251
      %4569 = vmatmul.mubr.f32.gmra.mrb[0].mxu0 %v4250
      %v4570 = vpop.f32.mrb[0].mxu0
      %v4571 = vadd.f32 0.0, %v4570
      %v4572 = vpop.f32.mrb[0].mxu0
      %4573 = vmatprep.mubr.f32.mxu0 %v4264
      %4574 = vmatmul.mubr.f32.gmra.mrb[0].mxu0 %v4263
      %v4575 = vpop.f32.mrb[0].mxu0
      %v4576 = vadd.f32 0.0, %v4575
      %v4577 = vpop.f32.mrb[0].mxu0
      %4578 = vdwg.mxu0
      %4579 = vmatprep.subr.mxu0 0.0
      %4580 = vmatpush1.msra.mxu0 %v4313
      %4581 = vmatprep.subr.mxu0 0.0
      %4582 = vmatpush1.msra.mxu0 %v4314
      %4583 = vmatprep.subr.mxu0 0.0
      %4584 = vmatpush1.msra.mxu0 %v4315
      %4585 = vmatprep.subr.mxu0 0.0
      %4586 = vmatpush1.msra.mxu0 %v4316
      %4587 = vmatprep.subr.mxu0 0.0
      %4588 = vmatpush1.msra.mxu0 %v4317
      %4589 = vmatprep.subr.mxu0 0.0
      %4590 = vmatpush1.msra.mxu0 %v4318
      %4591 = vmatprep.subr.mxu0 0.0
      %4592 = vmatpush1.msra.mxu0 %v4319
      %4593 = vmatprep.subr.mxu0 0.0
      %4594 = vmatpush1.msra.mxu0 %v4320
      %4595 = vmatprep.subr.mxu0 0.0
      %4596 = vmatpush1.msra.mxu0 %v4321
      %4597 = vmatprep.subr.mxu0 0.0
      %4598 = vmatpush1.msra.mxu0 %v4322
      %4599 = vmatprep.subr.mxu0 0.0
      %4600 = vmatpush1.msra.mxu0 %v4323
      %4601 = vmatprep.subr.mxu0 0.0
      %4602 = vmatpush1.msra.mxu0 %v4324
      %4603 = vmatprep.subr.mxu0 0.0
      %4604 = vmatpush1.msra.mxu0 %v4325
      %4605 = vmatprep.subr.mxu0 0.0
      %4606 = vmatpush1.msra.mxu0 %v4326
      %4607 = vmatprep.subr.mxu0 0.0
      %4608 = vmatpush1.msra.mxu0 %v4327
      %4609 = vmatprep.subr.mxu0 0.0
      %4610 = vmatpush1.msra.mxu0 %v4328
      %4611 = vmatprep.subr.mxu0 0.0
      %4612 = vmatpush1.msra.mxu0 %v4329
      %4613 = vmatprep.subr.mxu0 0.0
      %4614 = vmatpush1.msra.mxu0 %v4330
      %4615 = vmatprep.subr.mxu0 0.0
      %4616 = vmatpush1.msra.mxu0 %v4331
      %4617 = vmatprep.subr.mxu0 0.0
      %4618 = vmatpush1.msra.mxu0 %v4332
      %4619 = vmatprep.subr.mxu0 0.0
      %4620 = vmatpush1.msra.mxu0 %v4333
      %4621 = vmatprep.subr.mxu0 0.0
      %4622 = vmatpush1.msra.mxu0 %v4334
      %4623 = vmatprep.subr.mxu0 0.0
      %4624 = vmatpush1.msra.mxu0 %v4335
      %4625 = vmatprep.subr.mxu0 0.0
      %4626 = vmatpush1.msra.mxu0 %v4336
      %4627 = vmatprep.subr.mxu0 0.0
      %4628 = vmatpush1.msra.mxu0 %v4337
      %4629 = vmatprep.subr.mxu0 0.0
      %4630 = vmatpush1.msra.mxu0 %v4338
      %4631 = vmatprep.subr.mxu0 0.0
      %4632 = vmatpush1.msra.mxu0 %v4339
      %4633 = vmatprep.subr.mxu0 0.0
      %4634 = vmatpush1.msra.mxu0 %v4340
      %4635 = vmatprep.subr.mxu0 0.0
      %4636 = vmatpush1.msra.mxu0 %v4341
      %4637 = vmatprep.subr.mxu0 0.0
      %4638 = vmatpush1.msra.mxu0 %v4342
      %4639 = vmatprep.subr.mxu0 0.0
      %4640 = vmatpush1.msra.mxu0 %v4343
      %4641 = vmatprep.subr.mxu0 0.0
      %4642 = vmatpush1.msra.mxu0 %v4344
      %4643 = vmatprep.mubr.f32.mxu0 %v4214
      %4644 = vmatmul.mubr.f32.gmra.mrb[0].mxu0 %v4213
      %v4645 = vpop.f32.mrb[0].mxu0
      %v4646 = vadd.f32 %v4556, %v4645
      %v4647 = vpop.f32.mrb[0].mxu0
      %4648 = vmatprep.mubr.f32.mxu0 %v4227
      %4649 = vmatmul.mubr.f32.gmra.mrb[0].mxu0 %v4226
      %v4650 = vpop.f32.mrb[0].mxu0
      %v4651 = vadd.f32 %v4561, %v4650
      %v4652 = vpop.f32.mrb[0].mxu0
      %4653 = vmatprep.mubr.f32.mxu0 %v4240
      %4654 = vmatmul.mubr.f32.gmra.mrb[0].mxu0 %v4239
      %v4655 = vpop.f32.mrb[0].mxu0
      %v4656 = vadd.f32 %v4566, %v4655
      %v4657 = vpop.f32.mrb[0].mxu0
      %4658 = vmatprep.mubr.f32.mxu0 %v4253
      %4659 = vmatmul.mubr.f32.gmra.mrb[0].mxu0 %v4252
      %v4660 = vpop.f32.mrb[0].mxu0
      %v4661 = vadd.f32 %v4571, %v4660
      %v4662 = vpop.f32.mrb[0].mxu0
      %4663 = vmatprep.mubr.f32.mxu0 %v4266
      %4664 = vmatmul.mubr.f32.gmra.mrb[0].mxu0 %v4265
      %v4665 = vpop.f32.mrb[0].mxu0
      %v4666 = vadd.f32 %v4576, %v4665
      %v4667 = vpop.f32.mrb[0].mxu0
      %4668 = vdwg.mxu0
      %4669 = vmatprep.subr.mxu0 0.0
      %4670 = vmatpush1.msra.mxu0 %v4345
      %4671 = vmatprep.subr.mxu0 0.0
      %4672 = vmatpush1.msra.mxu0 %v4346
      %4673 = vmatprep.subr.mxu0 0.0
      %4674 = vmatpush1.msra.mxu0 %v4347
      %4675 = vmatprep.subr.mxu0 0.0
      %4676 = vmatpush1.msra.mxu0 %v4348
      %4677 = vmatprep.subr.mxu0 0.0
      %4678 = vmatpush1.msra.mxu0 %v4349
      %4679 = vmatprep.subr.mxu0 0.0
      %4680 = vmatpush1.msra.mxu0 %v4350
      %4681 = vmatprep.subr.mxu0 0.0
      %4682 = vmatpush1.msra.mxu0 %v4351
      %4683 = vmatprep.subr.mxu0 0.0
      %4684 = vmatpush1.msra.mxu0 %v4352
      %4685 = vmatprep.subr.mxu0 0.0
      %4686 = vmatpush1.msra.mxu0 %v4353
      %4687 = vmatprep.subr.mxu0 0.0
      %4688 = vmatpush1.msra.mxu0 %v4354
      %4689 = vmatprep.subr.mxu0 0.0
      %4690 = vmatpush1.msra.mxu0 %v4355
      %4691 = vmatprep.subr.mxu0 0.0
      %4692 = vmatpush1.msra.mxu0 %v4356
      %4693 = vmatprep.subr.mxu0 0.0
      %4694 = vmatpush1.msra.mxu0 %v4357
      %4695 = vmatprep.subr.mxu0 0.0
      %4696 = vmatpush1.msra.mxu0 %v4358
      %4697 = vmatprep.subr.mxu0 0.0
      %4698 = vmatpush1.msra.mxu0 %v4359
      %4699 = vmatprep.subr.mxu0 0.0
      %4700 = vmatpush1.msra.mxu0 %v4360
      %4701 = vmatprep.subr.mxu0 0.0
      %4702 = vmatpush1.msra.mxu0 %v4361
      %4703 = vmatprep.subr.mxu0 0.0
      %4704 = vmatpush1.msra.mxu0 %v4362
      %4705 = vmatprep.subr.mxu0 0.0
      %4706 = vmatpush1.msra.mxu0 %v4363
      %4707 = vmatprep.subr.mxu0 0.0
      %4708 = vmatpush1.msra.mxu0 %v4364
      %4709 = vmatprep.subr.mxu0 0.0
      %4710 = vmatpush1.msra.mxu0 %v4365
      %4711 = vmatprep.subr.mxu0 0.0
      %4712 = vmatpush1.msra.mxu0 %v4366
      %4713 = vmatprep.subr.mxu0 0.0
      %4714 = vmatpush1.msra.mxu0 %v4367
      %4715 = vmatprep.subr.mxu0 0.0
      %4716 = vmatpush1.msra.mxu0 %v4368
      %4717 = vmatprep.subr.mxu0 0.0
      %4718 = vmatpush1.msra.mxu0 %v4369
      %4719 = vmatprep.subr.mxu0 0.0
      %4720 = vmatpush1.msra.mxu0 %v4370
      %4721 = vmatprep.subr.mxu0 0.0
      %4722 = vmatpush1.msra.mxu0 %v4371
      %4723 = vmatprep.subr.mxu0 0.0
      %4724 = vmatpush1.msra.mxu0 %v4372
      %4725 = vmatprep.subr.mxu0 0.0
      %4726 = vmatpush1.msra.mxu0 %v4373
      %4727 = vmatprep.subr.mxu0 0.0
      %4728 = vmatpush1.msra.mxu0 %v4374
      %4729 = vmatprep.subr.mxu0 0.0
      %4730 = vmatpush1.msra.mxu0 %v4375
      %4731 = vmatprep.subr.mxu0 0.0
      %4732 = vmatpush1.msra.mxu0 %v4376
      %4733 = vmatprep.mubr.f32.mxu0 %v4216
      %4734 = vmatmul.mubr.f32.gmra.mrb[0].mxu0 %v4215
      %v4735 = vpop.f32.mrb[0].mxu0
      %v4736 = vadd.f32 %v4646, %v4735
      %v4737 = vpop.f32.mrb[0].mxu0
      %4738 = vmatprep.mubr.f32.mxu0 %v4229
      %4739 = vmatmul.mubr.f32.gmra.mrb[0].mxu0 %v4228
      %v4740 = vpop.f32.mrb[0].mxu0
      %v4741 = vadd.f32 %v4651, %v4740
      %v4742 = vpop.f32.mrb[0].mxu0
      %4743 = vmatprep.mubr.f32.mxu0 %v4242
      %4744 = vmatmul.mubr.f32.gmra.mrb[0].mxu0 %v4241
      %v4745 = vpop.f32.mrb[0].mxu0
      %v4746 = vadd.f32 %v4656, %v4745
      %v4747 = vpop.f32.mrb[0].mxu0
      %4748 = vmatprep.mubr.f32.mxu0 %v4255
      %4749 = vmatmul.mubr.f32.gmra.mrb[0].mxu0 %v4254
      %v4750 = vpop.f32.mrb[0].mxu0
      %v4751 = vadd.f32 %v4661, %v4750
      %v4752 = vpop.f32.mrb[0].mxu0
      %4753 = vmatprep.mubr.f32.mxu0 %v4268
      %4754 = vmatmul.mubr.f32.gmra.mrb[0].mxu0 %v4267
      %v4755 = vpop.f32.mrb[0].mxu0
      %v4756 = vadd.f32 %v4666, %v4755
      %v4757 = vpop.f32.mrb[0].mxu0
      %4758 = vdwg.mxu0
      %4759 = vmatprep.subr.mxu0 0.0
      %4760 = vmatpush1.msra.mxu0 %v4377
      %4761 = vmatprep.subr.mxu0 0.0
      %4762 = vmatpush1.msra.mxu0 %v4378
      %4763 = vmatprep.subr.mxu0 0.0
      %4764 = vmatpush1.msra.mxu0 %v4379
      %4765 = vmatprep.subr.mxu0 0.0
      %4766 = vmatpush1.msra.mxu0 %v4380
      %4767 = vmatprep.subr.mxu0 0.0
      %4768 = vmatpush1.msra.mxu0 %v4381
      %4769 = vmatprep.subr.mxu0 0.0
      %4770 = vmatpush1.msra.mxu0 %v4382
      %4771 = vmatprep.subr.mxu0 0.0
      %4772 = vmatpush1.msra.mxu0 %v4383
      %4773 = vmatprep.subr.mxu0 0.0
      %4774 = vmatpush1.msra.mxu0 %v4384
      %4775 = vmatprep.subr.mxu0 0.0
      %4776 = vmatpush1.msra.mxu0 %v4385
      %4777 = vmatprep.subr.mxu0 0.0
      %4778 = vmatpush1.msra.mxu0 %v4386
      %4779 = vmatprep.subr.mxu0 0.0
      %4780 = vmatpush1.msra.mxu0 %v4387
      %4781 = vmatprep.subr.mxu0 0.0
      %4782 = vmatpush1.msra.mxu0 %v4388
      %4783 = vmatprep.subr.mxu0 0.0
      %4784 = vmatpush1.msra.mxu0 %v4389
      %4785 = vmatprep.subr.mxu0 0.0
      %4786 = vmatpush1.msra.mxu0 %v4390
      %4787 = vmatprep.subr.mxu0 0.0
      %4788 = vmatpush1.msra.mxu0 %v4391
      %4789 = vmatprep.subr.mxu0 0.0
      %4790 = vmatpush1.msra.mxu0 %v4392
      %4791 = vmatprep.subr.mxu0 0.0
      %4792 = vmatpush1.msra.mxu0 %v4393
      %4793 = vmatprep.subr.mxu0 0.0
      %4794 = vmatpush1.msra.mxu0 %v4394
      %4795 = vmatprep.subr.mxu0 0.0
      %4796 = vmatpush1.msra.mxu0 %v4395
      %4797 = vmatprep.subr.mxu0 0.0
      %4798 = vmatpush1.msra.mxu0 %v4396
      %4799 = vmatprep.subr.mxu0 0.0
      %4800 = vmatpush1.msra.mxu0 %v4397
      %4801 = vmatprep.subr.mxu0 0.0
      %4802 = vmatpush1.msra.mxu0 %v4398
      %4803 = vmatprep.subr.mxu0 0.0
      %4804 = vmatpush1.msra.mxu0 %v4399
      %4805 = vmatprep.subr.mxu0 0.0
      %4806 = vmatpush1.msra.mxu0 %v4400
      %4807 = vmatprep.subr.mxu0 0.0
      %4808 = vmatpush1.msra.mxu0 %v4401
      %4809 = vmatprep.subr.mxu0 0.0
      %4810 = vmatpush1.msra.mxu0 %v4402
      %4811 = vmatprep.subr.mxu0 0.0
      %4812 = vmatpush1.msra.mxu0 %v4403
      %4813 = vmatprep.subr.mxu0 0.0
      %4814 = vmatpush1.msra.mxu0 %v4404
      %4815 = vmatprep.subr.mxu0 0.0
      %4816 = vmatpush1.msra.mxu0 %v4405
      %4817 = vmatprep.subr.mxu0 0.0
      %4818 = vmatpush1.msra.mxu0 %v4406
      %4819 = vmatprep.subr.mxu0 0.0
      %4820 = vmatpush1.msra.mxu0 %v4407
      %4821 = vmatprep.subr.mxu0 0.0
      %4822 = vmatpush1.msra.mxu0 %v4408
      %4823 = vmatprep.mubr.f32.mxu0 %v4218
      %4824 = vmatmul.mubr.f32.gmra.mrb[0].mxu0 %v4217
      %v4825 = vpop.f32.mrb[0].mxu0
      %v4826 = vadd.f32 %v4736, %v4825
      %v4827 = vpop.f32.mrb[0].mxu0
      %4828 = vmatprep.mubr.f32.mxu0 %v4231
      %4829 = vmatmul.mubr.f32.gmra.mrb[0].mxu0 %v4230
      %v4830 = vpop.f32.mrb[0].mxu0
      %v4831 = vadd.f32 %v4741, %v4830
      %v4832 = vpop.f32.mrb[0].mxu0
      %4833 = vmatprep.mubr.f32.mxu0 %v4244
      %4834 = vmatmul.mubr.f32.gmra.mrb[0].mxu0 %v4243
      %v4835 = vpop.f32.mrb[0].mxu0
      %v4836 = vadd.f32 %v4746, %v4835
      %v4837 = vpop.f32.mrb[0].mxu0
      %4838 = vmatprep.mubr.f32.mxu0 %v4257
      %4839 = vmatmul.mubr.f32.gmra.mrb[0].mxu0 %v4256
      %v4840 = vpop.f32.mrb[0].mxu0
      %v4841 = vadd.f32 %v4751, %v4840
      %v4842 = vpop.f32.mrb[0].mxu0
      %4843 = vmatprep.mubr.f32.mxu0 %v4270
      %4844 = vmatmul.mubr.f32.gmra.mrb[0].mxu0 %v4269
      %v4845 = vpop.f32.mrb[0].mxu0
      %v4846 = vadd.f32 %v4756, %v4845
      %v4847 = vpop.f32.mrb[0].mxu0
      %4848 = vdwg.mxu0
      %4849 = vmatprep.subr.mxu0 0.0
      %4850 = vmatpush1.msra.mxu0 %v4409
      %4851 = vmatprep.subr.mxu0 0.0
      %4852 = vmatpush1.msra.mxu0 %v4410
      %4853 = vmatprep.subr.mxu0 0.0
      %4854 = vmatpush1.msra.mxu0 %v4411
      %4855 = vmatprep.subr.mxu0 0.0
      %4856 = vmatpush1.msra.mxu0 %v4412
      %4857 = vmatprep.subr.mxu0 0.0
      %4858 = vmatpush1.msra.mxu0 %v4413
      %4859 = vmatprep.subr.mxu0 0.0
      %4860 = vmatpush1.msra.mxu0 %v4414
      %4861 = vmatprep.subr.mxu0 0.0
      %4862 = vmatpush1.msra.mxu0 %v4415
      %4863 = vmatprep.subr.mxu0 0.0
      %4864 = vmatpush1.msra.mxu0 %v4416
      %4865 = vmatprep.subr.mxu0 0.0
      %4866 = vmatpush1.msra.mxu0 %v4417
      %4867 = vmatprep.subr.mxu0 0.0
      %4868 = vmatpush1.msra.mxu0 %v4418
      %4869 = vmatprep.subr.mxu0 0.0
      %4870 = vmatpush1.msra.mxu0 %v4419
      %4871 = vmatprep.subr.mxu0 0.0
      %4872 = vmatpush1.msra.mxu0 %v4420
      %4873 = vmatprep.subr.mxu0 0.0
      %4874 = vmatpush1.msra.mxu0 %v4421
      %4875 = vmatprep.subr.mxu0 0.0
      %4876 = vmatpush1.msra.mxu0 %v4422
      %4877 = vmatprep.subr.mxu0 0.0
      %4878 = vmatpush1.msra.mxu0 %v4423
      %4879 = vmatprep.subr.mxu0 0.0
      %4880 = vmatpush1.msra.mxu0 %v4424
      %4881 = vmatprep.subr.mxu0 0.0
      %4882 = vmatpush1.msra.mxu0 %v4425
      %4883 = vmatprep.subr.mxu0 0.0
      %4884 = vmatpush1.msra.mxu0 %v4426
      %4885 = vmatprep.subr.mxu0 0.0
      %4886 = vmatpush1.msra.mxu0 %v4427
      %4887 = vmatprep.subr.mxu0 0.0
      %4888 = vmatpush1.msra.mxu0 %v4428
      %4889 = vmatprep.subr.mxu0 0.0
      %4890 = vmatpush1.msra.mxu0 %v4429
      %4891 = vmatprep.subr.mxu0 0.0
      %4892 = vmatpush1.msra.mxu0 %v4430
      %4893 = vmatprep.subr.mxu0 0.0
      %4894 = vmatpush1.msra.mxu0 %v4431
      %4895 = vmatprep.subr.mxu0 0.0
      %4896 = vmatpush1.msra.mxu0 %v4432
      %4897 = vmatprep.subr.mxu0 0.0
      %4898 = vmatpush1.msra.mxu0 %v4433
      %4899 = vmatprep.subr.mxu0 0.0
      %4900 = vmatpush1.msra.mxu0 %v4434
      %4901 = vmatprep.subr.mxu0 0.0
      %4902 = vmatpush1.msra.mxu0 %v4435
      %4903 = vmatprep.subr.mxu0 0.0
      %4904 = vmatpush1.msra.mxu0 %v4436
      %4905 = vmatprep.subr.mxu0 0.0
      %4906 = vmatpush1.msra.mxu0 %v4437
      %4907 = vmatprep.subr.mxu0 0.0
      %4908 = vmatpush1.msra.mxu0 %v4438
      %4909 = vmatprep.subr.mxu0 0.0
      %4910 = vmatpush1.msra.mxu0 %v4439
      %4911 = vmatprep.subr.mxu0 0.0
      %4912 = vmatpush1.msra.mxu0 %v4440
      %4913 = vmatprep.mubr.f32.mxu0 %v4220
      %4914 = vmatmul.mubr.f32.gmra.mrb[0].mxu0 %v4219
      %v4915 = vpop.f32.mrb[0].mxu0
      %v4916 = vadd.f32 %v4826, %v4915
      %v4917 = vpop.f32.mrb[0].mxu0
      %4918 = vmatprep.mubr.f32.mxu0 %v4233
      %4919 = vmatmul.mubr.f32.gmra.mrb[0].mxu0 %v4232
      %v4920 = vpop.f32.mrb[0].mxu0
      %v4921 = vadd.f32 %v4831, %v4920
      %v4922 = vpop.f32.mrb[0].mxu0
      %4923 = vmatprep.mubr.f32.mxu0 %v4246
      %4924 = vmatmul.mubr.f32.gmra.mrb[0].mxu0 %v4245
      %v4925 = vpop.f32.mrb[0].mxu0
      %v4926 = vadd.f32 %v4836, %v4925
      %v4927 = vpop.f32.mrb[0].mxu0
      %4928 = vmatprep.mubr.f32.mxu0 %v4259
      %4929 = vmatmul.mubr.f32.gmra.mrb[0].mxu0 %v4258
      %v4930 = vpop.f32.mrb[0].mxu0
      %v4931 = vadd.f32 %v4841, %v4930
      %v4932 = vpop.f32.mrb[0].mxu0
      %4933 = vmatprep.mubr.f32.mxu0 %v4272
      %4934 = vmatmul.mubr.f32.gmra.mrb[0].mxu0 %v4271
      %v4935 = vpop.f32.mrb[0].mxu0
      %v4936 = vadd.f32 %v4846, %v4935
      %v4937 = vpop.f32.mrb[0].mxu0
      %4938 = vdwg.mxu0
      %4939 = vmatprep.subr.mxu0 0.0
      %4940 = vmatpush1.msra.mxu0 %v4441
      %4941 = vmatprep.subr.mxu0 0.0
      %4942 = vmatpush1.msra.mxu0 %v4442
      %4943 = vmatprep.subr.mxu0 0.0
      %4944 = vmatpush1.msra.mxu0 %v4443
      %4945 = vmatprep.subr.mxu0 0.0
      %4946 = vmatpush1.msra.mxu0 %v4444
      %4947 = vmatprep.subr.mxu0 0.0
      %4948 = vmatpush1.msra.mxu0 %v4445
      %4949 = vmatprep.subr.mxu0 0.0
      %4950 = vmatpush1.msra.mxu0 %v4446
      %4951 = vmatprep.subr.mxu0 0.0
      %4952 = vmatpush1.msra.mxu0 %v4447
      %4953 = vmatprep.subr.mxu0 0.0
      %4954 = vmatpush1.msra.mxu0 %v4448
      %4955 = vmatprep.subr.mxu0 0.0
      %4956 = vmatpush1.msra.mxu0 %v4449
      %4957 = vmatprep.subr.mxu0 0.0
      %4958 = vmatpush1.msra.mxu0 %v4450
      %4959 = vmatprep.subr.mxu0 0.0
      %4960 = vmatpush1.msra.mxu0 %v4451
      %4961 = vmatprep.subr.mxu0 0.0
      %4962 = vmatpush1.msra.mxu0 %v4452
      %4963 = vmatprep.subr.mxu0 0.0
      %4964 = vmatpush1.msra.mxu0 %v4453
      %4965 = vmatprep.subr.mxu0 0.0
      %4966 = vmatpush1.msra.mxu0 %v4454
      %4967 = vmatprep.subr.mxu0 0.0
      %4968 = vmatpush1.msra.mxu0 %v4455
      %4969 = vmatprep.subr.mxu0 0.0
      %4970 = vmatpush1.msra.mxu0 %v4456
      %4971 = vmatprep.subr.mxu0 0.0
      %4972 = vmatpush1.msra.mxu0 %v4457
      %4973 = vmatprep.subr.mxu0 0.0
      %4974 = vmatpush1.msra.mxu0 %v4458
      %4975 = vmatprep.subr.mxu0 0.0
      %4976 = vmatpush1.msra.mxu0 %v4459
      %4977 = vmatprep.subr.mxu0 0.0
      %4978 = vmatpush1.msra.mxu0 %v4460
      %4979 = vmatprep.subr.mxu0 0.0
      %4980 = vmatpush1.msra.mxu0 %v4461
      %4981 = vmatprep.subr.mxu0 0.0
      %4982 = vmatpush1.msra.mxu0 %v4462
      %4983 = vmatprep.subr.mxu0 0.0
      %4984 = vmatpush1.msra.mxu0 %v4463
      %4985 = vmatprep.subr.mxu0 0.0
      %4986 = vmatpush1.msra.mxu0 %v4464
      %4987 = vmatprep.subr.mxu0 0.0
      %4988 = vmatpush1.msra.mxu0 %v4465
      %4989 = vmatprep.subr.mxu0 0.0
      %4990 = vmatpush1.msra.mxu0 %v4466
      %4991 = vmatprep.subr.mxu0 0.0
      %4992 = vmatpush1.msra.mxu0 %v4467
      %4993 = vmatprep.subr.mxu0 0.0
      %4994 = vmatpush1.msra.mxu0 %v4468
      %4995 = vmatprep.subr.mxu0 0.0
      %4996 = vmatpush1.msra.mxu0 %v4469
      %4997 = vmatprep.subr.mxu0 0.0
      %4998 = vmatpush1.msra.mxu0 %v4470
      %4999 = vmatprep.subr.mxu0 0.0
      %5000 = vmatpush1.msra.mxu0 %v4471
      %5001 = vmatprep.subr.mxu0 0.0
      %5002 = vmatpush1.msra.mxu0 %v4472
      %5003 = vmatprep.mubr.f32.mxu0 %v4222
      %5004 = vmatmul.mubr.f32.gmra.mrb[0].mxu0 %v4221
      %v5005 = vpop.f32.mrb[0].mxu0
      %v5006 = vadd.f32 %v4916, %v5005
      %v5007 = vpop.f32.mrb[0].mxu0
      %5008 = vmatprep.mubr.f32.mxu0 %v4235
      %5009 = vmatmul.mubr.f32.gmra.mrb[0].mxu0 %v4234
      %v5010 = vpop.f32.mrb[0].mxu0
      %v5011 = vadd.f32 %v4921, %v5010
      %v5012 = vpop.f32.mrb[0].mxu0
      %5013 = vmatprep.mubr.f32.mxu0 %v4248
      %5014 = vmatmul.mubr.f32.gmra.mrb[0].mxu0 %v4247
      %v5015 = vpop.f32.mrb[0].mxu0
      %v5016 = vadd.f32 %v4926, %v5015
      %v5017 = vpop.f32.mrb[0].mxu0
      %5018 = vmatprep.mubr.f32.mxu0 %v4261
      %5019 = vmatmul.mubr.f32.gmra.mrb[0].mxu0 %v4260
      %v5020 = vpop.f32.mrb[0].mxu0
      %v5021 = vadd.f32 %v4931, %v5020
      %v5022 = vpop.f32.mrb[0].mxu0
      %5023 = vmatprep.mubr.f32.mxu0 %v4274
      %5024 = vmatmul.mubr.f32.gmra.mrb[0].mxu0 %v4273
      %v5025 = vpop.f32.mrb[0].mxu0
      %v5026 = vadd.f32 %v4936, %v5025
      %v5027 = vpop.f32.mrb[0].mxu0
      %5028 = vdwg.mxu0
      %5029 = vmatprep.subr.mxu0 0.0
      %5030 = vmatpush1.msra.mxu0 %v4473
      %5031 = vmatprep.subr.mxu0 0.0
      %5032 = vmatpush1.msra.mxu0 %v4474
      %5033 = vmatprep.subr.mxu0 0.0
      %5034 = vmatpush1.msra.mxu0 %v4475
      %5035 = vmatprep.subr.mxu0 0.0
      %5036 = vmatpush1.msra.mxu0 %v4476
      %5037 = vmatprep.subr.mxu0 0.0
      %5038 = vmatpush1.msra.mxu0 %v4477
      %5039 = vmatprep.subr.mxu0 0.0
      %5040 = vmatpush1.msra.mxu0 %v4478
      %5041 = vmatprep.subr.mxu0 0.0
      %5042 = vmatpush1.msra.mxu0 %v4479
      %5043 = vmatprep.subr.mxu0 0.0
      %5044 = vmatpush1.msra.mxu0 %v4480
      %5045 = vmatprep.subr.mxu0 0.0
      %5046 = vmatpush1.msra.mxu0 %v4481
      %5047 = vmatprep.subr.mxu0 0.0
      %5048 = vmatpush1.msra.mxu0 %v4482
      %5049 = vmatprep.subr.mxu0 0.0
      %5050 = vmatpush1.msra.mxu0 %v4483
      %5051 = vmatprep.subr.mxu0 0.0
      %5052 = vmatpush1.msra.mxu0 %v4484
      %5053 = vmatprep.subr.mxu0 0.0
      %5054 = vmatpush1.msra.mxu0 %v4485
      %5055 = vmatprep.subr.mxu0 0.0
      %5056 = vmatpush1.msra.mxu0 %v4486
      %5057 = vmatprep.subr.mxu0 0.0
      %5058 = vmatpush1.msra.mxu0 %v4487
      %5059 = vmatprep.subr.mxu0 0.0
      %5060 = vmatpush1.msra.mxu0 %v4488
      %5061 = vmatprep.subr.mxu0 0.0
      %5062 = vmatpush1.msra.mxu0 0.0
      %5063 = vmatprep.subr.mxu0 0.0
      %5064 = vmatpush1.msra.mxu0 0.0
      %5065 = vmatprep.subr.mxu0 0.0
      %5066 = vmatpush1.msra.mxu0 0.0
      %5067 = vmatprep.subr.mxu0 0.0
      %5068 = vmatpush1.msra.mxu0 0.0
      %5069 = vmatprep.subr.mxu0 0.0
      %5070 = vmatpush1.msra.mxu0 0.0
      %5071 = vmatprep.subr.mxu0 0.0
      %5072 = vmatpush1.msra.mxu0 0.0
      %5073 = vmatprep.subr.mxu0 0.0
      %5074 = vmatpush1.msra.mxu0 0.0
      %5075 = vmatprep.subr.mxu0 0.0
      %5076 = vmatpush1.msra.mxu0 0.0
      %5077 = vmatprep.subr.mxu0 0.0
      %5078 = vmatpush1.msra.mxu0 0.0
      %5079 = vmatprep.subr.mxu0 0.0
      %5080 = vmatpush1.msra.mxu0 0.0
      %5081 = vmatprep.subr.mxu0 0.0
      %5082 = vmatpush1.msra.mxu0 0.0
      %5083 = vmatprep.subr.mxu0 0.0
      %5084 = vmatpush1.msra.mxu0 0.0
      %5085 = vmatprep.subr.mxu0 0.0
      %5086 = vmatpush1.msra.mxu0 0.0
      %5087 = vmatprep.subr.mxu0 0.0
      %5088 = vmatpush1.msra.mxu0 0.0
      %5089 = vmatprep.subr.mxu0 0.0
      %5090 = vmatpush1.msra.mxu0 0.0
      %5091 = vmatprep.subr.mxu0 0.0
      %5092 = vmatpush1.msra.mxu0 0.0
      %5093 = vmatprep.mubr.f32.mxu0 0.0
      %5094 = vmatmul.mubr.f32.gmra.mrb[0].mxu0 %v4223
      %v5095 = vpop.f32.mrb[0].mxu0
      %v5096 = vadd.f32 %v5006, %v5095
      %v5097 = vpop.f32.mrb[0].mxu0
      %5098 = vmatprep.mubr.f32.mxu0 0.0
      %5099 = vmatmul.mubr.f32.gmra.mrb[0].mxu0 %v4236
      %v5100 = vpop.f32.mrb[0].mxu0
      %v5101 = vadd.f32 %v5011, %v5100
      %v5102 = vpop.f32.mrb[0].mxu0
      %5103 = vmatprep.mubr.f32.mxu0 0.0
      %5104 = vmatmul.mubr.f32.gmra.mrb[0].mxu0 %v4249
      %v5105 = vpop.f32.mrb[0].mxu0
      %v5106 = vadd.f32 %v5016, %v5105
      %v5107 = vpop.f32.mrb[0].mxu0
      %5108 = vmatprep.mubr.f32.mxu0 0.0
      %5109 = vmatmul.mubr.f32.gmra.mrb[0].mxu0 %v4262
      %v5110 = vpop.f32.mrb[0].mxu0
      %v5111 = vadd.f32 %v5021, %v5110
      %v5112 = vpop.f32.mrb[0].mxu0
      %5113 = vmatprep.mubr.f32.mxu0 0.0
      %5114 = vmatmul.mubr.f32.gmra.mrb[0].mxu0 %v4275
      %v5115 = vpop.f32.mrb[0].mxu0
      %v5116 = vadd.f32 %v5026, %v5115
      %v5117 = vpop.f32.mrb[0].mxu0
      %5118 = vdwg.mxu0
      %v5119 = vadd.f32 %v4276, %v5096
      %v5120 = vadd.f32 %v4277, %v5101
      %v5121 = vadd.f32 %v4278, %v5106
      %v5122 = vadd.f32 %v4279, %v5111
      %v5123 = vadd.f32 %v4280, %v5116
      %vm5124 = vcmask 80896
      %5125 = vst.msk [vmem:[#allocation2] sm:$0xff] %vm5124, %v5119
      %5126 = vst.msk [vmem:[#allocation2 + $0x8] sm:$0xff] %vm5124, %v5120
      %5127 = vst.msk [vmem:[#allocation2 + $0x10] sm:$0xff] %vm5124, %v5121
      %5128 = vst.msk [vmem:[#allocation2 + $0x18] sm:$0xff] %vm5124, %v5122
      %5129 = vst.msk [vmem:[#allocation2 + $0x20] sm:$0xff] %vm5124, %v5123
      // Predicated region
      $region41: #{leaf_forward.1} parent=35 // pred_check
        %p5130 = pneg %p249
      $region42: #{leaf_forward.1} parent=35 // pred_check_branch
        %5132 = sbr.rel (%p5130) target = $region44
      $region43: #{leaf_forward.1} parent=35 // pred_region
        %v5133 = vld [vmem:[#allocation2] sm:$0xff]
        %v5134 = vld [vmem:[#allocation2 + $0x8] sm:$0xff]
        %v5135 = vld [vmem:[#allocation2 + $0x10] sm:$0xff]
        %v5136 = vld [vmem:[#allocation2 + $0x18] sm:$0xff]
        %v5137 = vld [vmem:[#allocation2 + $0x20] sm:$0xff]
        %v5138 = vmax.f32 %v5133, 1e-05
        %v5139 = vmax.f32 %v5134, 1e-05
        %v5140 = vmax.f32 %v5135, 1e-05
        %v5141 = vmax.f32 %v5136, 1e-05
        %v5142 = vmax.f32 %v5137, 1e-05
        %v5143 = vld [vmem:[%s3] sm:$0xff]
        %v5144 = vld [vmem:[%s3 + $0x8] sm:$0x3]
        %v5146 = vsel %vm5124, %v5138, 0
        %v5149 = vsel %vm5124, %v5139, 0
        %v5152 = vsel %vm5124, %v5140, 0
        %v5155 = vsel %vm5124, %v5141, 0
        %v5158 = vsel %vm5124, %v5142, 0
        %vm5160 = vcmask 1041408
        %v5162 = vsel %vm5160, %v5144, 0
        %5164 = vmatprep.subr.mxu0 0.0
        %5165 = vmatpush1.msra.mxu0 %v5143
        %5166 = vmatprep.subr.mxu0 0.0
        %5167 = vmatpush1.msra.mxu0 %v5162
        %5168 = vmatprep.subr.mxu0 0.0
        %5169 = vmatpush1.msra.mxu0 0.0
        %5170 = vmatprep.subr.mxu0 0.0
        %5171 = vmatpush1.msra.mxu0 0.0
        %5172 = vmatprep.subr.mxu0 0.0
        %5173 = vmatpush1.msra.mxu0 0.0
        %5174 = vmatprep.subr.mxu0 0.0
        %5175 = vmatpush1.msra.mxu0 0.0
        %5176 = vmatprep.subr.mxu0 0.0
        %5177 = vmatpush1.msra.mxu0 0.0
        %5178 = vmatprep.subr.mxu0 0.0
        %5179 = vmatpush1.msra.mxu0 0.0
        %5180 = vmatprep.subr.mxu0 0.0
        %5181 = vmatpush1.msra.mxu0 0.0
        %5182 = vmatprep.subr.mxu0 0.0
        %5183 = vmatpush1.msra.mxu0 0.0
        %5184 = vmatprep.subr.mxu0 0.0
        %5185 = vmatpush1.msra.mxu0 0.0
        %5186 = vmatprep.subr.mxu0 0.0
        %5187 = vmatpush1.msra.mxu0 0.0
        %5188 = vmatprep.subr.mxu0 0.0
        %5189 = vmatpush1.msra.mxu0 0.0
        %5190 = vmatprep.subr.mxu0 0.0
        %5191 = vmatpush1.msra.mxu0 0.0
        %5192 = vmatprep.subr.mxu0 0.0
        %5193 = vmatpush1.msra.mxu0 0.0
        %5194 = vmatprep.subr.mxu0 0.0
        %5195 = vmatpush1.msra.mxu0 0.0
        %5196 = vmatprep.subr.mxu0 0.0
        %5197 = vmatpush1.msra.mxu0 0.0
        %5198 = vmatprep.subr.mxu0 0.0
        %5199 = vmatpush1.msra.mxu0 0.0
        %5200 = vmatprep.subr.mxu0 0.0
        %5201 = vmatpush1.msra.mxu0 0.0
        %5202 = vmatprep.subr.mxu0 0.0
        %5203 = vmatpush1.msra.mxu0 0.0
        %5204 = vmatprep.subr.mxu0 0.0
        %5205 = vmatpush1.msra.mxu0 0.0
        %5206 = vmatprep.subr.mxu0 0.0
        %5207 = vmatpush1.msra.mxu0 0.0
        %5208 = vmatprep.subr.mxu0 0.0
        %5209 = vmatpush1.msra.mxu0 0.0
        %5210 = vmatprep.subr.mxu0 0.0
        %5211 = vmatpush1.msra.mxu0 0.0
        %5212 = vmatprep.subr.mxu0 0.0
        %5213 = vmatpush1.msra.mxu0 0.0
        %5214 = vmatprep.subr.mxu0 0.0
        %5215 = vmatpush1.msra.mxu0 0.0
        %5216 = vmatprep.subr.mxu0 0.0
        %5217 = vmatpush1.msra.mxu0 0.0
        %5218 = vmatprep.subr.mxu0 0.0
        %5219 = vmatpush1.msra.mxu0 0.0
        %5220 = vmatprep.subr.mxu0 0.0
        %5221 = vmatpush1.msra.mxu0 0.0
        %5222 = vmatprep.subr.mxu0 0.0
        %5223 = vmatpush1.msra.mxu0 0.0
        %5224 = vmatprep.subr.mxu0 0.0
        %5225 = vmatpush1.msra.mxu0 0.0
        %5226 = vmatprep.subr.mxu0 0.0
        %5227 = vmatpush1.msra.mxu0 0.0
        %5228 = vmatprep.mubr.f32.mxu0 0.0
        %5229 = vmatmul.mubr.f32.gmra.mrb[0].mxu0 %v5146
        %v5230 = vpop.f32.mrb[0].mxu0
        %v5231 = vadd.f32 1e-12, %v5230
        %v5232 = vpop.f32.mrb[0].mxu0
        %5233 = vmatprep.mubr.f32.mxu0 0.0
        %5234 = vmatmul.mubr.f32.gmra.mrb[0].mxu0 %v5149
        %v5235 = vpop.f32.mrb[0].mxu0
        %v5236 = vadd.f32 1e-12, %v5235
        %v5237 = vpop.f32.mrb[0].mxu0
        %5238 = vmatprep.mubr.f32.mxu0 0.0
        %5239 = vmatmul.mubr.f32.gmra.mrb[0].mxu0 %v5152
        %v5240 = vpop.f32.mrb[0].mxu0
        %v5241 = vadd.f32 1e-12, %v5240
        %v5242 = vpop.f32.mrb[0].mxu0
        %5243 = vmatprep.mubr.f32.mxu0 0.0
        %5244 = vmatmul.mubr.f32.gmra.mrb[0].mxu0 %v5155
        %v5245 = vpop.f32.mrb[0].mxu0
        %v5246 = vadd.f32 1e-12, %v5245
        %v5247 = vpop.f32.mrb[0].mxu0
        %5248 = vmatprep.mubr.f32.mxu0 0.0
        %5249 = vmatmul.mubr.f32.gmra.mrb[0].mxu0 %v5158
        %v5250 = vpop.f32.mrb[0].mxu0
        %v5251 = vadd.f32 1e-12, %v5250
        %v5252 = vpop.f32.mrb[0].mxu0
        %5253 = vdwg.mxu0
        %v5254 = vlog2.pop %v5231
        %v5255 = vmul.f32 %v5254, 0.6931472
        %v5256 = vlog2.pop %v5236
        %v5257 = vmul.f32 %v5256, 0.6931472
        %v5258 = vlog2.pop %v5241
        %v5259 = vmul.f32 %v5258, 0.6931472
        %v5260 = vlog2.pop %v5246
        %v5261 = vmul.f32 %v5260, 0.6931472
        %v5262 = vlog2.pop %v5251
        %v5263 = vmul.f32 %v5262, 0.6931472
        %v5264 = vmul.f32 %v5255, -0.96
        %v5265 = vmul.f32 %v5257, -0.96
        %v5266 = vmul.f32 %v5259, -0.96
        %v5267 = vmul.f32 %v5261, -0.96
        %v5268 = vmul.f32 %v5263, -0.96
        %v5269 = vmul.f32 %v5264, 1.442695
        %v5270 = vpow.pop %v5269
        %v5271 = vmul.f32 %v5265, 1.442695
        %v5272 = vpow.pop %v5271
        %v5273 = vmul.f32 %v5266, 1.442695
        %v5274 = vpow.pop %v5273
        %v5275 = vmul.f32 %v5267, 1.442695
        %v5276 = vpow.pop %v5275
        %v5277 = vmul.f32 %v5268, 1.442695
        %v5278 = vpow.pop %v5277
        %v5279 = vmul.f32 %v5138, %v5270
        %v5280 = vmul.f32 %v5139, %v5272
        %v5281 = vmul.f32 %v5140, %v5274
        %v5282 = vmul.f32 %v5141, %v5276
        %v5283 = vmul.f32 %v5142, %v5278
        %v5284 = vadd.f32 %v5279, 2.0
        %v5285 = vadd.f32 %v5280, 2.0
        %v5286 = vadd.f32 %v5281, 2.0
        %v5287 = vadd.f32 %v5282, 2.0
        %v5288 = vadd.f32 %v5283, 2.0
        %v5289 = vrsqrt.pop %v5284
        %v5290 = vmul.f32 %v5284, %v5289
        %vm5291 = vcmp.eq.f32.partialorder %v5284, inf
        %v5292 = vsel %vm5291, %v5284, %v5290
        %vm5293 = vcmp.eq.f32.partialorder %v5284, 0.0
        %v5294 = vand.u32 %v5284, 2147483648
        %v5295 = vsel %vm5293, %v5294, %v5292
        %v5296 = vrsqrt.pop %v5285
        %v5297 = vmul.f32 %v5285, %v5296
        %vm5298 = vcmp.eq.f32.partialorder %v5285, inf
        %v5299 = vsel %vm5298, %v5285, %v5297
        %vm5300 = vcmp.eq.f32.partialorder %v5285, 0.0
        %v5301 = vand.u32 %v5285, 2147483648
        %v5302 = vsel %vm5300, %v5301, %v5299
        %v5303 = vrsqrt.pop %v5286
        %v5304 = vmul.f32 %v5286, %v5303
        %vm5305 = vcmp.eq.f32.partialorder %v5286, inf
        %v5306 = vsel %vm5305, %v5286, %v5304
        %vm5307 = vcmp.eq.f32.partialorder %v5286, 0.0
        %v5308 = vand.u32 %v5286, 2147483648
        %v5309 = vsel %vm5307, %v5308, %v5306
        %v5310 = vrsqrt.pop %v5287
        %v5311 = vmul.f32 %v5287, %v5310
        %vm5312 = vcmp.eq.f32.partialorder %v5287, inf
        %v5313 = vsel %vm5312, %v5287, %v5311
        %vm5314 = vcmp.eq.f32.partialorder %v5287, 0.0
        %v5315 = vand.u32 %v5287, 2147483648
        %v5316 = vsel %vm5314, %v5315, %v5313
        %v5317 = vrsqrt.pop %v5288
        %v5318 = vmul.f32 %v5288, %v5317
        %vm5319 = vcmp.eq.f32.partialorder %v5288, inf
        %v5320 = vsel %vm5319, %v5288, %v5318
        %vm5321 = vcmp.eq.f32.partialorder %v5288, 0.0
        %v5322 = vand.u32 %v5288, 2147483648
        %v5323 = vsel %vm5321, %v5322, %v5320
        %v5324 = vsub.f32 %v5295, 1.4142135
        %v5325 = vsub.f32 %v5302, 1.4142135
        %v5326 = vsub.f32 %v5309, 1.4142135
        %v5327 = vsub.f32 %v5316, 1.4142135
        %v5328 = vsub.f32 %v5323, 1.4142135
        %5329 = vst.msk [vmem:[%s247] sm:$0xff] %vm5124, %v5324
        %5330 = vst.msk [vmem:[%s247 + $0x8] sm:$0xff] %vm5124, %v5325
        %5331 = vst.msk [vmem:[%s247 + $0x10] sm:$0xff] %vm5124, %v5326
        %5332 = vst.msk [vmem:[%s247 + $0x18] sm:$0xff] %vm5124, %v5327
        %5333 = vst.msk [vmem:[%s247 + $0x20] sm:$0xff] %vm5124, %v5328
      $region44: #{leaf_forward.1} parent=35 // pred_fallthru
        _
      %p5334 = scmp.lt.s32.totalorder %s19, 1
      %s5335 = scalar_select %p5334, %s19, 1
      %s5336 = smul.addr %s5335, 5
      %s5337 = smul.addr %s5336, 8
      %s5338 = scalar_lea.vmem %s4, %s5337
      // Predicated region
      $region45: #{leaf_forward.1} parent=35 // pred_check
        %p5339 = pneg %p141
      $region46: #{leaf_forward.1} parent=35 // pred_check_branch
        %5341 = sbr.rel (%p5339) target = $region48
      $region47: #{leaf_forward.1} parent=35 // pred_region
        _
      $region48: #{leaf_forward.1} parent=35 // pred_fallthru
        _
    $region36: #{leaf_forward.1} parent=5 // pred_fallthru
      _
    %p5342 = scmp.le.s32.totalorder 2, %s10
    // Predicated region
    $region49: #{leaf_forward.1} parent=5 // pred_check
      %p5343 = pneg %p5342
    $region50: #{leaf_forward.1} parent=5 // pred_check_branch
      %5345 = sbr.rel (%p5343) target = $region52
    $region51: #{leaf_forward.1} parent=5 // pred_region
      %s5346 = ssub.s32 %s10, 2
      // Predicated region
      $region53: #{leaf_forward.1} parent=51 // pred_check
        %p5347 = pneg %p147
      $region54: #{leaf_forward.1} parent=51 // pred_check_branch
        %5349 = sbr.rel (%p5347) target = $region56
      $region55: #{leaf_forward.1} parent=51 // pred_region
        %p5350 = scmp.lt.s32.totalorder %s21, 1
        %s5351 = scalar_select %p5350, %s21, 1
        %s5352 = smul.addr %s5351, 5
        %s5353 = smul.addr %s5352, 8
        %s5354 = scalar_lea.vmem %s4, %s5353
      $region56: #{leaf_forward.1} parent=51 // pred_fallthru
        _
    $region52: #{leaf_forward.1} parent=5 // pred_fallthru
      _
  $region6: #{leaf_forward.1} parent=0 // loop_footer
    %s14 = sadd.s32 1, %s10
  $region7: #{leaf_forward.1} parent=0 // loop_footer_branch
    %9 = sbr.rel target = $region3
  $region8: #{leaf_forward.1} parent=0 // loop_exit
    _

</llo_original>
